<compile_context>
chip_gen: v6e
topology: v6e:2x2x1
jax: 0.10.0
libtpu: 0.0.40
codegen_flags: <defaults>
</compile_context>

<pallas_src>
import jax
import jax.numpy as jnp
from jax import lax
from jax.experimental import pallas as pl
from jax.experimental.pallas import tpu as pltpu

# ---------------- model dimensions ----------------
INPUT_SIZE = 32            # data.shape[2] in the original script
LAY1, LAY2, LAY3, LAY4 = 24, 16, 12, 8
BATCH = 256                # batch is the throughput axis

LANE = 128                 # every feature axis is padded to one full lane group
WBLK = 128                 # uniform weight block: 128 rows (fan-in pad) x 128 lanes (fan-out pad)

# Slab layout: one 128x128 block per Linear layer.
_LAYERS = [
    ("enc1", INPUT_SIZE, LAY1),
    ("enc2", LAY1, LAY2),
    ("enc3", LAY2, LAY3),
    ("mean", LAY3, LAY4),
    ("var", LAY3, LAY4),
    ("dec1", LAY4, LAY3),
    ("dec2", LAY3, LAY2),
    ("dec3", LAY2, LAY1),
    ("dec4", LAY1, INPUT_SIZE),
]
N_LAYERS = len(_LAYERS)
LAYER_IDX = {name: i for i, (name, _, _) in enumerate(_LAYERS)}
W_ROWS = N_LAYERS * WBLK   # 1152 rows: 576 KiB f32 / 288 KiB bf16 -> trivially VMEM resident
B_ROWS = 16                # 9 bias rows padded to a sublane multiple


def _device_kind() -> str:
    try:
        return jax.devices()[0].device_kind.lower()
    except Exception:      # keeps the script importable even if device query fails
        return ""


_KIND = _device_kind()
# bf16 MXU operands on v6e / v7x (native); keep f32 on v5e and older (no bf16 VPU).
USE_BF16 = any(tag in _KIND for tag in ("v6", "v7", "7x"))
# v7x has 2 TensorCores per chip -> 2 equal batch tiles; 1 tile (whole batch) elsewhere.
N_TILES = 2 if ("v7" in _KIND or "7x" in _KIND) else 1
MM_DTYPE = jnp.bfloat16 if USE_BF16 else jnp.float32


# ---------------- kernel ----------------
def vae_kernel(x_ref, noise_ref, w_ref, b_ref, out_ref, kl_ref):
    mm_dtype = w_ref.dtype

    def lin(h, name):
        i = LAYER_IDX[name]
        w = w_ref[i * WBLK:(i + 1) * WBLK, :]          # (128, 128) static VMEM slice
        b = b_ref[i:i + 1, :]                          # (1, 128) f32 bias row
        y = jnp.dot(h.astype(mm_dtype), w, preferred_element_type=jnp.float32)
        return y + b

    x = x_ref[...]                                     # (TILE_B, 128), lanes >= INPUT_SIZE are 0

    # ---------------- Encoder ----------------
    h = lin(x, "enc1")                                 # linear1
    h = jnp.maximum(lin(h, "enc2"), 0.0)               # relu(linear2)
    h = jax.nn.sigmoid(lin(h, "enc3"))                 # sigmoid(linear3)
    # (activation padding lanes are harmless: the matching weight-slab rows are zero)

    mu = lin(h, "mean")                                # lanes >= LAY4 are exactly 0
    logvar = lin(h, "var")                             # lanes >= LAY4 are exactly 0
    sigma = jnp.exp(logvar) + 1e-6                     # padding lanes ~= 1 + 1e-6

    # reparameterization: z = mu + sigma * N(0,1); noise is host-supplied, lanes >= LAY4 zero.
    z = mu + sigma * noise_ref[...]                    # padding lanes stay exactly 0

    # per-tile KL contribution (exact log(sigma); EUP slot is otherwise idle -> free).
    lane = lax.broadcasted_iota(jnp.int32, mu.shape, 1)
    kl_elem = sigma * sigma + mu * mu - jnp.log(sigma) - 0.5
    kl_ref[0, 0] = jnp.sum(jnp.where(lane < LAY4, kl_elem, 0.0))

    # ---------------- Decoder ----------------
    d = jnp.maximum(lin(z, "dec1"), 0.0)               # relu(linear1)
    d = jax.nn.sigmoid(lin(d, "dec2"))                 # sigmoid(linear2)
    d = jnp.maximum(lin(d, "dec3"), 0.0)               # relu(linear3)
    # final layer over all 128 lanes -> lane-dense, unmasked store; padding lanes are
    # exactly zero because the dec4 weight columns / bias lanes >= INPUT_SIZE are zero.
    out_ref[...] = lin(d, "dec4")


# ---------------- wrapper ----------------
def _vae_forward(x, noise, wslab, bslab, *, n_tiles):
    """x: (B, ...) flattened to (B, INPUT_SIZE); noise: (B, LAY4). Returns (recon_padded, kl)."""
    B = x.shape[0]
    x2d = x.reshape(B, -1)                             # torch.flatten(x, start_dim=1)
    tile_b = B // n_tiles

    # lane-pad inputs to a full 128-lane group (one-time host-side copies; avoids
    # narrow sub-(8,128) input blocks inside the kernel).
    x_pad = jnp.zeros((B, LANE), jnp.float32).at[:, :INPUT_SIZE].set(x2d)
    noise_pad = jnp.zeros((B, LANE), jnp.float32).at[:, :LAY4].set(noise)

    recon_pad, kl_tiles = pl.pallas_call(
        vae_kernel,
        grid=(n_tiles,),
        in_specs=[
            pl.BlockSpec((tile_b, LANE), lambda i: (i, 0)),                 # x tile
            pl.BlockSpec((tile_b, LANE), lambda i: (i, 0)),                 # noise tile
            pl.BlockSpec((W_ROWS, LANE), lambda i: (0, 0),
                         pipeline_mode=pl.Buffered(1)),                     # resident weight slab
            pl.BlockSpec((B_ROWS, LANE), lambda i: (0, 0),
                         pipeline_mode=pl.Buffered(1)),                     # resident bias slab
        ],
        out_specs=(
            pl.BlockSpec((tile_b, LANE), lambda i: (i, 0)),                 # lane-dense recon
            pl.BlockSpec((1, 1), lambda i: (i, 0),
                         memory_space=pltpu.MemorySpace.SMEM),              # per-tile KL scalar
        ),
        out_shape=(
            jax.ShapeDtypeStruct((B, LANE), jnp.float32),
            jax.ShapeDtypeStruct((n_tiles, 1), jnp.float32),
        ),
        compiler_params=pltpu.CompilerParams(
            dimension_semantics=("parallel",)),                             # shards across TCs on v7x
    )(x_pad, noise_pad, wslab, bslab)

    # Return the padded recon buffer; the caller may slice [:, :INPUT_SIZE] (or consume
    # it padded) so the kernel itself never pays for a masked / narrow store.
    return recon_pad, jnp.sum(kl_tiles)


vae_forward = jax.jit(_vae_forward, static_argnames="n_tiles")


# ---------------- parameter init / packing ----------------
def _init_linear(key, fan_in, fan_out):
    """PyTorch nn.Linear default init: U(-1/sqrt(fan_in), 1/sqrt(fan_in))."""
    kw, kb = jax.random.split(key)
    bound = 1.0 / (fan_in ** 0.5)
    w = jax.random.uniform(kw, (fan_in, fan_out), jnp.float32, -bound, bound)
    b = jax.random.uniform(kb, (fan_out,), jnp.float32, -bound, bound)
    return w, b


def init_params(key):
    keys = jax.random.split(key, 9)
    params = {}
    for k, (name, fi, fo) in zip(keys, _LAYERS):
        params[name] = _init_linear(k, fi, fo)
    return params


def pack_params(params, mm_dtype):
    """Pack all Linear weights into one (W_ROWS, 128) slab (mm_dtype) + f32 bias slab."""
    wslab = jnp.zeros((W_ROWS, LANE), mm_dtype)
    bslab = jnp.zeros((B_ROWS, LANE), jnp.float32)
    for name, fi, fo in _LAYERS:
        w, b = params[name]
        i = LAYER_IDX[name]
        wslab = wslab.at[i * WBLK:i * WBLK + fi, :fo].set(w.astype(mm_dtype))
        bslab = bslab.at[i, :fo].set(b)
    # invariant behind the lane-dense recon store: dec4 padding lanes must be exactly 0.
    i4 = LAYER_IDX["dec4"]
    assert float(jnp.abs(wslab[i4 * WBLK:(i4 + 1) * WBLK, INPUT_SIZE:]).max()) == 0.0
    assert float(jnp.abs(bslab[i4, INPUT_SIZE:]).max()) == 0.0
    return wslab, bslab


# ---------------- pure-JAX reference (PyTorch forward semantics) ----------------
def vae_reference(x2d, noise, params):
    hp = jax.lax.Precision.HIGHEST   # accurate f32 ground truth (default TPU matmul truncates)

    def lin(h, name):
        w, b = params[name]
        return jnp.dot(h, w, precision=hp) + b

    h = lin(x2d, "enc1")
    h = jax.nn.relu(lin(h, "enc2"))
    h = jax.nn.sigmoid(lin(h, "enc3"))
    mu = lin(h, "mean")
    sigma = jnp.exp(lin(h, "var")) + 1e-6
    z = mu + sigma * noise
    kl = jnp.sum(sigma ** 2 + mu ** 2 - jnp.log(sigma) - 0.5)
    d = jax.nn.relu(lin(z, "dec1"))
    d = jax.nn.sigmoid(lin(d, "dec2"))
    d = jax.nn.relu(lin(d, "dec3"))
    recon = lin(d, "dec4")
    return recon, kl


if __name__ == "__main__":
    key = jax.random.PRNGKey(0)
    k_x, k_noise, k_params = jax.random.split(key, 3)

    assert BATCH % (N_TILES * 8) == 0, "batch must split evenly into sublane-aligned tiles"

    # synthetic input shaped like a dataset sample: (batch, 1, input_size); the module
    # flattens from dim 1, which the wrapper reproduces.
    x = jax.random.normal(k_x, (BATCH, 1, INPUT_SIZE), jnp.float32)
    # standard-normal noise standing in for self.N.sample(mu.shape) (host-supplied so the
    # kernel is deterministic and checkable against the reference).
    noise = jax.random.normal(k_noise, (BATCH, LAY4), jnp.float32)

    params = init_params(k_params)
    wslab, bslab = pack_params(params, MM_DTYPE)

    recon_pad, kl = vae_forward(x, noise, wslab, bslab, n_tiles=N_TILES)
    jax.block_until_ready((recon_pad, kl))

    recon = recon_pad[:, :INPUT_SIZE]
    recon_ref, kl_ref_val = vae_reference(x.reshape(BATCH, -1), noise, params)

    # Tolerances: in bf16 mode the MXU operands are bf16 (f32 accumulation); in f32 mode
    # TPU matmuls may still run with reduced-precision (bf16-pass) operands by default.
    if MM_DTYPE == jnp.float32:
        r_tol, kl_rtol = 2e-2, 2e-2
    else:
        r_tol, kl_rtol = 6e-2, 6e-2

    assert recon.shape == (BATCH, INPUT_SIZE)
    assert bool(jnp.all(jnp.abs(recon_pad[:, INPUT_SIZE:]) < 1e-6)), "recon padding lanes not zero"
    assert jnp.allclose(recon, recon_ref, atol=r_tol, rtol=r_tol), "recon mismatch"
    assert jnp.allclose(kl, kl_ref_val, rtol=kl_rtol, atol=1.0), "kl mismatch"

    print("KERNEL_OK")
</pallas_src>

<mosaic_0001>
module attributes {stable_mosaic.version = 11 : i64} {
  func.func @vae_kernel(%arg0: i32, %arg1: memref<256x128xf32, #tpu.memory_space<vmem>>, %arg2: memref<256x128xf32, #tpu.memory_space<vmem>>, %arg3: memref<1152x128xf32, #tpu.memory_space<vmem>>, %arg4: memref<16x128xf32, #tpu.memory_space<vmem>>, %arg5: memref<256x128xf32, #tpu.memory_space<vmem>>, %arg6: memref<1x1xf32, #tpu.memory_space<smem>>) attributes {dimension_semantics = [#tpu.dimension_semantics<parallel>], iteration_bounds = array<i64: 1>, scalar_prefetch = 0 : i64, scratch_operands = 0 : i64, tpu.core_type = #tpu.core_type<tc>, window_params = [{transform_indices = @transform_0, window_bounds = array<i64: 256, 128>}, {transform_indices = @transform_1, window_bounds = array<i64: 256, 128>}, {pipeline_mode = #tpu.pipeline_mode<synchronous>, transform_indices = @transform_2, window_bounds = array<i64: 1152, 128>}, {pipeline_mode = #tpu.pipeline_mode<synchronous>, transform_indices = @transform_3, window_bounds = array<i64: 16, 128>}, {transform_indices = @transform_4, window_bounds = array<i64: 256, 128>}, {transform_indices = @transform_5, window_bounds = array<i64: 1, 1>}]} {
    %c0 = arith.constant 0 : index
    %c0_0 = arith.constant 0 : index
    %0 = vector.load %arg1[%c0, %c0_0] : memref<256x128xf32, #tpu.memory_space<vmem>>, vector<256x128xf32>
    %c0_1 = arith.constant 0 : index
    %c0_2 = arith.constant 0 : index
    %1 = vector.load %arg3[%c0_1, %c0_2] : memref<1152x128xf32, #tpu.memory_space<vmem>>, vector<128x128xf32>
    %c0_3 = arith.constant 0 : index
    %c0_4 = arith.constant 0 : index
    %2 = vector.load %arg4[%c0_3, %c0_4] : memref<16x128xf32, #tpu.memory_space<vmem>>, vector<1x128xf32>
    %cst = arith.constant dense<0.000000e+00> : vector<256x128xf32>
    %3 = tpu.matmul %0, %1, %cst {dimension_numbers = #tpu.dot_dimension_numbers<[1], [0], [0], [1], [0, 0, 1, 1], [], []>} : vector<256x128xf32>, vector<128x128xf32>, vector<256x128xf32> -> vector<256x128xf32>
    %4 = vector.broadcast %2 : vector<1x128xf32> to vector<256x128xf32>
    %5 = arith.addf %3, %4 : vector<256x128xf32>
    %c128 = arith.constant 128 : index
    %c0_5 = arith.constant 0 : index
    %6 = vector.load %arg3[%c128, %c0_5] : memref<1152x128xf32, #tpu.memory_space<vmem>>, vector<128x128xf32>
    %c1 = arith.constant 1 : index
    %c0_6 = arith.constant 0 : index
    %7 = vector.load %arg4[%c1, %c0_6] : memref<16x128xf32, #tpu.memory_space<vmem>>, vector<1x128xf32>
    %cst_7 = arith.constant dense<0.000000e+00> : vector<256x128xf32>
    %8 = tpu.matmul %5, %6, %cst_7 {dimension_numbers = #tpu.dot_dimension_numbers<[1], [0], [0], [1], [0, 0, 1, 1], [], []>} : vector<256x128xf32>, vector<128x128xf32>, vector<256x128xf32> -> vector<256x128xf32>
    %9 = vector.broadcast %7 : vector<1x128xf32> to vector<256x128xf32>
    %10 = arith.addf %8, %9 : vector<256x128xf32>
    %cst_8 = arith.constant 0.000000e+00 : f32
    %11 = vector.broadcast %cst_8 : f32 to vector<256x128xf32>
    %12 = arith.maximumf %10, %11 : vector<256x128xf32>
    %c256 = arith.constant 256 : index
    %c0_9 = arith.constant 0 : index
    %13 = vector.load %arg3[%c256, %c0_9] : memref<1152x128xf32, #tpu.memory_space<vmem>>, vector<128x128xf32>
    %c2 = arith.constant 2 : index
    %c0_10 = arith.constant 0 : index
    %14 = vector.load %arg4[%c2, %c0_10] : memref<16x128xf32, #tpu.memory_space<vmem>>, vector<1x128xf32>
    %cst_11 = arith.constant dense<0.000000e+00> : vector<256x128xf32>
    %15 = tpu.matmul %12, %13, %cst_11 {dimension_numbers = #tpu.dot_dimension_numbers<[1], [0], [0], [1], [0, 0, 1, 1], [], []>} : vector<256x128xf32>, vector<128x128xf32>, vector<256x128xf32> -> vector<256x128xf32>
    %16 = vector.broadcast %14 : vector<1x128xf32> to vector<256x128xf32>
    %17 = arith.addf %15, %16 : vector<256x128xf32>
    %18 = arith.negf %17 : vector<256x128xf32>
    %19 = math.exp %18 : vector<256x128xf32>
    %cst_12 = arith.constant 1.000000e+00 : f32
    %20 = vector.broadcast %cst_12 : f32 to vector<256x128xf32>
    %21 = arith.addf %20, %19 : vector<256x128xf32>
    %22 = arith.divf %20, %21 : vector<256x128xf32>
    %c384 = arith.constant 384 : index
    %c0_13 = arith.constant 0 : index
    %23 = vector.load %arg3[%c384, %c0_13] : memref<1152x128xf32, #tpu.memory_space<vmem>>, vector<128x128xf32>
    %c3 = arith.constant 3 : index
    %c0_14 = arith.constant 0 : index
    %24 = vector.load %arg4[%c3, %c0_14] : memref<16x128xf32, #tpu.memory_space<vmem>>, vector<1x128xf32>
    %cst_15 = arith.constant dense<0.000000e+00> : vector<256x128xf32>
    %25 = tpu.matmul %22, %23, %cst_15 {dimension_numbers = #tpu.dot_dimension_numbers<[1], [0], [0], [1], [0, 0, 1, 1], [], []>} : vector<256x128xf32>, vector<128x128xf32>, vector<256x128xf32> -> vector<256x128xf32>
    %26 = vector.broadcast %24 : vector<1x128xf32> to vector<256x128xf32>
    %27 = arith.addf %25, %26 : vector<256x128xf32>
    %c512 = arith.constant 512 : index
    %c0_16 = arith.constant 0 : index
    %28 = vector.load %arg3[%c512, %c0_16] : memref<1152x128xf32, #tpu.memory_space<vmem>>, vector<128x128xf32>
    %c4 = arith.constant 4 : index
    %c0_17 = arith.constant 0 : index
    %29 = vector.load %arg4[%c4, %c0_17] : memref<16x128xf32, #tpu.memory_space<vmem>>, vector<1x128xf32>
    %cst_18 = arith.constant dense<0.000000e+00> : vector<256x128xf32>
    %30 = tpu.matmul %22, %28, %cst_18 {dimension_numbers = #tpu.dot_dimension_numbers<[1], [0], [0], [1], [0, 0, 1, 1], [], []>} : vector<256x128xf32>, vector<128x128xf32>, vector<256x128xf32> -> vector<256x128xf32>
    %31 = vector.broadcast %29 : vector<1x128xf32> to vector<256x128xf32>
    %32 = arith.addf %30, %31 : vector<256x128xf32>
    %33 = math.exp %32 : vector<256x128xf32>
    %cst_19 = arith.constant 9.99999997E-7 : f32
    %34 = vector.broadcast %cst_19 : f32 to vector<256x128xf32>
    %35 = arith.addf %33, %34 : vector<256x128xf32>
    %c0_20 = arith.constant 0 : index
    %c0_21 = arith.constant 0 : index
    %36 = vector.load %arg2[%c0_20, %c0_21] : memref<256x128xf32, #tpu.memory_space<vmem>>, vector<256x128xf32>
    %37 = arith.mulf %35, %36 : vector<256x128xf32>
    %38 = arith.addf %27, %37 : vector<256x128xf32>
    %39 = tpu.iota {dimensions = array<i32: 1>} : vector<256x128xi32>
    %40 = arith.mulf %35, %35 : vector<256x128xf32>
    %41 = arith.mulf %27, %27 : vector<256x128xf32>
    %42 = arith.addf %40, %41 : vector<256x128xf32>
    %43 = math.log %35 : vector<256x128xf32>
    %44 = arith.subf %42, %43 : vector<256x128xf32>
    %cst_22 = arith.constant 5.000000e-01 : f32
    %45 = vector.broadcast %cst_22 : f32 to vector<256x128xf32>
    %46 = arith.subf %44, %45 : vector<256x128xf32>
    %c8_i32 = arith.constant 8 : i32
    %47 = vector.broadcast %c8_i32 : i32 to vector<256x128xi32>
    %48 = arith.cmpi slt, %39, %47 : vector<256x128xi32>
    %cst_23 = arith.constant 0.000000e+00 : f32
    %49 = vector.broadcast %cst_23 : f32 to vector<256x128xf32>
    %50 = arith.select %48, %46, %49 : vector<256x128xi1>, vector<256x128xf32>
    %51 = vector.shape_cast %50 : vector<256x128xf32> to vector<1x256x128xf32>
    %cst_24 = arith.constant dense<0.000000e+00> : vector<1xf32>
    %52 = vector.multi_reduction <add>, %51, %cst_24 [1, 2] : vector<1x256x128xf32> to vector<1xf32>
    %53 = vector.shape_cast %52 : vector<1xf32> to vector<1x1x1xf32>
    %54 = vector.extract %53[0, 0, 0] : f32 from vector<1x1x1xf32>
    %c0_25 = arith.constant 0 : index
    %c0_26 = arith.constant 0 : index
    %55 = memref.load %arg6[%c0_25, %c0_26] : memref<1x1xf32, #tpu.memory_space<smem>>
    memref.store %54, %arg6[%c0_25, %c0_26] : memref<1x1xf32, #tpu.memory_space<smem>>
    %c640 = arith.constant 640 : index
    %c0_27 = arith.constant 0 : index
    %56 = vector.load %arg3[%c640, %c0_27] : memref<1152x128xf32, #tpu.memory_space<vmem>>, vector<128x128xf32>
    %c5 = arith.constant 5 : index
    %c0_28 = arith.constant 0 : index
    %57 = vector.load %arg4[%c5, %c0_28] : memref<16x128xf32, #tpu.memory_space<vmem>>, vector<1x128xf32>
    %cst_29 = arith.constant dense<0.000000e+00> : vector<256x128xf32>
    %58 = tpu.matmul %38, %56, %cst_29 {dimension_numbers = #tpu.dot_dimension_numbers<[1], [0], [0], [1], [0, 0, 1, 1], [], []>} : vector<256x128xf32>, vector<128x128xf32>, vector<256x128xf32> -> vector<256x128xf32>
    %59 = vector.broadcast %57 : vector<1x128xf32> to vector<256x128xf32>
    %60 = arith.addf %58, %59 : vector<256x128xf32>
    %cst_30 = arith.constant 0.000000e+00 : f32
    %61 = vector.broadcast %cst_30 : f32 to vector<256x128xf32>
    %62 = arith.maximumf %60, %61 : vector<256x128xf32>
    %c768 = arith.constant 768 : index
    %c0_31 = arith.constant 0 : index
    %63 = vector.load %arg3[%c768, %c0_31] : memref<1152x128xf32, #tpu.memory_space<vmem>>, vector<128x128xf32>
    %c6 = arith.constant 6 : index
    %c0_32 = arith.constant 0 : index
    %64 = vector.load %arg4[%c6, %c0_32] : memref<16x128xf32, #tpu.memory_space<vmem>>, vector<1x128xf32>
    %cst_33 = arith.constant dense<0.000000e+00> : vector<256x128xf32>
    %65 = tpu.matmul %62, %63, %cst_33 {dimension_numbers = #tpu.dot_dimension_numbers<[1], [0], [0], [1], [0, 0, 1, 1], [], []>} : vector<256x128xf32>, vector<128x128xf32>, vector<256x128xf32> -> vector<256x128xf32>
    %66 = vector.broadcast %64 : vector<1x128xf32> to vector<256x128xf32>
    %67 = arith.addf %65, %66 : vector<256x128xf32>
    %68 = arith.negf %67 : vector<256x128xf32>
    %69 = math.exp %68 : vector<256x128xf32>
    %cst_34 = arith.constant 1.000000e+00 : f32
    %70 = vector.broadcast %cst_34 : f32 to vector<256x128xf32>
    %71 = arith.addf %70, %69 : vector<256x128xf32>
    %72 = arith.divf %70, %71 : vector<256x128xf32>
    %c896 = arith.constant 896 : index
    %c0_35 = arith.constant 0 : index
    %73 = vector.load %arg3[%c896, %c0_35] : memref<1152x128xf32, #tpu.memory_space<vmem>>, vector<128x128xf32>
    %c7 = arith.constant 7 : index
    %c0_36 = arith.constant 0 : index
    %74 = vector.load %arg4[%c7, %c0_36] : memref<16x128xf32, #tpu.memory_space<vmem>>, vector<1x128xf32>
    %cst_37 = arith.constant dense<0.000000e+00> : vector<256x128xf32>
    %75 = tpu.matmul %72, %73, %cst_37 {dimension_numbers = #tpu.dot_dimension_numbers<[1], [0], [0], [1], [0, 0, 1, 1], [], []>} : vector<256x128xf32>, vector<128x128xf32>, vector<256x128xf32> -> vector<256x128xf32>
    %76 = vector.broadcast %74 : vector<1x128xf32> to vector<256x128xf32>
    %77 = arith.addf %75, %76 : vector<256x128xf32>
    %cst_38 = arith.constant 0.000000e+00 : f32
    %78 = vector.broadcast %cst_38 : f32 to vector<256x128xf32>
    %79 = arith.maximumf %77, %78 : vector<256x128xf32>
    %c1024 = arith.constant 1024 : index
    %c0_39 = arith.constant 0 : index
    %80 = vector.load %arg3[%c1024, %c0_39] : memref<1152x128xf32, #tpu.memory_space<vmem>>, vector<128x128xf32>
    %c8 = arith.constant 8 : index
    %c0_40 = arith.constant 0 : index
    %81 = vector.load %arg4[%c8, %c0_40] : memref<16x128xf32, #tpu.memory_space<vmem>>, vector<1x128xf32>
    %cst_41 = arith.constant dense<0.000000e+00> : vector<256x128xf32>
    %82 = tpu.matmul %79, %80, %cst_41 {dimension_numbers = #tpu.dot_dimension_numbers<[1], [0], [0], [1], [0, 0, 1, 1], [], []>} : vector<256x128xf32>, vector<128x128xf32>, vector<256x128xf32> -> vector<256x128xf32>
    %83 = vector.broadcast %81 : vector<1x128xf32> to vector<256x128xf32>
    %84 = arith.addf %82, %83 : vector<256x128xf32>
    %c0_42 = arith.constant 0 : index
    %c0_43 = arith.constant 0 : index
    %85 = vector.load %arg5[%c0_42, %c0_43] : memref<256x128xf32, #tpu.memory_space<vmem>>, vector<256x128xf32>
    tpu.vector_store %arg5[%c0_42, %c0_43], %84 {strides = array<i32>} : memref<256x128xf32, #tpu.memory_space<vmem>>, vector<256x128xf32>,
    return
  }
  func.func @transform_0(%arg0: i32) -> (i32, i32) {
    %c0_i32 = arith.constant 0 : i32
    %c0_i32_0 = arith.constant 0 : i32
    return %arg0, %c0_i32 : i32, i32
  }
  func.func @transform_1(%arg0: i32) -> (i32, i32) {
    %c0_i32 = arith.constant 0 : i32
    %c0_i32_0 = arith.constant 0 : i32
    return %arg0, %c0_i32 : i32, i32
  }
  func.func @transform_2(%arg0: i32) -> (i32, i32) {
    %c0_i32 = arith.constant 0 : i32
    %c0_i32_0 = arith.constant 0 : i32
    %c0_i32_1 = arith.constant 0 : i32
    return %c0_i32, %c0_i32_0 : i32, i32
  }
  func.func @transform_3(%arg0: i32) -> (i32, i32) {
    %c0_i32 = arith.constant 0 : i32
    %c0_i32_0 = arith.constant 0 : i32
    %c0_i32_1 = arith.constant 0 : i32
    return %c0_i32, %c0_i32_0 : i32, i32
  }
  func.func @transform_4(%arg0: i32) -> (i32, i32) {
    %c0_i32 = arith.constant 0 : i32
    %c0_i32_0 = arith.constant 0 : i32
    return %arg0, %c0_i32 : i32, i32
  }
  func.func @transform_5(%arg0: i32) -> (i32, i32) {
    %c0_i32 = arith.constant 0 : i32
    %c0_i32_0 = arith.constant 0 : i32
    return %arg0, %c0_i32 : i32, i32
  }
}

</mosaic_0001>

<llo_original>
// kernel: _vae_forward.1
$region0: #{_vae_forward.1}
  #allocation0 [shape = 'u32[]', space=smem, size = 0x4, offset = 0x4, fixed_abs, tag = 'smem constant byte address 0x4 - core index']
  #allocation1 [shape = 'u32[144,128]{1,0:T(1,128)}', space=vmem, size = 0x12000, scoped, tag = 'internal scratch']
  %s0 = inlined_call_operand.vmem [shape: f32[256,128], index: 0, kind: input, shape index: {}]
  %s1 = inlined_call_operand.vmem [shape: f32[256,128], index: 1, kind: input, shape index: {}]
  %s2 = inlined_call_operand.vmem [shape: f32[1152,128], index: 2, kind: input, shape index: {}]
  %s3 = inlined_call_operand.vmem [shape: f32[16,128], index: 3, kind: input, shape index: {}]
  %s4 = inlined_call_operand.hbm [shape: f32[256,128], index: 4, kind: output, shape index: {0}]
  %s5 = inlined_call_operand.hbm [shape: f32[1,1], index: 5, kind: output, shape index: {1}]
  %6 = xla_tuple %s4, %s5
  %s7 = sld [smem:[#allocation0]]
  $region34: #{_vae_forward.1} parent=0
    _
  %s9 = ssub.s32 1, %s7
  %s10 = scalar_select 0, %s9, %s7
  $region1: #{_vae_forward.1} parent=0
    #allocation2 [shape = 'u8[131072]{0}', space=vmem, size = 0x20000, scoped, tag = 'output window, operand 0, single buffered']
    #allocation3 [shape = 's32[1]{0}', space=sflag, size = 0x4, scoped, tag = 'scoped memory for _vae_forward.1']
    #allocation4 [shape = 's32[1]{0}', space=sflag, size = 0x4, scoped, tag = 'scoped memory for _vae_forward.1']
    #allocation5 [shape = 'u8[512]{0}', space=smem, size = 0x200, scoped, tag = 'output window, operand 1, single buffered']
    %11 = vsyncpa [#allocation3], 0
    %12 = vsyncpa [#allocation4], 0
    // Predicated region
    $region2: #{_vae_forward.1} parent=1 // pred_check
      _
    $region3: #{_vae_forward.1} parent=1 // pred_check_branch
      %14 = sbr.rel (0) target = $region5
    $region4: #{_vae_forward.1} parent=1 // pred_region
      _
    $region5: #{_vae_forward.1} parent=1 // pred_fallthru
      _
    // Predicated region
    $region6: #{_vae_forward.1} parent=1 // pred_check
      _
    $region7: #{_vae_forward.1} parent=1 // pred_check_branch
      %16 = sbr.rel (0) target = $region9
    $region8: #{_vae_forward.1} parent=1 // pred_region
      _
    $region9: #{_vae_forward.1} parent=1 // pred_fallthru
      _
    // Predicated region
    $region10: #{_vae_forward.1} parent=1 // pred_check
      _
    $region11: #{_vae_forward.1} parent=1 // pred_check_branch
      %18 = sbr.rel (0) target = $region13
    $region12: #{_vae_forward.1} parent=1 // pred_region
      _
    $region13: #{_vae_forward.1} parent=1 // pred_fallthru
      _
    // Predicated region
    $region14: #{_vae_forward.1} parent=1 // pred_check
      _
    $region15: #{_vae_forward.1} parent=1 // pred_check_branch
      %20 = sbr.rel (0) target = $region17
    $region16: #{_vae_forward.1} parent=1 // pred_region
      _
    $region17: #{_vae_forward.1} parent=1 // pred_fallthru
      _
    %v21 = vld [vmem:[%s0] sm:$0xff]
    %v22 = vld [vmem:[%s0 + $0x8] sm:$0xff]
    %v23 = vld [vmem:[%s0 + $0x10] sm:$0xff]
    %v24 = vld [vmem:[%s0 + $0x18] sm:$0xff]
    %v25 = vld [vmem:[%s0 + $0x20] sm:$0xff]
    %v26 = vld [vmem:[%s0 + $0x28] sm:$0xff]
    %v27 = vld [vmem:[%s0 + $0x30] sm:$0xff]
    %v28 = vld [vmem:[%s0 + $0x38] sm:$0xff]
    %v29 = vld [vmem:[%s0 + $0x40] sm:$0xff]
    %v30 = vld [vmem:[%s0 + $0x48] sm:$0xff]
    %v31 = vld [vmem:[%s0 + $0x50] sm:$0xff]
    %v32 = vld [vmem:[%s0 + $0x58] sm:$0xff]
    %v33 = vld [vmem:[%s0 + $0x60] sm:$0xff]
    %v34 = vld [vmem:[%s0 + $0x68] sm:$0xff]
    %v35 = vld [vmem:[%s0 + $0x70] sm:$0xff]
    %v36 = vld [vmem:[%s0 + $0x78] sm:$0xff]
    %v37 = vld [vmem:[%s0 + $0x80] sm:$0xff]
    %v38 = vld [vmem:[%s0 + $0x88] sm:$0xff]
    %v39 = vld [vmem:[%s0 + $0x90] sm:$0xff]
    %v40 = vld [vmem:[%s0 + $0x98] sm:$0xff]
    %v41 = vld [vmem:[%s0 + $0xa0] sm:$0xff]
    %v42 = vld [vmem:[%s0 + $0xa8] sm:$0xff]
    %v43 = vld [vmem:[%s0 + $0xb0] sm:$0xff]
    %v44 = vld [vmem:[%s0 + $0xb8] sm:$0xff]
    %v45 = vld [vmem:[%s0 + $0xc0] sm:$0xff]
    %v46 = vld [vmem:[%s0 + $0xc8] sm:$0xff]
    %v47 = vld [vmem:[%s0 + $0xd0] sm:$0xff]
    %v48 = vld [vmem:[%s0 + $0xd8] sm:$0xff]
    %v49 = vld [vmem:[%s0 + $0xe0] sm:$0xff]
    %v50 = vld [vmem:[%s0 + $0xe8] sm:$0xff]
    %v51 = vld [vmem:[%s0 + $0xf0] sm:$0xff]
    %v52 = vld [vmem:[%s0 + $0xf8] sm:$0xff]
    %v53 = vld [vmem:[%s2] sm:$0xff]
    %v54 = vld [vmem:[%s2 + $0x8] sm:$0xff]
    %v55 = vld [vmem:[%s2 + $0x10] sm:$0xff]
    %v56 = vld [vmem:[%s2 + $0x18] sm:$0xff]
    %v57 = vld [vmem:[%s2 + $0x20] sm:$0xff]
    %v58 = vld [vmem:[%s2 + $0x28] sm:$0xff]
    %v59 = vld [vmem:[%s2 + $0x30] sm:$0xff]
    %v60 = vld [vmem:[%s2 + $0x38] sm:$0xff]
    %v61 = vld [vmem:[%s2 + $0x40] sm:$0xff]
    %v62 = vld [vmem:[%s2 + $0x48] sm:$0xff]
    %v63 = vld [vmem:[%s2 + $0x50] sm:$0xff]
    %v64 = vld [vmem:[%s2 + $0x58] sm:$0xff]
    %v65 = vld [vmem:[%s2 + $0x60] sm:$0xff]
    %v66 = vld [vmem:[%s2 + $0x68] sm:$0xff]
    %v67 = vld [vmem:[%s2 + $0x70] sm:$0xff]
    %v68 = vld [vmem:[%s2 + $0x78] sm:$0xff]
    %v69 = vld [vmem:[%s3] sm:$0x1]
    %v70 = vlaneseq
    %v71 = vshrl.u32 %v70, 7
    %v72 = vsub.s32 0, %v71
    %v73 = vrot.slane %v69, %v72
    %74 = vmatprep.subr.mxu0 0.0
    %75 = vmatpush1.msra.mxu0 %v68
    %76 = vmatprep.subr.mxu0 0.0
    %77 = vmatpush1.msra.mxu0 %v67
    %78 = vmatprep.subr.mxu0 0.0
    %79 = vmatpush1.msra.mxu0 %v66
    %80 = vmatprep.subr.mxu0 0.0
    %81 = vmatpush1.msra.mxu0 %v65
    %82 = vmatprep.subr.mxu0 0.0
    %83 = vmatpush1.msra.mxu0 %v64
    %84 = vmatprep.subr.mxu0 0.0
    %85 = vmatpush1.msra.mxu0 %v63
    %86 = vmatprep.subr.mxu0 0.0
    %87 = vmatpush1.msra.mxu0 %v62
    %88 = vmatprep.subr.mxu0 0.0
    %89 = vmatpush1.msra.mxu0 %v61
    %90 = vmatprep.subr.mxu0 0.0
    %91 = vmatpush1.msra.mxu0 %v60
    %92 = vmatprep.subr.mxu0 0.0
    %93 = vmatpush1.msra.mxu0 %v59
    %94 = vmatprep.subr.mxu0 0.0
    %95 = vmatpush1.msra.mxu0 %v58
    %96 = vmatprep.subr.mxu0 0.0
    %97 = vmatpush1.msra.mxu0 %v57
    %98 = vmatprep.subr.mxu0 0.0
    %99 = vmatpush1.msra.mxu0 %v56
    %100 = vmatprep.subr.mxu0 0.0
    %101 = vmatpush1.msra.mxu0 %v55
    %102 = vmatprep.subr.mxu0 0.0
    %103 = vmatpush1.msra.mxu0 %v54
    %104 = vmatprep.subr.mxu0 0.0
    %105 = vmatpush1.msra.mxu0 %v53
    %106 = vmatprep.subr.mxu0 0.0
    %107 = vmatpush2.msra.mxu0 0.0
    %108 = vmatprep.subr.mxu0 0.0
    %109 = vmatpush2.msra.mxu0 0.0
    %110 = vmatprep.subr.mxu0 0.0
    %111 = vmatpush2.msra.mxu0 0.0
    %112 = vmatprep.subr.mxu0 0.0
    %113 = vmatpush2.msra.mxu0 0.0
    %114 = vmatprep.subr.mxu0 0.0
    %115 = vmatpush2.msra.mxu0 0.0
    %116 = vmatprep.subr.mxu0 0.0
    %117 = vmatpush2.msra.mxu0 0.0
    %118 = vmatprep.subr.mxu0 0.0
    %119 = vmatpush2.msra.mxu0 0.0
    %120 = vmatprep.subr.mxu0 0.0
    %121 = vmatpush2.msra.mxu0 0.0
    %122 = vmatprep.subr.mxu0 0.0
    %123 = vmatpush2.msra.mxu0 0.0
    %124 = vmatprep.subr.mxu0 0.0
    %125 = vmatpush2.msra.mxu0 0.0
    %126 = vmatprep.subr.mxu0 0.0
    %127 = vmatpush2.msra.mxu0 0.0
    %128 = vmatprep.subr.mxu0 0.0
    %129 = vmatpush2.msra.mxu0 0.0
    %130 = vmatprep.subr.mxu0 0.0
    %131 = vmatpush2.msra.mxu0 0.0
    %132 = vmatprep.subr.mxu0 0.0
    %133 = vmatpush2.msra.mxu0 0.0
    %134 = vmatprep.subr.mxu0 0.0
    %135 = vmatpush2.msra.mxu0 0.0
    %136 = vmatprep.subr.mxu0 0.0
    %137 = vmatpush2.msra.mxu0 0.0
    %138 = vmatprep.mubr.f32.mxu0 0.0
    %139 = vmatmul.mubr.f32.gmra.mxu0 %v21
    %v140 = vpop.f32.mrf.mxu0
    %v141 = vadd.f32 %v73, %v140
    %v142 = vpop.f32.mrf.mxu0
    %143 = vmatprep.mubr.f32.mxu0 0.0
    %144 = vmatmul.mubr.f32.gmra.mxu0 %v22
    %v145 = vpop.f32.mrf.mxu0
    %v146 = vadd.f32 %v73, %v145
    %v147 = vpop.f32.mrf.mxu0
    %148 = vmatprep.mubr.f32.mxu0 0.0
    %149 = vmatmul.mubr.f32.gmra.mxu0 %v23
    %v150 = vpop.f32.mrf.mxu0
    %v151 = vadd.f32 %v73, %v150
    %v152 = vpop.f32.mrf.mxu0
    %153 = vmatprep.mubr.f32.mxu0 0.0
    %154 = vmatmul.mubr.f32.gmra.mxu0 %v24
    %v155 = vpop.f32.mrf.mxu0
    %v156 = vadd.f32 %v73, %v155
    %v157 = vpop.f32.mrf.mxu0
    %158 = vmatprep.mubr.f32.mxu0 0.0
    %159 = vmatmul.mubr.f32.gmra.mxu0 %v25
    %v160 = vpop.f32.mrf.mxu0
    %v161 = vadd.f32 %v73, %v160
    %v162 = vpop.f32.mrf.mxu0
    %163 = vmatprep.mubr.f32.mxu0 0.0
    %164 = vmatmul.mubr.f32.gmra.mxu0 %v26
    %v165 = vpop.f32.mrf.mxu0
    %v166 = vadd.f32 %v73, %v165
    %v167 = vpop.f32.mrf.mxu0
    %168 = vmatprep.mubr.f32.mxu0 0.0
    %169 = vmatmul.mubr.f32.gmra.mxu0 %v27
    %v170 = vpop.f32.mrf.mxu0
    %v171 = vadd.f32 %v73, %v170
    %v172 = vpop.f32.mrf.mxu0
    %173 = vmatprep.mubr.f32.mxu0 0.0
    %174 = vmatmul.mubr.f32.gmra.mxu0 %v28
    %v175 = vpop.f32.mrf.mxu0
    %v176 = vadd.f32 %v73, %v175
    %v177 = vpop.f32.mrf.mxu0
    %178 = vmatprep.mubr.f32.mxu0 0.0
    %179 = vmatmul.mubr.f32.gmra.mxu0 %v29
    %v180 = vpop.f32.mrf.mxu0
    %v181 = vadd.f32 %v73, %v180
    %v182 = vpop.f32.mrf.mxu0
    %183 = vmatprep.mubr.f32.mxu0 0.0
    %184 = vmatmul.mubr.f32.gmra.mxu0 %v30
    %v185 = vpop.f32.mrf.mxu0
    %v186 = vadd.f32 %v73, %v185
    %v187 = vpop.f32.mrf.mxu0
    %188 = vmatprep.mubr.f32.mxu0 0.0
    %189 = vmatmul.mubr.f32.gmra.mxu0 %v31
    %v190 = vpop.f32.mrf.mxu0
    %v191 = vadd.f32 %v73, %v190
    %v192 = vpop.f32.mrf.mxu0
    %193 = vmatprep.mubr.f32.mxu0 0.0
    %194 = vmatmul.mubr.f32.gmra.mxu0 %v32
    %v195 = vpop.f32.mrf.mxu0
    %v196 = vadd.f32 %v73, %v195
    %v197 = vpop.f32.mrf.mxu0
    %198 = vmatprep.mubr.f32.mxu0 0.0
    %199 = vmatmul.mubr.f32.gmra.mxu0 %v33
    %v200 = vpop.f32.mrf.mxu0
    %v201 = vadd.f32 %v73, %v200
    %v202 = vpop.f32.mrf.mxu0
    %203 = vmatprep.mubr.f32.mxu0 0.0
    %204 = vmatmul.mubr.f32.gmra.mxu0 %v34
    %v205 = vpop.f32.mrf.mxu0
    %v206 = vadd.f32 %v73, %v205
    %v207 = vpop.f32.mrf.mxu0
    %208 = vmatprep.mubr.f32.mxu0 0.0
    %209 = vmatmul.mubr.f32.gmra.mxu0 %v35
    %v210 = vpop.f32.mrf.mxu0
    %v211 = vadd.f32 %v73, %v210
    %v212 = vpop.f32.mrf.mxu0
    %213 = vmatprep.mubr.f32.mxu0 0.0
    %214 = vmatmul.mubr.f32.gmra.mxu0 %v36
    %v215 = vpop.f32.mrf.mxu0
    %v216 = vadd.f32 %v73, %v215
    %v217 = vpop.f32.mrf.mxu0
    %218 = vmatprep.mubr.f32.mxu0 0.0
    %219 = vmatmul.mubr.f32.gmra.mxu0 %v37
    %v220 = vpop.f32.mrf.mxu0
    %v221 = vadd.f32 %v73, %v220
    %v222 = vpop.f32.mrf.mxu0
    %223 = vmatprep.mubr.f32.mxu0 0.0
    %224 = vmatmul.mubr.f32.gmra.mxu0 %v38
    %v225 = vpop.f32.mrf.mxu0
    %v226 = vadd.f32 %v73, %v225
    %v227 = vpop.f32.mrf.mxu0
    %228 = vmatprep.mubr.f32.mxu0 0.0
    %229 = vmatmul.mubr.f32.gmra.mxu0 %v39
    %v230 = vpop.f32.mrf.mxu0
    %v231 = vadd.f32 %v73, %v230
    %v232 = vpop.f32.mrf.mxu0
    %233 = vmatprep.mubr.f32.mxu0 0.0
    %234 = vmatmul.mubr.f32.gmra.mxu0 %v40
    %v235 = vpop.f32.mrf.mxu0
    %v236 = vadd.f32 %v73, %v235
    %v237 = vpop.f32.mrf.mxu0
    %238 = vmatprep.mubr.f32.mxu0 0.0
    %239 = vmatmul.mubr.f32.gmra.mxu0 %v41
    %v240 = vpop.f32.mrf.mxu0
    %v241 = vadd.f32 %v73, %v240
    %v242 = vpop.f32.mrf.mxu0
    %243 = vmatprep.mubr.f32.mxu0 0.0
    %244 = vmatmul.mubr.f32.gmra.mxu0 %v42
    %v245 = vpop.f32.mrf.mxu0
    %v246 = vadd.f32 %v73, %v245
    %v247 = vpop.f32.mrf.mxu0
    %248 = vmatprep.mubr.f32.mxu0 0.0
    %249 = vmatmul.mubr.f32.gmra.mxu0 %v43
    %v250 = vpop.f32.mrf.mxu0
    %v251 = vadd.f32 %v73, %v250
    %v252 = vpop.f32.mrf.mxu0
    %253 = vmatprep.mubr.f32.mxu0 0.0
    %254 = vmatmul.mubr.f32.gmra.mxu0 %v44
    %v255 = vpop.f32.mrf.mxu0
    %v256 = vadd.f32 %v73, %v255
    %v257 = vpop.f32.mrf.mxu0
    %258 = vmatprep.mubr.f32.mxu0 0.0
    %259 = vmatmul.mubr.f32.gmra.mxu0 %v45
    %v260 = vpop.f32.mrf.mxu0
    %v261 = vadd.f32 %v73, %v260
    %v262 = vpop.f32.mrf.mxu0
    %263 = vmatprep.mubr.f32.mxu0 0.0
    %264 = vmatmul.mubr.f32.gmra.mxu0 %v46
    %v265 = vpop.f32.mrf.mxu0
    %v266 = vadd.f32 %v73, %v265
    %v267 = vpop.f32.mrf.mxu0
    %268 = vmatprep.mubr.f32.mxu0 0.0
    %269 = vmatmul.mubr.f32.gmra.mxu0 %v47
    %v270 = vpop.f32.mrf.mxu0
    %v271 = vadd.f32 %v73, %v270
    %v272 = vpop.f32.mrf.mxu0
    %273 = vmatprep.mubr.f32.mxu0 0.0
    %274 = vmatmul.mubr.f32.gmra.mxu0 %v48
    %v275 = vpop.f32.mrf.mxu0
    %v276 = vadd.f32 %v73, %v275
    %v277 = vpop.f32.mrf.mxu0
    %278 = vmatprep.mubr.f32.mxu0 0.0
    %279 = vmatmul.mubr.f32.gmra.mxu0 %v49
    %v280 = vpop.f32.mrf.mxu0
    %v281 = vadd.f32 %v73, %v280
    %v282 = vpop.f32.mrf.mxu0
    %283 = vmatprep.mubr.f32.mxu0 0.0
    %284 = vmatmul.mubr.f32.gmra.mxu0 %v50
    %v285 = vpop.f32.mrf.mxu0
    %v286 = vadd.f32 %v73, %v285
    %v287 = vpop.f32.mrf.mxu0
    %288 = vmatprep.mubr.f32.mxu0 0.0
    %289 = vmatmul.mubr.f32.gmra.mxu0 %v51
    %v290 = vpop.f32.mrf.mxu0
    %v291 = vadd.f32 %v73, %v290
    %v292 = vpop.f32.mrf.mxu0
    %293 = vmatprep.mubr.f32.mxu0 0.0
    %294 = vmatmul.mubr.f32.gmra.mxu0 %v52
    %v295 = vpop.f32.mrf.mxu0
    %v296 = vadd.f32 %v73, %v295
    %v297 = vpop.f32.mrf.mxu0
    %298 = vdwg.mxu0
    %v299 = vld [vmem:[%s2 + $0x80] sm:$0xff]
    %v300 = vld [vmem:[%s2 + $0x88] sm:$0xff]
    %v301 = vld [vmem:[%s2 + $0x90] sm:$0xff]
    %v302 = vld [vmem:[%s2 + $0x98] sm:$0xff]
    %v303 = vld [vmem:[%s2 + $0xa0] sm:$0xff]
    %v304 = vld [vmem:[%s2 + $0xa8] sm:$0xff]
    %v305 = vld [vmem:[%s2 + $0xb0] sm:$0xff]
    %v306 = vld [vmem:[%s2 + $0xb8] sm:$0xff]
    %v307 = vld [vmem:[%s2 + $0xc0] sm:$0xff]
    %v308 = vld [vmem:[%s2 + $0xc8] sm:$0xff]
    %v309 = vld [vmem:[%s2 + $0xd0] sm:$0xff]
    %v310 = vld [vmem:[%s2 + $0xd8] sm:$0xff]
    %v311 = vld [vmem:[%s2 + $0xe0] sm:$0xff]
    %v312 = vld [vmem:[%s2 + $0xe8] sm:$0xff]
    %v313 = vld [vmem:[%s2 + $0xf0] sm:$0xff]
    %v314 = vld [vmem:[%s2 + $0xf8] sm:$0xff]
    %v315 = vld [vmem:[%s3 + $0x1] sm:$0x1]
    %v316 = vlaneseq
    %v317 = vshrl.u32 %v316, 7
    %v318 = vsub.s32 0, %v317
    %v319 = vrot.slane %v315, %v318
    %320 = vmatprep.subr.mxu0 0.0
    %321 = vmatpush1.msra.mxu0 %v314
    %322 = vmatprep.subr.mxu0 0.0
    %323 = vmatpush1.msra.mxu0 %v313
    %324 = vmatprep.subr.mxu0 0.0
    %325 = vmatpush1.msra.mxu0 %v312
    %326 = vmatprep.subr.mxu0 0.0
    %327 = vmatpush1.msra.mxu0 %v311
    %328 = vmatprep.subr.mxu0 0.0
    %329 = vmatpush1.msra.mxu0 %v310
    %330 = vmatprep.subr.mxu0 0.0
    %331 = vmatpush1.msra.mxu0 %v309
    %332 = vmatprep.subr.mxu0 0.0
    %333 = vmatpush1.msra.mxu0 %v308
    %334 = vmatprep.subr.mxu0 0.0
    %335 = vmatpush1.msra.mxu0 %v307
    %336 = vmatprep.subr.mxu0 0.0
    %337 = vmatpush1.msra.mxu0 %v306
    %338 = vmatprep.subr.mxu0 0.0
    %339 = vmatpush1.msra.mxu0 %v305
    %340 = vmatprep.subr.mxu0 0.0
    %341 = vmatpush1.msra.mxu0 %v304
    %342 = vmatprep.subr.mxu0 0.0
    %343 = vmatpush1.msra.mxu0 %v303
    %344 = vmatprep.subr.mxu0 0.0
    %345 = vmatpush1.msra.mxu0 %v302
    %346 = vmatprep.subr.mxu0 0.0
    %347 = vmatpush1.msra.mxu0 %v301
    %348 = vmatprep.subr.mxu0 0.0
    %349 = vmatpush1.msra.mxu0 %v300
    %350 = vmatprep.subr.mxu0 0.0
    %351 = vmatpush1.msra.mxu0 %v299
    %352 = vmatprep.subr.mxu0 0.0
    %353 = vmatpush2.msra.mxu0 0.0
    %354 = vmatprep.subr.mxu0 0.0
    %355 = vmatpush2.msra.mxu0 0.0
    %356 = vmatprep.subr.mxu0 0.0
    %357 = vmatpush2.msra.mxu0 0.0
    %358 = vmatprep.subr.mxu0 0.0
    %359 = vmatpush2.msra.mxu0 0.0
    %360 = vmatprep.subr.mxu0 0.0
    %361 = vmatpush2.msra.mxu0 0.0
    %362 = vmatprep.subr.mxu0 0.0
    %363 = vmatpush2.msra.mxu0 0.0
    %364 = vmatprep.subr.mxu0 0.0
    %365 = vmatpush2.msra.mxu0 0.0
    %366 = vmatprep.subr.mxu0 0.0
    %367 = vmatpush2.msra.mxu0 0.0
    %368 = vmatprep.subr.mxu0 0.0
    %369 = vmatpush2.msra.mxu0 0.0
    %370 = vmatprep.subr.mxu0 0.0
    %371 = vmatpush2.msra.mxu0 0.0
    %372 = vmatprep.subr.mxu0 0.0
    %373 = vmatpush2.msra.mxu0 0.0
    %374 = vmatprep.subr.mxu0 0.0
    %375 = vmatpush2.msra.mxu0 0.0
    %376 = vmatprep.subr.mxu0 0.0
    %377 = vmatpush2.msra.mxu0 0.0
    %378 = vmatprep.subr.mxu0 0.0
    %379 = vmatpush2.msra.mxu0 0.0
    %380 = vmatprep.subr.mxu0 0.0
    %381 = vmatpush2.msra.mxu0 0.0
    %382 = vmatprep.subr.mxu0 0.0
    %383 = vmatpush2.msra.mxu0 0.0
    %384 = vmatprep.mubr.f32.mxu0 0.0
    %385 = vmatmul.mubr.f32.gmra.mxu0 %v141
    %v386 = vpop.f32.mrf.mxu0
    %v387 = vadd.f32 %v319, %v386
    %v388 = vpop.f32.mrf.mxu0
    %389 = vmatprep.mubr.f32.mxu0 0.0
    %390 = vmatmul.mubr.f32.gmra.mxu0 %v146
    %v391 = vpop.f32.mrf.mxu0
    %v392 = vadd.f32 %v319, %v391
    %v393 = vpop.f32.mrf.mxu0
    %394 = vmatprep.mubr.f32.mxu0 0.0
    %395 = vmatmul.mubr.f32.gmra.mxu0 %v151
    %v396 = vpop.f32.mrf.mxu0
    %v397 = vadd.f32 %v319, %v396
    %v398 = vpop.f32.mrf.mxu0
    %399 = vmatprep.mubr.f32.mxu0 0.0
    %400 = vmatmul.mubr.f32.gmra.mxu0 %v156
    %v401 = vpop.f32.mrf.mxu0
    %v402 = vadd.f32 %v319, %v401
    %v403 = vpop.f32.mrf.mxu0
    %404 = vmatprep.mubr.f32.mxu0 0.0
    %405 = vmatmul.mubr.f32.gmra.mxu0 %v161
    %v406 = vpop.f32.mrf.mxu0
    %v407 = vadd.f32 %v319, %v406
    %v408 = vpop.f32.mrf.mxu0
    %409 = vmatprep.mubr.f32.mxu0 0.0
    %410 = vmatmul.mubr.f32.gmra.mxu0 %v166
    %v411 = vpop.f32.mrf.mxu0
    %v412 = vadd.f32 %v319, %v411
    %v413 = vpop.f32.mrf.mxu0
    %414 = vmatprep.mubr.f32.mxu0 0.0
    %415 = vmatmul.mubr.f32.gmra.mxu0 %v171
    %v416 = vpop.f32.mrf.mxu0
    %v417 = vadd.f32 %v319, %v416
    %v418 = vpop.f32.mrf.mxu0
    %419 = vmatprep.mubr.f32.mxu0 0.0
    %420 = vmatmul.mubr.f32.gmra.mxu0 %v176
    %v421 = vpop.f32.mrf.mxu0
    %v422 = vadd.f32 %v319, %v421
    %v423 = vpop.f32.mrf.mxu0
    %424 = vmatprep.mubr.f32.mxu0 0.0
    %425 = vmatmul.mubr.f32.gmra.mxu0 %v181
    %v426 = vpop.f32.mrf.mxu0
    %v427 = vadd.f32 %v319, %v426
    %v428 = vpop.f32.mrf.mxu0
    %429 = vmatprep.mubr.f32.mxu0 0.0
    %430 = vmatmul.mubr.f32.gmra.mxu0 %v186
    %v431 = vpop.f32.mrf.mxu0
    %v432 = vadd.f32 %v319, %v431
    %v433 = vpop.f32.mrf.mxu0
    %434 = vmatprep.mubr.f32.mxu0 0.0
    %435 = vmatmul.mubr.f32.gmra.mxu0 %v191
    %v436 = vpop.f32.mrf.mxu0
    %v437 = vadd.f32 %v319, %v436
    %v438 = vpop.f32.mrf.mxu0
    %439 = vmatprep.mubr.f32.mxu0 0.0
    %440 = vmatmul.mubr.f32.gmra.mxu0 %v196
    %v441 = vpop.f32.mrf.mxu0
    %v442 = vadd.f32 %v319, %v441
    %v443 = vpop.f32.mrf.mxu0
    %444 = vmatprep.mubr.f32.mxu0 0.0
    %445 = vmatmul.mubr.f32.gmra.mxu0 %v201
    %v446 = vpop.f32.mrf.mxu0
    %v447 = vadd.f32 %v319, %v446
    %v448 = vpop.f32.mrf.mxu0
    %449 = vmatprep.mubr.f32.mxu0 0.0
    %450 = vmatmul.mubr.f32.gmra.mxu0 %v206
    %v451 = vpop.f32.mrf.mxu0
    %v452 = vadd.f32 %v319, %v451
    %v453 = vpop.f32.mrf.mxu0
    %454 = vmatprep.mubr.f32.mxu0 0.0
    %455 = vmatmul.mubr.f32.gmra.mxu0 %v211
    %v456 = vpop.f32.mrf.mxu0
    %v457 = vadd.f32 %v319, %v456
    %v458 = vpop.f32.mrf.mxu0
    %459 = vmatprep.mubr.f32.mxu0 0.0
    %460 = vmatmul.mubr.f32.gmra.mxu0 %v216
    %v461 = vpop.f32.mrf.mxu0
    %v462 = vadd.f32 %v319, %v461
    %v463 = vpop.f32.mrf.mxu0
    %464 = vmatprep.mubr.f32.mxu0 0.0
    %465 = vmatmul.mubr.f32.gmra.mxu0 %v221
    %v466 = vpop.f32.mrf.mxu0
    %v467 = vadd.f32 %v319, %v466
    %v468 = vpop.f32.mrf.mxu0
    %469 = vmatprep.mubr.f32.mxu0 0.0
    %470 = vmatmul.mubr.f32.gmra.mxu0 %v226
    %v471 = vpop.f32.mrf.mxu0
    %v472 = vadd.f32 %v319, %v471
    %v473 = vpop.f32.mrf.mxu0
    %474 = vmatprep.mubr.f32.mxu0 0.0
    %475 = vmatmul.mubr.f32.gmra.mxu0 %v231
    %v476 = vpop.f32.mrf.mxu0
    %v477 = vadd.f32 %v319, %v476
    %v478 = vpop.f32.mrf.mxu0
    %479 = vmatprep.mubr.f32.mxu0 0.0
    %480 = vmatmul.mubr.f32.gmra.mxu0 %v236
    %v481 = vpop.f32.mrf.mxu0
    %v482 = vadd.f32 %v319, %v481
    %v483 = vpop.f32.mrf.mxu0
    %484 = vmatprep.mubr.f32.mxu0 0.0
    %485 = vmatmul.mubr.f32.gmra.mxu0 %v241
    %v486 = vpop.f32.mrf.mxu0
    %v487 = vadd.f32 %v319, %v486
    %v488 = vpop.f32.mrf.mxu0
    %489 = vmatprep.mubr.f32.mxu0 0.0
    %490 = vmatmul.mubr.f32.gmra.mxu0 %v246
    %v491 = vpop.f32.mrf.mxu0
    %v492 = vadd.f32 %v319, %v491
    %v493 = vpop.f32.mrf.mxu0
    %494 = vmatprep.mubr.f32.mxu0 0.0
    %495 = vmatmul.mubr.f32.gmra.mxu0 %v251
    %v496 = vpop.f32.mrf.mxu0
    %v497 = vadd.f32 %v319, %v496
    %v498 = vpop.f32.mrf.mxu0
    %499 = vmatprep.mubr.f32.mxu0 0.0
    %500 = vmatmul.mubr.f32.gmra.mxu0 %v256
    %v501 = vpop.f32.mrf.mxu0
    %v502 = vadd.f32 %v319, %v501
    %v503 = vpop.f32.mrf.mxu0
    %504 = vmatprep.mubr.f32.mxu0 0.0
    %505 = vmatmul.mubr.f32.gmra.mxu0 %v261
    %v506 = vpop.f32.mrf.mxu0
    %v507 = vadd.f32 %v319, %v506
    %v508 = vpop.f32.mrf.mxu0
    %509 = vmatprep.mubr.f32.mxu0 0.0
    %510 = vmatmul.mubr.f32.gmra.mxu0 %v266
    %v511 = vpop.f32.mrf.mxu0
    %v512 = vadd.f32 %v319, %v511
    %v513 = vpop.f32.mrf.mxu0
    %514 = vmatprep.mubr.f32.mxu0 0.0
    %515 = vmatmul.mubr.f32.gmra.mxu0 %v271
    %v516 = vpop.f32.mrf.mxu0
    %v517 = vadd.f32 %v319, %v516
    %v518 = vpop.f32.mrf.mxu0
    %519 = vmatprep.mubr.f32.mxu0 0.0
    %520 = vmatmul.mubr.f32.gmra.mxu0 %v276
    %v521 = vpop.f32.mrf.mxu0
    %v522 = vadd.f32 %v319, %v521
    %v523 = vpop.f32.mrf.mxu0
    %524 = vmatprep.mubr.f32.mxu0 0.0
    %525 = vmatmul.mubr.f32.gmra.mxu0 %v281
    %v526 = vpop.f32.mrf.mxu0
    %v527 = vadd.f32 %v319, %v526
    %v528 = vpop.f32.mrf.mxu0
    %529 = vmatprep.mubr.f32.mxu0 0.0
    %530 = vmatmul.mubr.f32.gmra.mxu0 %v286
    %v531 = vpop.f32.mrf.mxu0
    %v532 = vadd.f32 %v319, %v531
    %v533 = vpop.f32.mrf.mxu0
    %534 = vmatprep.mubr.f32.mxu0 0.0
    %535 = vmatmul.mubr.f32.gmra.mxu0 %v291
    %v536 = vpop.f32.mrf.mxu0
    %v537 = vadd.f32 %v319, %v536
    %v538 = vpop.f32.mrf.mxu0
    %539 = vmatprep.mubr.f32.mxu0 0.0
    %540 = vmatmul.mubr.f32.gmra.mxu0 %v296
    %v541 = vpop.f32.mrf.mxu0
    %v542 = vadd.f32 %v319, %v541
    %v543 = vpop.f32.mrf.mxu0
    %544 = vdwg.mxu0
    %v545 = vmax.f32 %v387, 0.0
    %v546 = vmax.f32 %v392, 0.0
    %v547 = vmax.f32 %v397, 0.0
    %v548 = vmax.f32 %v402, 0.0
    %v549 = vmax.f32 %v407, 0.0
    %v550 = vmax.f32 %v412, 0.0
    %v551 = vmax.f32 %v417, 0.0
    %v552 = vmax.f32 %v422, 0.0
    %v553 = vmax.f32 %v427, 0.0
    %v554 = vmax.f32 %v432, 0.0
    %v555 = vmax.f32 %v437, 0.0
    %v556 = vmax.f32 %v442, 0.0
    %v557 = vmax.f32 %v447, 0.0
    %v558 = vmax.f32 %v452, 0.0
    %v559 = vmax.f32 %v457, 0.0
    %v560 = vmax.f32 %v462, 0.0
    %v561 = vmax.f32 %v467, 0.0
    %v562 = vmax.f32 %v472, 0.0
    %v563 = vmax.f32 %v477, 0.0
    %v564 = vmax.f32 %v482, 0.0
    %v565 = vmax.f32 %v487, 0.0
    %v566 = vmax.f32 %v492, 0.0
    %v567 = vmax.f32 %v497, 0.0
    %v568 = vmax.f32 %v502, 0.0
    %v569 = vmax.f32 %v507, 0.0
    %v570 = vmax.f32 %v512, 0.0
    %v571 = vmax.f32 %v517, 0.0
    %v572 = vmax.f32 %v522, 0.0
    %v573 = vmax.f32 %v527, 0.0
    %v574 = vmax.f32 %v532, 0.0
    %v575 = vmax.f32 %v537, 0.0
    %v576 = vmax.f32 %v542, 0.0
    %v577 = vld [vmem:[%s2 + $0x100] sm:$0xff]
    %v578 = vld [vmem:[%s2 + $0x108] sm:$0xff]
    %v579 = vld [vmem:[%s2 + $0x110] sm:$0xff]
    %v580 = vld [vmem:[%s2 + $0x118] sm:$0xff]
    %v581 = vld [vmem:[%s2 + $0x120] sm:$0xff]
    %v582 = vld [vmem:[%s2 + $0x128] sm:$0xff]
    %v583 = vld [vmem:[%s2 + $0x130] sm:$0xff]
    %v584 = vld [vmem:[%s2 + $0x138] sm:$0xff]
    %v585 = vld [vmem:[%s2 + $0x140] sm:$0xff]
    %v586 = vld [vmem:[%s2 + $0x148] sm:$0xff]
    %v587 = vld [vmem:[%s2 + $0x150] sm:$0xff]
    %v588 = vld [vmem:[%s2 + $0x158] sm:$0xff]
    %v589 = vld [vmem:[%s2 + $0x160] sm:$0xff]
    %v590 = vld [vmem:[%s2 + $0x168] sm:$0xff]
    %v591 = vld [vmem:[%s2 + $0x170] sm:$0xff]
    %v592 = vld [vmem:[%s2 + $0x178] sm:$0xff]
    %v593 = vld [vmem:[%s3 + $0x2] sm:$0x1]
    %v594 = vlaneseq
    %v595 = vshrl.u32 %v594, 7
    %v596 = vsub.s32 0, %v595
    %v597 = vrot.slane %v593, %v596
    %598 = vmatprep.subr.mxu0 0.0
    %599 = vmatpush1.msra.mxu0 %v592
    %600 = vmatprep.subr.mxu0 0.0
    %601 = vmatpush1.msra.mxu0 %v591
    %602 = vmatprep.subr.mxu0 0.0
    %603 = vmatpush1.msra.mxu0 %v590
    %604 = vmatprep.subr.mxu0 0.0
    %605 = vmatpush1.msra.mxu0 %v589
    %606 = vmatprep.subr.mxu0 0.0
    %607 = vmatpush1.msra.mxu0 %v588
    %608 = vmatprep.subr.mxu0 0.0
    %609 = vmatpush1.msra.mxu0 %v587
    %610 = vmatprep.subr.mxu0 0.0
    %611 = vmatpush1.msra.mxu0 %v586
    %612 = vmatprep.subr.mxu0 0.0
    %613 = vmatpush1.msra.mxu0 %v585
    %614 = vmatprep.subr.mxu0 0.0
    %615 = vmatpush1.msra.mxu0 %v584
    %616 = vmatprep.subr.mxu0 0.0
    %617 = vmatpush1.msra.mxu0 %v583
    %618 = vmatprep.subr.mxu0 0.0
    %619 = vmatpush1.msra.mxu0 %v582
    %620 = vmatprep.subr.mxu0 0.0
    %621 = vmatpush1.msra.mxu0 %v581
    %622 = vmatprep.subr.mxu0 0.0
    %623 = vmatpush1.msra.mxu0 %v580
    %624 = vmatprep.subr.mxu0 0.0
    %625 = vmatpush1.msra.mxu0 %v579
    %626 = vmatprep.subr.mxu0 0.0
    %627 = vmatpush1.msra.mxu0 %v578
    %628 = vmatprep.subr.mxu0 0.0
    %629 = vmatpush1.msra.mxu0 %v577
    %630 = vmatprep.subr.mxu0 0.0
    %631 = vmatpush2.msra.mxu0 0.0
    %632 = vmatprep.subr.mxu0 0.0
    %633 = vmatpush2.msra.mxu0 0.0
    %634 = vmatprep.subr.mxu0 0.0
    %635 = vmatpush2.msra.mxu0 0.0
    %636 = vmatprep.subr.mxu0 0.0
    %637 = vmatpush2.msra.mxu0 0.0
    %638 = vmatprep.subr.mxu0 0.0
    %639 = vmatpush2.msra.mxu0 0.0
    %640 = vmatprep.subr.mxu0 0.0
    %641 = vmatpush2.msra.mxu0 0.0
    %642 = vmatprep.subr.mxu0 0.0
    %643 = vmatpush2.msra.mxu0 0.0
    %644 = vmatprep.subr.mxu0 0.0
    %645 = vmatpush2.msra.mxu0 0.0
    %646 = vmatprep.subr.mxu0 0.0
    %647 = vmatpush2.msra.mxu0 0.0
    %648 = vmatprep.subr.mxu0 0.0
    %649 = vmatpush2.msra.mxu0 0.0
    %650 = vmatprep.subr.mxu0 0.0
    %651 = vmatpush2.msra.mxu0 0.0
    %652 = vmatprep.subr.mxu0 0.0
    %653 = vmatpush2.msra.mxu0 0.0
    %654 = vmatprep.subr.mxu0 0.0
    %655 = vmatpush2.msra.mxu0 0.0
    %656 = vmatprep.subr.mxu0 0.0
    %657 = vmatpush2.msra.mxu0 0.0
    %658 = vmatprep.subr.mxu0 0.0
    %659 = vmatpush2.msra.mxu0 0.0
    %660 = vmatprep.subr.mxu0 0.0
    %661 = vmatpush2.msra.mxu0 0.0
    %662 = vmatprep.mubr.f32.mxu0 0.0
    %663 = vmatmul.mubr.f32.gmra.mxu0 %v545
    %v664 = vpop.f32.mrf.mxu0
    %v665 = vadd.f32 %v597, %v664
    %v666 = vpop.f32.mrf.mxu0
    %667 = vmatprep.mubr.f32.mxu0 0.0
    %668 = vmatmul.mubr.f32.gmra.mxu0 %v546
    %v669 = vpop.f32.mrf.mxu0
    %v670 = vadd.f32 %v597, %v669
    %v671 = vpop.f32.mrf.mxu0
    %672 = vmatprep.mubr.f32.mxu0 0.0
    %673 = vmatmul.mubr.f32.gmra.mxu0 %v547
    %v674 = vpop.f32.mrf.mxu0
    %v675 = vadd.f32 %v597, %v674
    %v676 = vpop.f32.mrf.mxu0
    %677 = vmatprep.mubr.f32.mxu0 0.0
    %678 = vmatmul.mubr.f32.gmra.mxu0 %v548
    %v679 = vpop.f32.mrf.mxu0
    %v680 = vadd.f32 %v597, %v679
    %v681 = vpop.f32.mrf.mxu0
    %682 = vmatprep.mubr.f32.mxu0 0.0
    %683 = vmatmul.mubr.f32.gmra.mxu0 %v549
    %v684 = vpop.f32.mrf.mxu0
    %v685 = vadd.f32 %v597, %v684
    %v686 = vpop.f32.mrf.mxu0
    %687 = vmatprep.mubr.f32.mxu0 0.0
    %688 = vmatmul.mubr.f32.gmra.mxu0 %v550
    %v689 = vpop.f32.mrf.mxu0
    %v690 = vadd.f32 %v597, %v689
    %v691 = vpop.f32.mrf.mxu0
    %692 = vmatprep.mubr.f32.mxu0 0.0
    %693 = vmatmul.mubr.f32.gmra.mxu0 %v551
    %v694 = vpop.f32.mrf.mxu0
    %v695 = vadd.f32 %v597, %v694
    %v696 = vpop.f32.mrf.mxu0
    %697 = vmatprep.mubr.f32.mxu0 0.0
    %698 = vmatmul.mubr.f32.gmra.mxu0 %v552
    %v699 = vpop.f32.mrf.mxu0
    %v700 = vadd.f32 %v597, %v699
    %v701 = vpop.f32.mrf.mxu0
    %702 = vmatprep.mubr.f32.mxu0 0.0
    %703 = vmatmul.mubr.f32.gmra.mxu0 %v553
    %v704 = vpop.f32.mrf.mxu0
    %v705 = vadd.f32 %v597, %v704
    %v706 = vpop.f32.mrf.mxu0
    %707 = vmatprep.mubr.f32.mxu0 0.0
    %708 = vmatmul.mubr.f32.gmra.mxu0 %v554
    %v709 = vpop.f32.mrf.mxu0
    %v710 = vadd.f32 %v597, %v709
    %v711 = vpop.f32.mrf.mxu0
    %712 = vmatprep.mubr.f32.mxu0 0.0
    %713 = vmatmul.mubr.f32.gmra.mxu0 %v555
    %v714 = vpop.f32.mrf.mxu0
    %v715 = vadd.f32 %v597, %v714
    %v716 = vpop.f32.mrf.mxu0
    %717 = vmatprep.mubr.f32.mxu0 0.0
    %718 = vmatmul.mubr.f32.gmra.mxu0 %v556
    %v719 = vpop.f32.mrf.mxu0
    %v720 = vadd.f32 %v597, %v719
    %v721 = vpop.f32.mrf.mxu0
    %722 = vmatprep.mubr.f32.mxu0 0.0
    %723 = vmatmul.mubr.f32.gmra.mxu0 %v557
    %v724 = vpop.f32.mrf.mxu0
    %v725 = vadd.f32 %v597, %v724
    %v726 = vpop.f32.mrf.mxu0
    %727 = vmatprep.mubr.f32.mxu0 0.0
    %728 = vmatmul.mubr.f32.gmra.mxu0 %v558
    %v729 = vpop.f32.mrf.mxu0
    %v730 = vadd.f32 %v597, %v729
    %v731 = vpop.f32.mrf.mxu0
    %732 = vmatprep.mubr.f32.mxu0 0.0
    %733 = vmatmul.mubr.f32.gmra.mxu0 %v559
    %v734 = vpop.f32.mrf.mxu0
    %v735 = vadd.f32 %v597, %v734
    %v736 = vpop.f32.mrf.mxu0
    %737 = vmatprep.mubr.f32.mxu0 0.0
    %738 = vmatmul.mubr.f32.gmra.mxu0 %v560
    %v739 = vpop.f32.mrf.mxu0
    %v740 = vadd.f32 %v597, %v739
    %v741 = vpop.f32.mrf.mxu0
    %742 = vmatprep.mubr.f32.mxu0 0.0
    %743 = vmatmul.mubr.f32.gmra.mxu0 %v561
    %v744 = vpop.f32.mrf.mxu0
    %v745 = vadd.f32 %v597, %v744
    %v746 = vpop.f32.mrf.mxu0
    %747 = vmatprep.mubr.f32.mxu0 0.0
    %748 = vmatmul.mubr.f32.gmra.mxu0 %v562
    %v749 = vpop.f32.mrf.mxu0
    %v750 = vadd.f32 %v597, %v749
    %v751 = vpop.f32.mrf.mxu0
    %752 = vmatprep.mubr.f32.mxu0 0.0
    %753 = vmatmul.mubr.f32.gmra.mxu0 %v563
    %v754 = vpop.f32.mrf.mxu0
    %v755 = vadd.f32 %v597, %v754
    %v756 = vpop.f32.mrf.mxu0
    %757 = vmatprep.mubr.f32.mxu0 0.0
    %758 = vmatmul.mubr.f32.gmra.mxu0 %v564
    %v759 = vpop.f32.mrf.mxu0
    %v760 = vadd.f32 %v597, %v759
    %v761 = vpop.f32.mrf.mxu0
    %762 = vmatprep.mubr.f32.mxu0 0.0
    %763 = vmatmul.mubr.f32.gmra.mxu0 %v565
    %v764 = vpop.f32.mrf.mxu0
    %v765 = vadd.f32 %v597, %v764
    %v766 = vpop.f32.mrf.mxu0
    %767 = vmatprep.mubr.f32.mxu0 0.0
    %768 = vmatmul.mubr.f32.gmra.mxu0 %v566
    %v769 = vpop.f32.mrf.mxu0
    %v770 = vadd.f32 %v597, %v769
    %v771 = vpop.f32.mrf.mxu0
    %772 = vmatprep.mubr.f32.mxu0 0.0
    %773 = vmatmul.mubr.f32.gmra.mxu0 %v567
    %v774 = vpop.f32.mrf.mxu0
    %v775 = vadd.f32 %v597, %v774
    %v776 = vpop.f32.mrf.mxu0
    %777 = vmatprep.mubr.f32.mxu0 0.0
    %778 = vmatmul.mubr.f32.gmra.mxu0 %v568
    %v779 = vpop.f32.mrf.mxu0
    %v780 = vadd.f32 %v597, %v779
    %v781 = vpop.f32.mrf.mxu0
    %782 = vmatprep.mubr.f32.mxu0 0.0
    %783 = vmatmul.mubr.f32.gmra.mxu0 %v569
    %v784 = vpop.f32.mrf.mxu0
    %v785 = vadd.f32 %v597, %v784
    %v786 = vpop.f32.mrf.mxu0
    %787 = vmatprep.mubr.f32.mxu0 0.0
    %788 = vmatmul.mubr.f32.gmra.mxu0 %v570
    %v789 = vpop.f32.mrf.mxu0
    %v790 = vadd.f32 %v597, %v789
    %v791 = vpop.f32.mrf.mxu0
    %792 = vmatprep.mubr.f32.mxu0 0.0
    %793 = vmatmul.mubr.f32.gmra.mxu0 %v571
    %v794 = vpop.f32.mrf.mxu0
    %v795 = vadd.f32 %v597, %v794
    %v796 = vpop.f32.mrf.mxu0
    %797 = vmatprep.mubr.f32.mxu0 0.0
    %798 = vmatmul.mubr.f32.gmra.mxu0 %v572
    %v799 = vpop.f32.mrf.mxu0
    %v800 = vadd.f32 %v597, %v799
    %v801 = vpop.f32.mrf.mxu0
    %802 = vmatprep.mubr.f32.mxu0 0.0
    %803 = vmatmul.mubr.f32.gmra.mxu0 %v573
    %v804 = vpop.f32.mrf.mxu0
    %v805 = vadd.f32 %v597, %v804
    %v806 = vpop.f32.mrf.mxu0
    %807 = vmatprep.mubr.f32.mxu0 0.0
    %808 = vmatmul.mubr.f32.gmra.mxu0 %v574
    %v809 = vpop.f32.mrf.mxu0
    %v810 = vadd.f32 %v597, %v809
    %v811 = vpop.f32.mrf.mxu0
    %812 = vmatprep.mubr.f32.mxu0 0.0
    %813 = vmatmul.mubr.f32.gmra.mxu0 %v575
    %v814 = vpop.f32.mrf.mxu0
    %v815 = vadd.f32 %v597, %v814
    %v816 = vpop.f32.mrf.mxu0
    %817 = vmatprep.mubr.f32.mxu0 0.0
    %818 = vmatmul.mubr.f32.gmra.mxu0 %v576
    %v819 = vpop.f32.mrf.mxu0
    %v820 = vadd.f32 %v597, %v819
    %v821 = vpop.f32.mrf.mxu0
    %822 = vdwg.mxu0
    %v823 = vxor.u32 %v665, 2147483648
    %v824 = vxor.u32 %v670, 2147483648
    %v825 = vxor.u32 %v675, 2147483648
    %v826 = vxor.u32 %v680, 2147483648
    %v827 = vxor.u32 %v685, 2147483648
    %v828 = vxor.u32 %v690, 2147483648
    %v829 = vxor.u32 %v695, 2147483648
    %v830 = vxor.u32 %v700, 2147483648
    %v831 = vxor.u32 %v705, 2147483648
    %v832 = vxor.u32 %v710, 2147483648
    %v833 = vxor.u32 %v715, 2147483648
    %v834 = vxor.u32 %v720, 2147483648
    %v835 = vxor.u32 %v725, 2147483648
    %v836 = vxor.u32 %v730, 2147483648
    %v837 = vxor.u32 %v735, 2147483648
    %v838 = vxor.u32 %v740, 2147483648
    %v839 = vxor.u32 %v745, 2147483648
    %v840 = vxor.u32 %v750, 2147483648
    %v841 = vxor.u32 %v755, 2147483648
    %v842 = vxor.u32 %v760, 2147483648
    %v843 = vxor.u32 %v765, 2147483648
    %v844 = vxor.u32 %v770, 2147483648
    %v845 = vxor.u32 %v775, 2147483648
    %v846 = vxor.u32 %v780, 2147483648
    %v847 = vxor.u32 %v785, 2147483648
    %v848 = vxor.u32 %v790, 2147483648
    %v849 = vxor.u32 %v795, 2147483648
    %v850 = vxor.u32 %v800, 2147483648
    %v851 = vxor.u32 %v805, 2147483648
    %v852 = vxor.u32 %v810, 2147483648
    %v853 = vxor.u32 %v815, 2147483648
    %v854 = vxor.u32 %v820, 2147483648
    %v855 = vmul.f32 %v823, 1.442695
    %v856 = vpow.pop %v855
    %v857 = vmul.f32 %v824, 1.442695
    %v858 = vpow.pop %v857
    %v859 = vmul.f32 %v825, 1.442695
    %v860 = vpow.pop %v859
    %v861 = vmul.f32 %v826, 1.442695
    %v862 = vpow.pop %v861
    %v863 = vmul.f32 %v827, 1.442695
    %v864 = vpow.pop %v863
    %v865 = vmul.f32 %v828, 1.442695
    %v866 = vpow.pop %v865
    %v867 = vmul.f32 %v829, 1.442695
    %v868 = vpow.pop %v867
    %v869 = vmul.f32 %v830, 1.442695
    %v870 = vpow.pop %v869
    %v871 = vmul.f32 %v831, 1.442695
    %v872 = vpow.pop %v871
    %v873 = vmul.f32 %v832, 1.442695
    %v874 = vpow.pop %v873
    %v875 = vmul.f32 %v833, 1.442695
    %v876 = vpow.pop %v875
    %v877 = vmul.f32 %v834, 1.442695
    %v878 = vpow.pop %v877
    %v879 = vmul.f32 %v835, 1.442695
    %v880 = vpow.pop %v879
    %v881 = vmul.f32 %v836, 1.442695
    %v882 = vpow.pop %v881
    %v883 = vmul.f32 %v837, 1.442695
    %v884 = vpow.pop %v883
    %v885 = vmul.f32 %v838, 1.442695
    %v886 = vpow.pop %v885
    %v887 = vmul.f32 %v839, 1.442695
    %v888 = vpow.pop %v887
    %v889 = vmul.f32 %v840, 1.442695
    %v890 = vpow.pop %v889
    %v891 = vmul.f32 %v841, 1.442695
    %v892 = vpow.pop %v891
    %v893 = vmul.f32 %v842, 1.442695
    %v894 = vpow.pop %v893
    %v895 = vmul.f32 %v843, 1.442695
    %v896 = vpow.pop %v895
    %v897 = vmul.f32 %v844, 1.442695
    %v898 = vpow.pop %v897
    %v899 = vmul.f32 %v845, 1.442695
    %v900 = vpow.pop %v899
    %v901 = vmul.f32 %v846, 1.442695
    %v902 = vpow.pop %v901
    %v903 = vmul.f32 %v847, 1.442695
    %v904 = vpow.pop %v903
    %v905 = vmul.f32 %v848, 1.442695
    %v906 = vpow.pop %v905
    %v907 = vmul.f32 %v849, 1.442695
    %v908 = vpow.pop %v907
    %v909 = vmul.f32 %v850, 1.442695
    %v910 = vpow.pop %v909
    %v911 = vmul.f32 %v851, 1.442695
    %v912 = vpow.pop %v911
    %v913 = vmul.f32 %v852, 1.442695
    %v914 = vpow.pop %v913
    %v915 = vmul.f32 %v853, 1.442695
    %v916 = vpow.pop %v915
    %v917 = vmul.f32 %v854, 1.442695
    %v918 = vpow.pop %v917
    %v919 = vadd.f32 %v856, 1.0
    %v920 = vadd.f32 %v858, 1.0
    %v921 = vadd.f32 %v860, 1.0
    %v922 = vadd.f32 %v862, 1.0
    %v923 = vadd.f32 %v864, 1.0
    %v924 = vadd.f32 %v866, 1.0
    %v925 = vadd.f32 %v868, 1.0
    %v926 = vadd.f32 %v870, 1.0
    %v927 = vadd.f32 %v872, 1.0
    %v928 = vadd.f32 %v874, 1.0
    %v929 = vadd.f32 %v876, 1.0
    %v930 = vadd.f32 %v878, 1.0
    %v931 = vadd.f32 %v880, 1.0
    %v932 = vadd.f32 %v882, 1.0
    %v933 = vadd.f32 %v884, 1.0
    %v934 = vadd.f32 %v886, 1.0
    %v935 = vadd.f32 %v888, 1.0
    %v936 = vadd.f32 %v890, 1.0
    %v937 = vadd.f32 %v892, 1.0
    %v938 = vadd.f32 %v894, 1.0
    %v939 = vadd.f32 %v896, 1.0
    %v940 = vadd.f32 %v898, 1.0
    %v941 = vadd.f32 %v900, 1.0
    %v942 = vadd.f32 %v902, 1.0
    %v943 = vadd.f32 %v904, 1.0
    %v944 = vadd.f32 %v906, 1.0
    %v945 = vadd.f32 %v908, 1.0
    %v946 = vadd.f32 %v910, 1.0
    %v947 = vadd.f32 %v912, 1.0
    %v948 = vadd.f32 %v914, 1.0
    %v949 = vadd.f32 %v916, 1.0
    %v950 = vadd.f32 %v918, 1.0
    %v951 = vrcp.pop %v919
    %v952 = vmul.f32 1.0, %v951
    %v953 = vrcp.pop %v920
    %v954 = vmul.f32 1.0, %v953
    %v955 = vrcp.pop %v921
    %v956 = vmul.f32 1.0, %v955
    %v957 = vrcp.pop %v922
    %v958 = vmul.f32 1.0, %v957
    %v959 = vrcp.pop %v923
    %v960 = vmul.f32 1.0, %v959
    %v961 = vrcp.pop %v924
    %v962 = vmul.f32 1.0, %v961
    %v963 = vrcp.pop %v925
    %v964 = vmul.f32 1.0, %v963
    %v965 = vrcp.pop %v926
    %v966 = vmul.f32 1.0, %v965
    %v967 = vrcp.pop %v927
    %v968 = vmul.f32 1.0, %v967
    %v969 = vrcp.pop %v928
    %v970 = vmul.f32 1.0, %v969
    %v971 = vrcp.pop %v929
    %v972 = vmul.f32 1.0, %v971
    %v973 = vrcp.pop %v930
    %v974 = vmul.f32 1.0, %v973
    %v975 = vrcp.pop %v931
    %v976 = vmul.f32 1.0, %v975
    %v977 = vrcp.pop %v932
    %v978 = vmul.f32 1.0, %v977
    %v979 = vrcp.pop %v933
    %v980 = vmul.f32 1.0, %v979
    %v981 = vrcp.pop %v934
    %v982 = vmul.f32 1.0, %v981
    %v983 = vrcp.pop %v935
    %v984 = vmul.f32 1.0, %v983
    %v985 = vrcp.pop %v936
    %v986 = vmul.f32 1.0, %v985
    %v987 = vrcp.pop %v937
    %v988 = vmul.f32 1.0, %v987
    %v989 = vrcp.pop %v938
    %v990 = vmul.f32 1.0, %v989
    %v991 = vrcp.pop %v939
    %v992 = vmul.f32 1.0, %v991
    %v993 = vrcp.pop %v940
    %v994 = vmul.f32 1.0, %v993
    %v995 = vrcp.pop %v941
    %v996 = vmul.f32 1.0, %v995
    %v997 = vrcp.pop %v942
    %v998 = vmul.f32 1.0, %v997
    %v999 = vrcp.pop %v943
    %v1000 = vmul.f32 1.0, %v999
    %v1001 = vrcp.pop %v944
    %v1002 = vmul.f32 1.0, %v1001
    %v1003 = vrcp.pop %v945
    %v1004 = vmul.f32 1.0, %v1003
    %v1005 = vrcp.pop %v946
    %v1006 = vmul.f32 1.0, %v1005
    %v1007 = vrcp.pop %v947
    %v1008 = vmul.f32 1.0, %v1007
    %v1009 = vrcp.pop %v948
    %v1010 = vmul.f32 1.0, %v1009
    %v1011 = vrcp.pop %v949
    %v1012 = vmul.f32 1.0, %v1011
    %v1013 = vrcp.pop %v950
    %v1014 = vmul.f32 1.0, %v1013
    %v1015 = vld [vmem:[%s2 + $0x180] sm:$0xff]
    %v1016 = vld [vmem:[%s2 + $0x188] sm:$0xff]
    %v1017 = vld [vmem:[%s2 + $0x190] sm:$0xff]
    %v1018 = vld [vmem:[%s2 + $0x198] sm:$0xff]
    %v1019 = vld [vmem:[%s2 + $0x1a0] sm:$0xff]
    %v1020 = vld [vmem:[%s2 + $0x1a8] sm:$0xff]
    %v1021 = vld [vmem:[%s2 + $0x1b0] sm:$0xff]
    %v1022 = vld [vmem:[%s2 + $0x1b8] sm:$0xff]
    %v1023 = vld [vmem:[%s2 + $0x1c0] sm:$0xff]
    %v1024 = vld [vmem:[%s2 + $0x1c8] sm:$0xff]
    %v1025 = vld [vmem:[%s2 + $0x1d0] sm:$0xff]
    %v1026 = vld [vmem:[%s2 + $0x1d8] sm:$0xff]
    %v1027 = vld [vmem:[%s2 + $0x1e0] sm:$0xff]
    %v1028 = vld [vmem:[%s2 + $0x1e8] sm:$0xff]
    %v1029 = vld [vmem:[%s2 + $0x1f0] sm:$0xff]
    %v1030 = vld [vmem:[%s2 + $0x1f8] sm:$0xff]
    %v1031 = vld [vmem:[%s3 + $0x3] sm:$0x1]
    %v1032 = vlaneseq
    %v1033 = vshrl.u32 %v1032, 7
    %v1034 = vsub.s32 0, %v1033
    %v1035 = vrot.slane %v1031, %v1034
    %1036 = vmatprep.subr.mxu0 0.0
    %1037 = vmatpush1.msra.mxu0 %v1030
    %1038 = vmatprep.subr.mxu0 0.0
    %1039 = vmatpush1.msra.mxu0 %v1029
    %1040 = vmatprep.subr.mxu0 0.0
    %1041 = vmatpush1.msra.mxu0 %v1028
    %1042 = vmatprep.subr.mxu0 0.0
    %1043 = vmatpush1.msra.mxu0 %v1027
    %1044 = vmatprep.subr.mxu0 0.0
    %1045 = vmatpush1.msra.mxu0 %v1026
    %1046 = vmatprep.subr.mxu0 0.0
    %1047 = vmatpush1.msra.mxu0 %v1025
    %1048 = vmatprep.subr.mxu0 0.0
    %1049 = vmatpush1.msra.mxu0 %v1024
    %1050 = vmatprep.subr.mxu0 0.0
    %1051 = vmatpush1.msra.mxu0 %v1023
    %1052 = vmatprep.subr.mxu0 0.0
    %1053 = vmatpush1.msra.mxu0 %v1022
    %1054 = vmatprep.subr.mxu0 0.0
    %1055 = vmatpush1.msra.mxu0 %v1021
    %1056 = vmatprep.subr.mxu0 0.0
    %1057 = vmatpush1.msra.mxu0 %v1020
    %1058 = vmatprep.subr.mxu0 0.0
    %1059 = vmatpush1.msra.mxu0 %v1019
    %1060 = vmatprep.subr.mxu0 0.0
    %1061 = vmatpush1.msra.mxu0 %v1018
    %1062 = vmatprep.subr.mxu0 0.0
    %1063 = vmatpush1.msra.mxu0 %v1017
    %1064 = vmatprep.subr.mxu0 0.0
    %1065 = vmatpush1.msra.mxu0 %v1016
    %1066 = vmatprep.subr.mxu0 0.0
    %1067 = vmatpush1.msra.mxu0 %v1015
    %1068 = vmatprep.subr.mxu0 0.0
    %1069 = vmatpush2.msra.mxu0 0.0
    %1070 = vmatprep.subr.mxu0 0.0
    %1071 = vmatpush2.msra.mxu0 0.0
    %1072 = vmatprep.subr.mxu0 0.0
    %1073 = vmatpush2.msra.mxu0 0.0
    %1074 = vmatprep.subr.mxu0 0.0
    %1075 = vmatpush2.msra.mxu0 0.0
    %1076 = vmatprep.subr.mxu0 0.0
    %1077 = vmatpush2.msra.mxu0 0.0
    %1078 = vmatprep.subr.mxu0 0.0
    %1079 = vmatpush2.msra.mxu0 0.0
    %1080 = vmatprep.subr.mxu0 0.0
    %1081 = vmatpush2.msra.mxu0 0.0
    %1082 = vmatprep.subr.mxu0 0.0
    %1083 = vmatpush2.msra.mxu0 0.0
    %1084 = vmatprep.subr.mxu0 0.0
    %1085 = vmatpush2.msra.mxu0 0.0
    %1086 = vmatprep.subr.mxu0 0.0
    %1087 = vmatpush2.msra.mxu0 0.0
    %1088 = vmatprep.subr.mxu0 0.0
    %1089 = vmatpush2.msra.mxu0 0.0
    %1090 = vmatprep.subr.mxu0 0.0
    %1091 = vmatpush2.msra.mxu0 0.0
    %1092 = vmatprep.subr.mxu0 0.0
    %1093 = vmatpush2.msra.mxu0 0.0
    %1094 = vmatprep.subr.mxu0 0.0
    %1095 = vmatpush2.msra.mxu0 0.0
    %1096 = vmatprep.subr.mxu0 0.0
    %1097 = vmatpush2.msra.mxu0 0.0
    %1098 = vmatprep.subr.mxu0 0.0
    %1099 = vmatpush2.msra.mxu0 0.0
    %1100 = vmatprep.mubr.f32.mxu0 0.0
    %1101 = vmatmul.mubr.f32.gmra.mxu0 %v952
    %v1102 = vpop.f32.mrf.mxu0
    %v1103 = vadd.f32 %v1035, %v1102
    %v1104 = vpop.f32.mrf.mxu0
    %1105 = vmatprep.mubr.f32.mxu0 0.0
    %1106 = vmatmul.mubr.f32.gmra.mxu0 %v954
    %v1107 = vpop.f32.mrf.mxu0
    %v1108 = vadd.f32 %v1035, %v1107
    %v1109 = vpop.f32.mrf.mxu0
    %1110 = vmatprep.mubr.f32.mxu0 0.0
    %1111 = vmatmul.mubr.f32.gmra.mxu0 %v956
    %v1112 = vpop.f32.mrf.mxu0
    %v1113 = vadd.f32 %v1035, %v1112
    %v1114 = vpop.f32.mrf.mxu0
    %1115 = vmatprep.mubr.f32.mxu0 0.0
    %1116 = vmatmul.mubr.f32.gmra.mxu0 %v958
    %v1117 = vpop.f32.mrf.mxu0
    %v1118 = vadd.f32 %v1035, %v1117
    %v1119 = vpop.f32.mrf.mxu0
    %1120 = vmatprep.mubr.f32.mxu0 0.0
    %1121 = vmatmul.mubr.f32.gmra.mxu0 %v960
    %v1122 = vpop.f32.mrf.mxu0
    %v1123 = vadd.f32 %v1035, %v1122
    %v1124 = vpop.f32.mrf.mxu0
    %1125 = vmatprep.mubr.f32.mxu0 0.0
    %1126 = vmatmul.mubr.f32.gmra.mxu0 %v962
    %v1127 = vpop.f32.mrf.mxu0
    %v1128 = vadd.f32 %v1035, %v1127
    %v1129 = vpop.f32.mrf.mxu0
    %1130 = vmatprep.mubr.f32.mxu0 0.0
    %1131 = vmatmul.mubr.f32.gmra.mxu0 %v964
    %v1132 = vpop.f32.mrf.mxu0
    %v1133 = vadd.f32 %v1035, %v1132
    %v1134 = vpop.f32.mrf.mxu0
    %1135 = vmatprep.mubr.f32.mxu0 0.0
    %1136 = vmatmul.mubr.f32.gmra.mxu0 %v966
    %v1137 = vpop.f32.mrf.mxu0
    %v1138 = vadd.f32 %v1035, %v1137
    %v1139 = vpop.f32.mrf.mxu0
    %1140 = vmatprep.mubr.f32.mxu0 0.0
    %1141 = vmatmul.mubr.f32.gmra.mxu0 %v968
    %v1142 = vpop.f32.mrf.mxu0
    %v1143 = vadd.f32 %v1035, %v1142
    %v1144 = vpop.f32.mrf.mxu0
    %1145 = vmatprep.mubr.f32.mxu0 0.0
    %1146 = vmatmul.mubr.f32.gmra.mxu0 %v970
    %v1147 = vpop.f32.mrf.mxu0
    %v1148 = vadd.f32 %v1035, %v1147
    %v1149 = vpop.f32.mrf.mxu0
    %1150 = vmatprep.mubr.f32.mxu0 0.0
    %1151 = vmatmul.mubr.f32.gmra.mxu0 %v972
    %v1152 = vpop.f32.mrf.mxu0
    %v1153 = vadd.f32 %v1035, %v1152
    %v1154 = vpop.f32.mrf.mxu0
    %1155 = vmatprep.mubr.f32.mxu0 0.0
    %1156 = vmatmul.mubr.f32.gmra.mxu0 %v974
    %v1157 = vpop.f32.mrf.mxu0
    %v1158 = vadd.f32 %v1035, %v1157
    %v1159 = vpop.f32.mrf.mxu0
    %1160 = vmatprep.mubr.f32.mxu0 0.0
    %1161 = vmatmul.mubr.f32.gmra.mxu0 %v976
    %v1162 = vpop.f32.mrf.mxu0
    %v1163 = vadd.f32 %v1035, %v1162
    %v1164 = vpop.f32.mrf.mxu0
    %1165 = vmatprep.mubr.f32.mxu0 0.0
    %1166 = vmatmul.mubr.f32.gmra.mxu0 %v978
    %v1167 = vpop.f32.mrf.mxu0
    %v1168 = vadd.f32 %v1035, %v1167
    %v1169 = vpop.f32.mrf.mxu0
    %1170 = vmatprep.mubr.f32.mxu0 0.0
    %1171 = vmatmul.mubr.f32.gmra.mxu0 %v980
    %v1172 = vpop.f32.mrf.mxu0
    %v1173 = vadd.f32 %v1035, %v1172
    %v1174 = vpop.f32.mrf.mxu0
    %1175 = vmatprep.mubr.f32.mxu0 0.0
    %1176 = vmatmul.mubr.f32.gmra.mxu0 %v982
    %v1177 = vpop.f32.mrf.mxu0
    %v1178 = vadd.f32 %v1035, %v1177
    %v1179 = vpop.f32.mrf.mxu0
    %1180 = vmatprep.mubr.f32.mxu0 0.0
    %1181 = vmatmul.mubr.f32.gmra.mxu0 %v984
    %v1182 = vpop.f32.mrf.mxu0
    %v1183 = vadd.f32 %v1035, %v1182
    %v1184 = vpop.f32.mrf.mxu0
    %1185 = vmatprep.mubr.f32.mxu0 0.0
    %1186 = vmatmul.mubr.f32.gmra.mxu0 %v986
    %v1187 = vpop.f32.mrf.mxu0
    %v1188 = vadd.f32 %v1035, %v1187
    %v1189 = vpop.f32.mrf.mxu0
    %1190 = vmatprep.mubr.f32.mxu0 0.0
    %1191 = vmatmul.mubr.f32.gmra.mxu0 %v988
    %v1192 = vpop.f32.mrf.mxu0
    %v1193 = vadd.f32 %v1035, %v1192
    %v1194 = vpop.f32.mrf.mxu0
    %1195 = vmatprep.mubr.f32.mxu0 0.0
    %1196 = vmatmul.mubr.f32.gmra.mxu0 %v990
    %v1197 = vpop.f32.mrf.mxu0
    %v1198 = vadd.f32 %v1035, %v1197
    %v1199 = vpop.f32.mrf.mxu0
    %1200 = vmatprep.mubr.f32.mxu0 0.0
    %1201 = vmatmul.mubr.f32.gmra.mxu0 %v992
    %v1202 = vpop.f32.mrf.mxu0
    %v1203 = vadd.f32 %v1035, %v1202
    %v1204 = vpop.f32.mrf.mxu0
    %1205 = vmatprep.mubr.f32.mxu0 0.0
    %1206 = vmatmul.mubr.f32.gmra.mxu0 %v994
    %v1207 = vpop.f32.mrf.mxu0
    %v1208 = vadd.f32 %v1035, %v1207
    %v1209 = vpop.f32.mrf.mxu0
    %1210 = vmatprep.mubr.f32.mxu0 0.0
    %1211 = vmatmul.mubr.f32.gmra.mxu0 %v996
    %v1212 = vpop.f32.mrf.mxu0
    %v1213 = vadd.f32 %v1035, %v1212
    %v1214 = vpop.f32.mrf.mxu0
    %1215 = vmatprep.mubr.f32.mxu0 0.0
    %1216 = vmatmul.mubr.f32.gmra.mxu0 %v998
    %v1217 = vpop.f32.mrf.mxu0
    %v1218 = vadd.f32 %v1035, %v1217
    %v1219 = vpop.f32.mrf.mxu0
    %1220 = vmatprep.mubr.f32.mxu0 0.0
    %1221 = vmatmul.mubr.f32.gmra.mxu0 %v1000
    %v1222 = vpop.f32.mrf.mxu0
    %v1223 = vadd.f32 %v1035, %v1222
    %v1224 = vpop.f32.mrf.mxu0
    %1225 = vmatprep.mubr.f32.mxu0 0.0
    %1226 = vmatmul.mubr.f32.gmra.mxu0 %v1002
    %v1227 = vpop.f32.mrf.mxu0
    %v1228 = vadd.f32 %v1035, %v1227
    %v1229 = vpop.f32.mrf.mxu0
    %1230 = vmatprep.mubr.f32.mxu0 0.0
    %1231 = vmatmul.mubr.f32.gmra.mxu0 %v1004
    %v1232 = vpop.f32.mrf.mxu0
    %v1233 = vadd.f32 %v1035, %v1232
    %v1234 = vpop.f32.mrf.mxu0
    %1235 = vmatprep.mubr.f32.mxu0 0.0
    %1236 = vmatmul.mubr.f32.gmra.mxu0 %v1006
    %v1237 = vpop.f32.mrf.mxu0
    %v1238 = vadd.f32 %v1035, %v1237
    %v1239 = vpop.f32.mrf.mxu0
    %1240 = vmatprep.mubr.f32.mxu0 0.0
    %1241 = vmatmul.mubr.f32.gmra.mxu0 %v1008
    %v1242 = vpop.f32.mrf.mxu0
    %v1243 = vadd.f32 %v1035, %v1242
    %v1244 = vpop.f32.mrf.mxu0
    %1245 = vmatprep.mubr.f32.mxu0 0.0
    %1246 = vmatmul.mubr.f32.gmra.mxu0 %v1010
    %v1247 = vpop.f32.mrf.mxu0
    %v1248 = vadd.f32 %v1035, %v1247
    %v1249 = vpop.f32.mrf.mxu0
    %1250 = vmatprep.mubr.f32.mxu0 0.0
    %1251 = vmatmul.mubr.f32.gmra.mxu0 %v1012
    %v1252 = vpop.f32.mrf.mxu0
    %v1253 = vadd.f32 %v1035, %v1252
    %v1254 = vpop.f32.mrf.mxu0
    %1255 = vmatprep.mubr.f32.mxu0 0.0
    %1256 = vmatmul.mubr.f32.gmra.mxu0 %v1014
    %v1257 = vpop.f32.mrf.mxu0
    %v1258 = vadd.f32 %v1035, %v1257
    %v1259 = vpop.f32.mrf.mxu0
    %1260 = vdwg.mxu0
    %v1261 = vld [vmem:[%s2 + $0x200] sm:$0xff]
    %v1262 = vld [vmem:[%s2 + $0x208] sm:$0xff]
    %v1263 = vld [vmem:[%s2 + $0x210] sm:$0xff]
    %v1264 = vld [vmem:[%s2 + $0x218] sm:$0xff]
    %v1265 = vld [vmem:[%s2 + $0x220] sm:$0xff]
    %v1266 = vld [vmem:[%s2 + $0x228] sm:$0xff]
    %v1267 = vld [vmem:[%s2 + $0x230] sm:$0xff]
    %v1268 = vld [vmem:[%s2 + $0x238] sm:$0xff]
    %v1269 = vld [vmem:[%s2 + $0x240] sm:$0xff]
    %v1270 = vld [vmem:[%s2 + $0x248] sm:$0xff]
    %v1271 = vld [vmem:[%s2 + $0x250] sm:$0xff]
    %v1272 = vld [vmem:[%s2 + $0x258] sm:$0xff]
    %v1273 = vld [vmem:[%s2 + $0x260] sm:$0xff]
    %v1274 = vld [vmem:[%s2 + $0x268] sm:$0xff]
    %v1275 = vld [vmem:[%s2 + $0x270] sm:$0xff]
    %v1276 = vld [vmem:[%s2 + $0x278] sm:$0xff]
    %v1277 = vld [vmem:[%s3 + $0x4] sm:$0x1]
    %v1278 = vlaneseq
    %v1279 = vshrl.u32 %v1278, 7
    %v1280 = vsub.s32 0, %v1279
    %v1281 = vrot.slane %v1277, %v1280
    %1282 = vmatprep.subr.mxu0 0.0
    %1283 = vmatpush1.msra.mxu0 %v1276
    %1284 = vmatprep.subr.mxu0 0.0
    %1285 = vmatpush1.msra.mxu0 %v1275
    %1286 = vmatprep.subr.mxu0 0.0
    %1287 = vmatpush1.msra.mxu0 %v1274
    %1288 = vmatprep.subr.mxu0 0.0
    %1289 = vmatpush1.msra.mxu0 %v1273
    %1290 = vmatprep.subr.mxu0 0.0
    %1291 = vmatpush1.msra.mxu0 %v1272
    %1292 = vmatprep.subr.mxu0 0.0
    %1293 = vmatpush1.msra.mxu0 %v1271
    %1294 = vmatprep.subr.mxu0 0.0
    %1295 = vmatpush1.msra.mxu0 %v1270
    %1296 = vmatprep.subr.mxu0 0.0
    %1297 = vmatpush1.msra.mxu0 %v1269
    %1298 = vmatprep.subr.mxu0 0.0
    %1299 = vmatpush1.msra.mxu0 %v1268
    %1300 = vmatprep.subr.mxu0 0.0
    %1301 = vmatpush1.msra.mxu0 %v1267
    %1302 = vmatprep.subr.mxu0 0.0
    %1303 = vmatpush1.msra.mxu0 %v1266
    %1304 = vmatprep.subr.mxu0 0.0
    %1305 = vmatpush1.msra.mxu0 %v1265
    %1306 = vmatprep.subr.mxu0 0.0
    %1307 = vmatpush1.msra.mxu0 %v1264
    %1308 = vmatprep.subr.mxu0 0.0
    %1309 = vmatpush1.msra.mxu0 %v1263
    %1310 = vmatprep.subr.mxu0 0.0
    %1311 = vmatpush1.msra.mxu0 %v1262
    %1312 = vmatprep.subr.mxu0 0.0
    %1313 = vmatpush1.msra.mxu0 %v1261
    %1314 = vmatprep.subr.mxu0 0.0
    %1315 = vmatpush2.msra.mxu0 0.0
    %1316 = vmatprep.subr.mxu0 0.0
    %1317 = vmatpush2.msra.mxu0 0.0
    %1318 = vmatprep.subr.mxu0 0.0
    %1319 = vmatpush2.msra.mxu0 0.0
    %1320 = vmatprep.subr.mxu0 0.0
    %1321 = vmatpush2.msra.mxu0 0.0
    %1322 = vmatprep.subr.mxu0 0.0
    %1323 = vmatpush2.msra.mxu0 0.0
    %1324 = vmatprep.subr.mxu0 0.0
    %1325 = vmatpush2.msra.mxu0 0.0
    %1326 = vmatprep.subr.mxu0 0.0
    %1327 = vmatpush2.msra.mxu0 0.0
    %1328 = vmatprep.subr.mxu0 0.0
    %1329 = vmatpush2.msra.mxu0 0.0
    %1330 = vmatprep.subr.mxu0 0.0
    %1331 = vmatpush2.msra.mxu0 0.0
    %1332 = vmatprep.subr.mxu0 0.0
    %1333 = vmatpush2.msra.mxu0 0.0
    %1334 = vmatprep.subr.mxu0 0.0
    %1335 = vmatpush2.msra.mxu0 0.0
    %1336 = vmatprep.subr.mxu0 0.0
    %1337 = vmatpush2.msra.mxu0 0.0
    %1338 = vmatprep.subr.mxu0 0.0
    %1339 = vmatpush2.msra.mxu0 0.0
    %1340 = vmatprep.subr.mxu0 0.0
    %1341 = vmatpush2.msra.mxu0 0.0
    %1342 = vmatprep.subr.mxu0 0.0
    %1343 = vmatpush2.msra.mxu0 0.0
    %1344 = vmatprep.subr.mxu0 0.0
    %1345 = vmatpush2.msra.mxu0 0.0
    %1346 = vmatprep.mubr.f32.mxu0 0.0
    %1347 = vmatmul.mubr.f32.gmra.mxu0 %v952
    %v1348 = vpop.f32.mrf.mxu0
    %v1349 = vadd.f32 %v1281, %v1348
    %v1350 = vpop.f32.mrf.mxu0
    %1351 = vmatprep.mubr.f32.mxu0 0.0
    %1352 = vmatmul.mubr.f32.gmra.mxu0 %v954
    %v1353 = vpop.f32.mrf.mxu0
    %v1354 = vadd.f32 %v1281, %v1353
    %v1355 = vpop.f32.mrf.mxu0
    %1356 = vmatprep.mubr.f32.mxu0 0.0
    %1357 = vmatmul.mubr.f32.gmra.mxu0 %v956
    %v1358 = vpop.f32.mrf.mxu0
    %v1359 = vadd.f32 %v1281, %v1358
    %v1360 = vpop.f32.mrf.mxu0
    %1361 = vmatprep.mubr.f32.mxu0 0.0
    %1362 = vmatmul.mubr.f32.gmra.mxu0 %v958
    %v1363 = vpop.f32.mrf.mxu0
    %v1364 = vadd.f32 %v1281, %v1363
    %v1365 = vpop.f32.mrf.mxu0
    %1366 = vmatprep.mubr.f32.mxu0 0.0
    %1367 = vmatmul.mubr.f32.gmra.mxu0 %v960
    %v1368 = vpop.f32.mrf.mxu0
    %v1369 = vadd.f32 %v1281, %v1368
    %v1370 = vpop.f32.mrf.mxu0
    %1371 = vmatprep.mubr.f32.mxu0 0.0
    %1372 = vmatmul.mubr.f32.gmra.mxu0 %v962
    %v1373 = vpop.f32.mrf.mxu0
    %v1374 = vadd.f32 %v1281, %v1373
    %v1375 = vpop.f32.mrf.mxu0
    %1376 = vmatprep.mubr.f32.mxu0 0.0
    %1377 = vmatmul.mubr.f32.gmra.mxu0 %v964
    %v1378 = vpop.f32.mrf.mxu0
    %v1379 = vadd.f32 %v1281, %v1378
    %v1380 = vpop.f32.mrf.mxu0
    %1381 = vmatprep.mubr.f32.mxu0 0.0
    %1382 = vmatmul.mubr.f32.gmra.mxu0 %v966
    %v1383 = vpop.f32.mrf.mxu0
    %v1384 = vadd.f32 %v1281, %v1383
    %v1385 = vpop.f32.mrf.mxu0
    %1386 = vmatprep.mubr.f32.mxu0 0.0
    %1387 = vmatmul.mubr.f32.gmra.mxu0 %v968
    %v1388 = vpop.f32.mrf.mxu0
    %v1389 = vadd.f32 %v1281, %v1388
    %v1390 = vpop.f32.mrf.mxu0
    %1391 = vmatprep.mubr.f32.mxu0 0.0
    %1392 = vmatmul.mubr.f32.gmra.mxu0 %v970
    %v1393 = vpop.f32.mrf.mxu0
    %v1394 = vadd.f32 %v1281, %v1393
    %v1395 = vpop.f32.mrf.mxu0
    %1396 = vmatprep.mubr.f32.mxu0 0.0
    %1397 = vmatmul.mubr.f32.gmra.mxu0 %v972
    %v1398 = vpop.f32.mrf.mxu0
    %v1399 = vadd.f32 %v1281, %v1398
    %v1400 = vpop.f32.mrf.mxu0
    %1401 = vmatprep.mubr.f32.mxu0 0.0
    %1402 = vmatmul.mubr.f32.gmra.mxu0 %v974
    %v1403 = vpop.f32.mrf.mxu0
    %v1404 = vadd.f32 %v1281, %v1403
    %v1405 = vpop.f32.mrf.mxu0
    %1406 = vmatprep.mubr.f32.mxu0 0.0
    %1407 = vmatmul.mubr.f32.gmra.mxu0 %v976
    %v1408 = vpop.f32.mrf.mxu0
    %v1409 = vadd.f32 %v1281, %v1408
    %v1410 = vpop.f32.mrf.mxu0
    %1411 = vmatprep.mubr.f32.mxu0 0.0
    %1412 = vmatmul.mubr.f32.gmra.mxu0 %v978
    %v1413 = vpop.f32.mrf.mxu0
    %v1414 = vadd.f32 %v1281, %v1413
    %v1415 = vpop.f32.mrf.mxu0
    %1416 = vmatprep.mubr.f32.mxu0 0.0
    %1417 = vmatmul.mubr.f32.gmra.mxu0 %v980
    %v1418 = vpop.f32.mrf.mxu0
    %v1419 = vadd.f32 %v1281, %v1418
    %v1420 = vpop.f32.mrf.mxu0
    %1421 = vmatprep.mubr.f32.mxu0 0.0
    %1422 = vmatmul.mubr.f32.gmra.mxu0 %v982
    %v1423 = vpop.f32.mrf.mxu0
    %v1424 = vadd.f32 %v1281, %v1423
    %v1425 = vpop.f32.mrf.mxu0
    %1426 = vmatprep.mubr.f32.mxu0 0.0
    %1427 = vmatmul.mubr.f32.gmra.mxu0 %v984
    %v1428 = vpop.f32.mrf.mxu0
    %v1429 = vadd.f32 %v1281, %v1428
    %v1430 = vpop.f32.mrf.mxu0
    %1431 = vmatprep.mubr.f32.mxu0 0.0
    %1432 = vmatmul.mubr.f32.gmra.mxu0 %v986
    %v1433 = vpop.f32.mrf.mxu0
    %v1434 = vadd.f32 %v1281, %v1433
    %v1435 = vpop.f32.mrf.mxu0
    %1436 = vmatprep.mubr.f32.mxu0 0.0
    %1437 = vmatmul.mubr.f32.gmra.mxu0 %v988
    %v1438 = vpop.f32.mrf.mxu0
    %v1439 = vadd.f32 %v1281, %v1438
    %v1440 = vpop.f32.mrf.mxu0
    %1441 = vmatprep.mubr.f32.mxu0 0.0
    %1442 = vmatmul.mubr.f32.gmra.mxu0 %v990
    %v1443 = vpop.f32.mrf.mxu0
    %v1444 = vadd.f32 %v1281, %v1443
    %v1445 = vpop.f32.mrf.mxu0
    %1446 = vmatprep.mubr.f32.mxu0 0.0
    %1447 = vmatmul.mubr.f32.gmra.mxu0 %v992
    %v1448 = vpop.f32.mrf.mxu0
    %v1449 = vadd.f32 %v1281, %v1448
    %v1450 = vpop.f32.mrf.mxu0
    %1451 = vmatprep.mubr.f32.mxu0 0.0
    %1452 = vmatmul.mubr.f32.gmra.mxu0 %v994
    %v1453 = vpop.f32.mrf.mxu0
    %v1454 = vadd.f32 %v1281, %v1453
    %v1455 = vpop.f32.mrf.mxu0
    %1456 = vmatprep.mubr.f32.mxu0 0.0
    %1457 = vmatmul.mubr.f32.gmra.mxu0 %v996
    %v1458 = vpop.f32.mrf.mxu0
    %v1459 = vadd.f32 %v1281, %v1458
    %v1460 = vpop.f32.mrf.mxu0
    %1461 = vmatprep.mubr.f32.mxu0 0.0
    %1462 = vmatmul.mubr.f32.gmra.mxu0 %v998
    %v1463 = vpop.f32.mrf.mxu0
    %v1464 = vadd.f32 %v1281, %v1463
    %v1465 = vpop.f32.mrf.mxu0
    %1466 = vmatprep.mubr.f32.mxu0 0.0
    %1467 = vmatmul.mubr.f32.gmra.mxu0 %v1000
    %v1468 = vpop.f32.mrf.mxu0
    %v1469 = vadd.f32 %v1281, %v1468
    %v1470 = vpop.f32.mrf.mxu0
    %1471 = vmatprep.mubr.f32.mxu0 0.0
    %1472 = vmatmul.mubr.f32.gmra.mxu0 %v1002
    %v1473 = vpop.f32.mrf.mxu0
    %v1474 = vadd.f32 %v1281, %v1473
    %v1475 = vpop.f32.mrf.mxu0
    %1476 = vmatprep.mubr.f32.mxu0 0.0
    %1477 = vmatmul.mubr.f32.gmra.mxu0 %v1004
    %v1478 = vpop.f32.mrf.mxu0
    %v1479 = vadd.f32 %v1281, %v1478
    %v1480 = vpop.f32.mrf.mxu0
    %1481 = vmatprep.mubr.f32.mxu0 0.0
    %1482 = vmatmul.mubr.f32.gmra.mxu0 %v1006
    %v1483 = vpop.f32.mrf.mxu0
    %v1484 = vadd.f32 %v1281, %v1483
    %v1485 = vpop.f32.mrf.mxu0
    %1486 = vmatprep.mubr.f32.mxu0 0.0
    %1487 = vmatmul.mubr.f32.gmra.mxu0 %v1008
    %v1488 = vpop.f32.mrf.mxu0
    %v1489 = vadd.f32 %v1281, %v1488
    %v1490 = vpop.f32.mrf.mxu0
    %1491 = vmatprep.mubr.f32.mxu0 0.0
    %1492 = vmatmul.mubr.f32.gmra.mxu0 %v1010
    %v1493 = vpop.f32.mrf.mxu0
    %v1494 = vadd.f32 %v1281, %v1493
    %v1495 = vpop.f32.mrf.mxu0
    %1496 = vmatprep.mubr.f32.mxu0 0.0
    %1497 = vmatmul.mubr.f32.gmra.mxu0 %v1012
    %v1498 = vpop.f32.mrf.mxu0
    %v1499 = vadd.f32 %v1281, %v1498
    %v1500 = vpop.f32.mrf.mxu0
    %1501 = vmatprep.mubr.f32.mxu0 0.0
    %1502 = vmatmul.mubr.f32.gmra.mxu0 %v1014
    %v1503 = vpop.f32.mrf.mxu0
    %v1504 = vadd.f32 %v1281, %v1503
    %v1505 = vpop.f32.mrf.mxu0
    %1506 = vdwg.mxu0
    %v1507 = vmul.f32 %v1349, 1.442695
    %v1508 = vpow.pop %v1507
    %v1509 = vmul.f32 %v1354, 1.442695
    %v1510 = vpow.pop %v1509
    %v1511 = vmul.f32 %v1359, 1.442695
    %v1512 = vpow.pop %v1511
    %v1513 = vmul.f32 %v1364, 1.442695
    %v1514 = vpow.pop %v1513
    %v1515 = vmul.f32 %v1369, 1.442695
    %v1516 = vpow.pop %v1515
    %v1517 = vmul.f32 %v1374, 1.442695
    %v1518 = vpow.pop %v1517
    %v1519 = vmul.f32 %v1379, 1.442695
    %v1520 = vpow.pop %v1519
    %v1521 = vmul.f32 %v1384, 1.442695
    %v1522 = vpow.pop %v1521
    %v1523 = vmul.f32 %v1389, 1.442695
    %v1524 = vpow.pop %v1523
    %v1525 = vmul.f32 %v1394, 1.442695
    %v1526 = vpow.pop %v1525
    %v1527 = vmul.f32 %v1399, 1.442695
    %v1528 = vpow.pop %v1527
    %v1529 = vmul.f32 %v1404, 1.442695
    %v1530 = vpow.pop %v1529
    %v1531 = vmul.f32 %v1409, 1.442695
    %v1532 = vpow.pop %v1531
    %v1533 = vmul.f32 %v1414, 1.442695
    %v1534 = vpow.pop %v1533
    %v1535 = vmul.f32 %v1419, 1.442695
    %v1536 = vpow.pop %v1535
    %v1537 = vmul.f32 %v1424, 1.442695
    %v1538 = vpow.pop %v1537
    %v1539 = vmul.f32 %v1429, 1.442695
    %v1540 = vpow.pop %v1539
    %v1541 = vmul.f32 %v1434, 1.442695
    %v1542 = vpow.pop %v1541
    %v1543 = vmul.f32 %v1439, 1.442695
    %v1544 = vpow.pop %v1543
    %v1545 = vmul.f32 %v1444, 1.442695
    %v1546 = vpow.pop %v1545
    %v1547 = vmul.f32 %v1449, 1.442695
    %v1548 = vpow.pop %v1547
    %v1549 = vmul.f32 %v1454, 1.442695
    %v1550 = vpow.pop %v1549
    %v1551 = vmul.f32 %v1459, 1.442695
    %v1552 = vpow.pop %v1551
    %v1553 = vmul.f32 %v1464, 1.442695
    %v1554 = vpow.pop %v1553
    %v1555 = vmul.f32 %v1469, 1.442695
    %v1556 = vpow.pop %v1555
    %v1557 = vmul.f32 %v1474, 1.442695
    %v1558 = vpow.pop %v1557
    %v1559 = vmul.f32 %v1479, 1.442695
    %v1560 = vpow.pop %v1559
    %v1561 = vmul.f32 %v1484, 1.442695
    %v1562 = vpow.pop %v1561
    %v1563 = vmul.f32 %v1489, 1.442695
    %v1564 = vpow.pop %v1563
    %v1565 = vmul.f32 %v1494, 1.442695
    %v1566 = vpow.pop %v1565
    %v1567 = vmul.f32 %v1499, 1.442695
    %v1568 = vpow.pop %v1567
    %v1569 = vmul.f32 %v1504, 1.442695
    %v1570 = vpow.pop %v1569
    %v1571 = vadd.f32 %v1508, 1e-06
    %v1572 = vadd.f32 %v1510, 1e-06
    %v1573 = vadd.f32 %v1512, 1e-06
    %v1574 = vadd.f32 %v1514, 1e-06
    %v1575 = vadd.f32 %v1516, 1e-06
    %v1576 = vadd.f32 %v1518, 1e-06
    %v1577 = vadd.f32 %v1520, 1e-06
    %v1578 = vadd.f32 %v1522, 1e-06
    %v1579 = vadd.f32 %v1524, 1e-06
    %v1580 = vadd.f32 %v1526, 1e-06
    %v1581 = vadd.f32 %v1528, 1e-06
    %v1582 = vadd.f32 %v1530, 1e-06
    %v1583 = vadd.f32 %v1532, 1e-06
    %v1584 = vadd.f32 %v1534, 1e-06
    %v1585 = vadd.f32 %v1536, 1e-06
    %v1586 = vadd.f32 %v1538, 1e-06
    %v1587 = vadd.f32 %v1540, 1e-06
    %v1588 = vadd.f32 %v1542, 1e-06
    %v1589 = vadd.f32 %v1544, 1e-06
    %v1590 = vadd.f32 %v1546, 1e-06
    %v1591 = vadd.f32 %v1548, 1e-06
    %v1592 = vadd.f32 %v1550, 1e-06
    %v1593 = vadd.f32 %v1552, 1e-06
    %v1594 = vadd.f32 %v1554, 1e-06
    %v1595 = vadd.f32 %v1556, 1e-06
    %v1596 = vadd.f32 %v1558, 1e-06
    %v1597 = vadd.f32 %v1560, 1e-06
    %v1598 = vadd.f32 %v1562, 1e-06
    %v1599 = vadd.f32 %v1564, 1e-06
    %v1600 = vadd.f32 %v1566, 1e-06
    %v1601 = vadd.f32 %v1568, 1e-06
    %v1602 = vadd.f32 %v1570, 1e-06
    %v1603 = vld [vmem:[%s1] sm:$0xff]
    %v1604 = vld [vmem:[%s1 + $0x8] sm:$0xff]
    %v1605 = vld [vmem:[%s1 + $0x10] sm:$0xff]
    %v1606 = vld [vmem:[%s1 + $0x18] sm:$0xff]
    %v1607 = vld [vmem:[%s1 + $0x20] sm:$0xff]
    %v1608 = vld [vmem:[%s1 + $0x28] sm:$0xff]
    %v1609 = vld [vmem:[%s1 + $0x30] sm:$0xff]
    %v1610 = vld [vmem:[%s1 + $0x38] sm:$0xff]
    %v1611 = vld [vmem:[%s1 + $0x40] sm:$0xff]
    %v1612 = vld [vmem:[%s1 + $0x48] sm:$0xff]
    %v1613 = vld [vmem:[%s1 + $0x50] sm:$0xff]
    %v1614 = vld [vmem:[%s1 + $0x58] sm:$0xff]
    %v1615 = vld [vmem:[%s1 + $0x60] sm:$0xff]
    %v1616 = vld [vmem:[%s1 + $0x68] sm:$0xff]
    %v1617 = vld [vmem:[%s1 + $0x70] sm:$0xff]
    %v1618 = vld [vmem:[%s1 + $0x78] sm:$0xff]
    %v1619 = vld [vmem:[%s1 + $0x80] sm:$0xff]
    %v1620 = vld [vmem:[%s1 + $0x88] sm:$0xff]
    %v1621 = vld [vmem:[%s1 + $0x90] sm:$0xff]
    %v1622 = vld [vmem:[%s1 + $0x98] sm:$0xff]
    %v1623 = vld [vmem:[%s1 + $0xa0] sm:$0xff]
    %v1624 = vld [vmem:[%s1 + $0xa8] sm:$0xff]
    %v1625 = vld [vmem:[%s1 + $0xb0] sm:$0xff]
    %v1626 = vld [vmem:[%s1 + $0xb8] sm:$0xff]
    %v1627 = vld [vmem:[%s1 + $0xc0] sm:$0xff]
    %v1628 = vld [vmem:[%s1 + $0xc8] sm:$0xff]
    %v1629 = vld [vmem:[%s1 + $0xd0] sm:$0xff]
    %v1630 = vld [vmem:[%s1 + $0xd8] sm:$0xff]
    %v1631 = vld [vmem:[%s1 + $0xe0] sm:$0xff]
    %v1632 = vld [vmem:[%s1 + $0xe8] sm:$0xff]
    %v1633 = vld [vmem:[%s1 + $0xf0] sm:$0xff]
    %v1634 = vld [vmem:[%s1 + $0xf8] sm:$0xff]
    %v1635 = vmul.f32 %v1571, %v1603
    %v1636 = vmul.f32 %v1572, %v1604
    %v1637 = vmul.f32 %v1573, %v1605
    %v1638 = vmul.f32 %v1574, %v1606
    %v1639 = vmul.f32 %v1575, %v1607
    %v1640 = vmul.f32 %v1576, %v1608
    %v1641 = vmul.f32 %v1577, %v1609
    %v1642 = vmul.f32 %v1578, %v1610
    %v1643 = vmul.f32 %v1579, %v1611
    %v1644 = vmul.f32 %v1580, %v1612
    %v1645 = vmul.f32 %v1581, %v1613
    %v1646 = vmul.f32 %v1582, %v1614
    %v1647 = vmul.f32 %v1583, %v1615
    %v1648 = vmul.f32 %v1584, %v1616
    %v1649 = vmul.f32 %v1585, %v1617
    %v1650 = vmul.f32 %v1586, %v1618
    %v1651 = vmul.f32 %v1587, %v1619
    %v1652 = vmul.f32 %v1588, %v1620
    %v1653 = vmul.f32 %v1589, %v1621
    %v1654 = vmul.f32 %v1590, %v1622
    %v1655 = vmul.f32 %v1591, %v1623
    %v1656 = vmul.f32 %v1592, %v1624
    %v1657 = vmul.f32 %v1593, %v1625
    %v1658 = vmul.f32 %v1594, %v1626
    %v1659 = vmul.f32 %v1595, %v1627
    %v1660 = vmul.f32 %v1596, %v1628
    %v1661 = vmul.f32 %v1597, %v1629
    %v1662 = vmul.f32 %v1598, %v1630
    %v1663 = vmul.f32 %v1599, %v1631
    %v1664 = vmul.f32 %v1600, %v1632
    %v1665 = vmul.f32 %v1601, %v1633
    %v1666 = vmul.f32 %v1602, %v1634
    %v1667 = vadd.f32 %v1103, %v1635
    %v1668 = vadd.f32 %v1108, %v1636
    %v1669 = vadd.f32 %v1113, %v1637
    %v1670 = vadd.f32 %v1118, %v1638
    %v1671 = vadd.f32 %v1123, %v1639
    %v1672 = vadd.f32 %v1128, %v1640
    %v1673 = vadd.f32 %v1133, %v1641
    %v1674 = vadd.f32 %v1138, %v1642
    %v1675 = vadd.f32 %v1143, %v1643
    %v1676 = vadd.f32 %v1148, %v1644
    %v1677 = vadd.f32 %v1153, %v1645
    %v1678 = vadd.f32 %v1158, %v1646
    %v1679 = vadd.f32 %v1163, %v1647
    %v1680 = vadd.f32 %v1168, %v1648
    %v1681 = vadd.f32 %v1173, %v1649
    %v1682 = vadd.f32 %v1178, %v1650
    %v1683 = vadd.f32 %v1183, %v1651
    %v1684 = vadd.f32 %v1188, %v1652
    %v1685 = vadd.f32 %v1193, %v1653
    %v1686 = vadd.f32 %v1198, %v1654
    %v1687 = vadd.f32 %v1203, %v1655
    %v1688 = vadd.f32 %v1208, %v1656
    %v1689 = vadd.f32 %v1213, %v1657
    %v1690 = vadd.f32 %v1218, %v1658
    %v1691 = vadd.f32 %v1223, %v1659
    %v1692 = vadd.f32 %v1228, %v1660
    %v1693 = vadd.f32 %v1233, %v1661
    %v1694 = vadd.f32 %v1238, %v1662
    %v1695 = vadd.f32 %v1243, %v1663
    %v1696 = vadd.f32 %v1248, %v1664
    %v1697 = vadd.f32 %v1253, %v1665
    %v1698 = vadd.f32 %v1258, %v1666
    %v1699 = vlaneseq
    %v1700 = vand.u32 %v1699, 127
    %v1701 = vmul.f32 %v1571, %v1571
    %v1702 = vmul.f32 %v1572, %v1572
    %v1703 = vmul.f32 %v1573, %v1573
    %v1704 = vmul.f32 %v1574, %v1574
    %v1705 = vmul.f32 %v1575, %v1575
    %v1706 = vmul.f32 %v1576, %v1576
    %v1707 = vmul.f32 %v1577, %v1577
    %v1708 = vmul.f32 %v1578, %v1578
    %v1709 = vmul.f32 %v1579, %v1579
    %v1710 = vmul.f32 %v1580, %v1580
    %v1711 = vmul.f32 %v1581, %v1581
    %v1712 = vmul.f32 %v1582, %v1582
    %v1713 = vmul.f32 %v1583, %v1583
    %v1714 = vmul.f32 %v1584, %v1584
    %v1715 = vmul.f32 %v1585, %v1585
    %v1716 = vmul.f32 %v1586, %v1586
    %v1717 = vmul.f32 %v1587, %v1587
    %v1718 = vmul.f32 %v1588, %v1588
    %v1719 = vmul.f32 %v1589, %v1589
    %v1720 = vmul.f32 %v1590, %v1590
    %v1721 = vmul.f32 %v1591, %v1591
    %v1722 = vmul.f32 %v1592, %v1592
    %v1723 = vmul.f32 %v1593, %v1593
    %v1724 = vmul.f32 %v1594, %v1594
    %v1725 = vmul.f32 %v1595, %v1595
    %v1726 = vmul.f32 %v1596, %v1596
    %v1727 = vmul.f32 %v1597, %v1597
    %v1728 = vmul.f32 %v1598, %v1598
    %v1729 = vmul.f32 %v1599, %v1599
    %v1730 = vmul.f32 %v1600, %v1600
    %v1731 = vmul.f32 %v1601, %v1601
    %v1732 = vmul.f32 %v1602, %v1602
    %v1733 = vmul.f32 %v1103, %v1103
    %v1734 = vmul.f32 %v1108, %v1108
    %v1735 = vmul.f32 %v1113, %v1113
    %v1736 = vmul.f32 %v1118, %v1118
    %v1737 = vmul.f32 %v1123, %v1123
    %v1738 = vmul.f32 %v1128, %v1128
    %v1739 = vmul.f32 %v1133, %v1133
    %v1740 = vmul.f32 %v1138, %v1138
    %v1741 = vmul.f32 %v1143, %v1143
    %v1742 = vmul.f32 %v1148, %v1148
    %v1743 = vmul.f32 %v1153, %v1153
    %v1744 = vmul.f32 %v1158, %v1158
    %v1745 = vmul.f32 %v1163, %v1163
    %v1746 = vmul.f32 %v1168, %v1168
    %v1747 = vmul.f32 %v1173, %v1173
    %v1748 = vmul.f32 %v1178, %v1178
    %v1749 = vmul.f32 %v1183, %v1183
    %v1750 = vmul.f32 %v1188, %v1188
    %v1751 = vmul.f32 %v1193, %v1193
    %v1752 = vmul.f32 %v1198, %v1198
    %v1753 = vmul.f32 %v1203, %v1203
    %v1754 = vmul.f32 %v1208, %v1208
    %v1755 = vmul.f32 %v1213, %v1213
    %v1756 = vmul.f32 %v1218, %v1218
    %v1757 = vmul.f32 %v1223, %v1223
    %v1758 = vmul.f32 %v1228, %v1228
    %v1759 = vmul.f32 %v1233, %v1233
    %v1760 = vmul.f32 %v1238, %v1238
    %v1761 = vmul.f32 %v1243, %v1243
    %v1762 = vmul.f32 %v1248, %v1248
    %v1763 = vmul.f32 %v1253, %v1253
    %v1764 = vmul.f32 %v1258, %v1258
    %v1765 = vadd.f32 %v1701, %v1733
    %v1766 = vadd.f32 %v1702, %v1734
    %v1767 = vadd.f32 %v1703, %v1735
    %v1768 = vadd.f32 %v1704, %v1736
    %v1769 = vadd.f32 %v1705, %v1737
    %v1770 = vadd.f32 %v1706, %v1738
    %v1771 = vadd.f32 %v1707, %v1739
    %v1772 = vadd.f32 %v1708, %v1740
    %v1773 = vadd.f32 %v1709, %v1741
    %v1774 = vadd.f32 %v1710, %v1742
    %v1775 = vadd.f32 %v1711, %v1743
    %v1776 = vadd.f32 %v1712, %v1744
    %v1777 = vadd.f32 %v1713, %v1745
    %v1778 = vadd.f32 %v1714, %v1746
    %v1779 = vadd.f32 %v1715, %v1747
    %v1780 = vadd.f32 %v1716, %v1748
    %v1781 = vadd.f32 %v1717, %v1749
    %v1782 = vadd.f32 %v1718, %v1750
    %v1783 = vadd.f32 %v1719, %v1751
    %v1784 = vadd.f32 %v1720, %v1752
    %v1785 = vadd.f32 %v1721, %v1753
    %v1786 = vadd.f32 %v1722, %v1754
    %v1787 = vadd.f32 %v1723, %v1755
    %v1788 = vadd.f32 %v1724, %v1756
    %v1789 = vadd.f32 %v1725, %v1757
    %v1790 = vadd.f32 %v1726, %v1758
    %v1791 = vadd.f32 %v1727, %v1759
    %v1792 = vadd.f32 %v1728, %v1760
    %v1793 = vadd.f32 %v1729, %v1761
    %v1794 = vadd.f32 %v1730, %v1762
    %v1795 = vadd.f32 %v1731, %v1763
    %v1796 = vadd.f32 %v1732, %v1764
    %v1797 = vlog2.pop %v1571
    %v1798 = vmul.f32 %v1797, 0.6931472
    %v1799 = vlog2.pop %v1572
    %v1800 = vmul.f32 %v1799, 0.6931472
    %v1801 = vlog2.pop %v1573
    %v1802 = vmul.f32 %v1801, 0.6931472
    %v1803 = vlog2.pop %v1574
    %v1804 = vmul.f32 %v1803, 0.6931472
    %v1805 = vlog2.pop %v1575
    %v1806 = vmul.f32 %v1805, 0.6931472
    %v1807 = vlog2.pop %v1576
    %v1808 = vmul.f32 %v1807, 0.6931472
    %v1809 = vlog2.pop %v1577
    %v1810 = vmul.f32 %v1809, 0.6931472
    %v1811 = vlog2.pop %v1578
    %v1812 = vmul.f32 %v1811, 0.6931472
    %v1813 = vlog2.pop %v1579
    %v1814 = vmul.f32 %v1813, 0.6931472
    %v1815 = vlog2.pop %v1580
    %v1816 = vmul.f32 %v1815, 0.6931472
    %v1817 = vlog2.pop %v1581
    %v1818 = vmul.f32 %v1817, 0.6931472
    %v1819 = vlog2.pop %v1582
    %v1820 = vmul.f32 %v1819, 0.6931472
    %v1821 = vlog2.pop %v1583
    %v1822 = vmul.f32 %v1821, 0.6931472
    %v1823 = vlog2.pop %v1584
    %v1824 = vmul.f32 %v1823, 0.6931472
    %v1825 = vlog2.pop %v1585
    %v1826 = vmul.f32 %v1825, 0.6931472
    %v1827 = vlog2.pop %v1586
    %v1828 = vmul.f32 %v1827, 0.6931472
    %v1829 = vlog2.pop %v1587
    %v1830 = vmul.f32 %v1829, 0.6931472
    %v1831 = vlog2.pop %v1588
    %v1832 = vmul.f32 %v1831, 0.6931472
    %v1833 = vlog2.pop %v1589
    %v1834 = vmul.f32 %v1833, 0.6931472
    %v1835 = vlog2.pop %v1590
    %v1836 = vmul.f32 %v1835, 0.6931472
    %v1837 = vlog2.pop %v1591
    %v1838 = vmul.f32 %v1837, 0.6931472
    %v1839 = vlog2.pop %v1592
    %v1840 = vmul.f32 %v1839, 0.6931472
    %v1841 = vlog2.pop %v1593
    %v1842 = vmul.f32 %v1841, 0.6931472
    %v1843 = vlog2.pop %v1594
    %v1844 = vmul.f32 %v1843, 0.6931472
    %v1845 = vlog2.pop %v1595
    %v1846 = vmul.f32 %v1845, 0.6931472
    %v1847 = vlog2.pop %v1596
    %v1848 = vmul.f32 %v1847, 0.6931472
    %v1849 = vlog2.pop %v1597
    %v1850 = vmul.f32 %v1849, 0.6931472
    %v1851 = vlog2.pop %v1598
    %v1852 = vmul.f32 %v1851, 0.6931472
    %v1853 = vlog2.pop %v1599
    %v1854 = vmul.f32 %v1853, 0.6931472
    %v1855 = vlog2.pop %v1600
    %v1856 = vmul.f32 %v1855, 0.6931472
    %v1857 = vlog2.pop %v1601
    %v1858 = vmul.f32 %v1857, 0.6931472
    %v1859 = vlog2.pop %v1602
    %v1860 = vmul.f32 %v1859, 0.6931472
    %v1861 = vsub.f32 %v1765, %v1798
    %v1862 = vsub.f32 %v1766, %v1800
    %v1863 = vsub.f32 %v1767, %v1802
    %v1864 = vsub.f32 %v1768, %v1804
    %v1865 = vsub.f32 %v1769, %v1806
    %v1866 = vsub.f32 %v1770, %v1808
    %v1867 = vsub.f32 %v1771, %v1810
    %v1868 = vsub.f32 %v1772, %v1812
    %v1869 = vsub.f32 %v1773, %v1814
    %v1870 = vsub.f32 %v1774, %v1816
    %v1871 = vsub.f32 %v1775, %v1818
    %v1872 = vsub.f32 %v1776, %v1820
    %v1873 = vsub.f32 %v1777, %v1822
    %v1874 = vsub.f32 %v1778, %v1824
    %v1875 = vsub.f32 %v1779, %v1826
    %v1876 = vsub.f32 %v1780, %v1828
    %v1877 = vsub.f32 %v1781, %v1830
    %v1878 = vsub.f32 %v1782, %v1832
    %v1879 = vsub.f32 %v1783, %v1834
    %v1880 = vsub.f32 %v1784, %v1836
    %v1881 = vsub.f32 %v1785, %v1838
    %v1882 = vsub.f32 %v1786, %v1840
    %v1883 = vsub.f32 %v1787, %v1842
    %v1884 = vsub.f32 %v1788, %v1844
    %v1885 = vsub.f32 %v1789, %v1846
    %v1886 = vsub.f32 %v1790, %v1848
    %v1887 = vsub.f32 %v1791, %v1850
    %v1888 = vsub.f32 %v1792, %v1852
    %v1889 = vsub.f32 %v1793, %v1854
    %v1890 = vsub.f32 %v1794, %v1856
    %v1891 = vsub.f32 %v1795, %v1858
    %v1892 = vsub.f32 %v1796, %v1860
    %v1893 = vsub.f32 %v1861, 0.5
    %v1894 = vsub.f32 %v1862, 0.5
    %v1895 = vsub.f32 %v1863, 0.5
    %v1896 = vsub.f32 %v1864, 0.5
    %v1897 = vsub.f32 %v1865, 0.5
    %v1898 = vsub.f32 %v1866, 0.5
    %v1899 = vsub.f32 %v1867, 0.5
    %v1900 = vsub.f32 %v1868, 0.5
    %v1901 = vsub.f32 %v1869, 0.5
    %v1902 = vsub.f32 %v1870, 0.5
    %v1903 = vsub.f32 %v1871, 0.5
    %v1904 = vsub.f32 %v1872, 0.5
    %v1905 = vsub.f32 %v1873, 0.5
    %v1906 = vsub.f32 %v1874, 0.5
    %v1907 = vsub.f32 %v1875, 0.5
    %v1908 = vsub.f32 %v1876, 0.5
    %v1909 = vsub.f32 %v1877, 0.5
    %v1910 = vsub.f32 %v1878, 0.5
    %v1911 = vsub.f32 %v1879, 0.5
    %v1912 = vsub.f32 %v1880, 0.5
    %v1913 = vsub.f32 %v1881, 0.5
    %v1914 = vsub.f32 %v1882, 0.5
    %v1915 = vsub.f32 %v1883, 0.5
    %v1916 = vsub.f32 %v1884, 0.5
    %v1917 = vsub.f32 %v1885, 0.5
    %v1918 = vsub.f32 %v1886, 0.5
    %v1919 = vsub.f32 %v1887, 0.5
    %v1920 = vsub.f32 %v1888, 0.5
    %v1921 = vsub.f32 %v1889, 0.5
    %v1922 = vsub.f32 %v1890, 0.5
    %v1923 = vsub.f32 %v1891, 0.5
    %v1924 = vsub.f32 %v1892, 0.5
    %vm1925 = vcmp.lt.s32.totalorder %v1700, 8
    %v1926 = vsel %vm1925, %v1893, 0.0
    %v1927 = vsel %vm1925, %v1894, 0.0
    %v1928 = vsel %vm1925, %v1895, 0.0
    %v1929 = vsel %vm1925, %v1896, 0.0
    %v1930 = vsel %vm1925, %v1897, 0.0
    %v1931 = vsel %vm1925, %v1898, 0.0
    %v1932 = vsel %vm1925, %v1899, 0.0
    %v1933 = vsel %vm1925, %v1900, 0.0
    %v1934 = vsel %vm1925, %v1901, 0.0
    %v1935 = vsel %vm1925, %v1902, 0.0
    %v1936 = vsel %vm1925, %v1903, 0.0
    %v1937 = vsel %vm1925, %v1904, 0.0
    %v1938 = vsel %vm1925, %v1905, 0.0
    %v1939 = vsel %vm1925, %v1906, 0.0
    %v1940 = vsel %vm1925, %v1907, 0.0
    %v1941 = vsel %vm1925, %v1908, 0.0
    %v1942 = vsel %vm1925, %v1909, 0.0
    %v1943 = vsel %vm1925, %v1910, 0.0
    %v1944 = vsel %vm1925, %v1911, 0.0
    %v1945 = vsel %vm1925, %v1912, 0.0
    %v1946 = vsel %vm1925, %v1913, 0.0
    %v1947 = vsel %vm1925, %v1914, 0.0
    %v1948 = vsel %vm1925, %v1915, 0.0
    %v1949 = vsel %vm1925, %v1916, 0.0
    %v1950 = vsel %vm1925, %v1917, 0.0
    %v1951 = vsel %vm1925, %v1918, 0.0
    %v1952 = vsel %vm1925, %v1919, 0.0
    %v1953 = vsel %vm1925, %v1920, 0.0
    %v1954 = vsel %vm1925, %v1921, 0.0
    %v1955 = vsel %vm1925, %v1922, 0.0
    %v1956 = vsel %vm1925, %v1923, 0.0
    %v1957 = vsel %vm1925, %v1924, 0.0
    %v1958 = vadd.f32 %v1926, %v1927
    %v1959 = vadd.f32 %v1958, %v1928
    %v1960 = vadd.f32 %v1959, %v1929
    %v1961 = vadd.f32 %v1960, %v1930
    %v1962 = vadd.f32 %v1961, %v1931
    %v1963 = vadd.f32 %v1962, %v1932
    %v1964 = vadd.f32 %v1963, %v1933
    %v1965 = vadd.f32 %v1964, %v1934
    %v1966 = vadd.f32 %v1965, %v1935
    %v1967 = vadd.f32 %v1966, %v1936
    %v1968 = vadd.f32 %v1967, %v1937
    %v1969 = vadd.f32 %v1968, %v1938
    %v1970 = vadd.f32 %v1969, %v1939
    %v1971 = vadd.f32 %v1970, %v1940
    %v1972 = vadd.f32 %v1971, %v1941
    %v1973 = vadd.f32 %v1972, %v1942
    %v1974 = vadd.f32 %v1973, %v1943
    %v1975 = vadd.f32 %v1974, %v1944
    %v1976 = vadd.f32 %v1975, %v1945
    %v1977 = vadd.f32 %v1976, %v1946
    %v1978 = vadd.f32 %v1977, %v1947
    %v1979 = vadd.f32 %v1978, %v1948
    %v1980 = vadd.f32 %v1979, %v1949
    %v1981 = vadd.f32 %v1980, %v1950
    %v1982 = vadd.f32 %v1981, %v1951
    %v1983 = vadd.f32 %v1982, %v1952
    %v1984 = vadd.f32 %v1983, %v1953
    %v1985 = vadd.f32 %v1984, %v1954
    %v1986 = vadd.f32 %v1985, %v1955
    %v1987 = vadd.f32 %v1986, %v1956
    %v1988 = vadd.f32 %v1987, %v1957
    %1989 = vadd.xlane.f32.xlu0 %v1988
    %v1990 = vpop.xlane.xlu0 %1989
    %v1991 = vrot.slane %v1990, 4
    %v1992 = vadd.f32 %v1990, %v1991
    %v1993 = vrot.slane %v1992, 2
    %v1994 = vadd.f32 %v1992, %v1993
    %v1995 = vrot.slane %v1994, 1
    %v1996 = vadd.f32 %v1994, %v1995
    %s1997 = vtos %v1996
    %s1998 = scalar_lea.smem [#allocation5], 0
    %1999 = sst [smem:[%s1998]] %s1997
    %v2000 = vld [vmem:[%s2 + $0x280] sm:$0xff]
    %v2001 = vld [vmem:[%s2 + $0x288] sm:$0xff]
    %v2002 = vld [vmem:[%s2 + $0x290] sm:$0xff]
    %v2003 = vld [vmem:[%s2 + $0x298] sm:$0xff]
    %v2004 = vld [vmem:[%s2 + $0x2a0] sm:$0xff]
    %v2005 = vld [vmem:[%s2 + $0x2a8] sm:$0xff]
    %v2006 = vld [vmem:[%s2 + $0x2b0] sm:$0xff]
    %v2007 = vld [vmem:[%s2 + $0x2b8] sm:$0xff]
    %v2008 = vld [vmem:[%s2 + $0x2c0] sm:$0xff]
    %v2009 = vld [vmem:[%s2 + $0x2c8] sm:$0xff]
    %v2010 = vld [vmem:[%s2 + $0x2d0] sm:$0xff]
    %v2011 = vld [vmem:[%s2 + $0x2d8] sm:$0xff]
    %v2012 = vld [vmem:[%s2 + $0x2e0] sm:$0xff]
    %v2013 = vld [vmem:[%s2 + $0x2e8] sm:$0xff]
    %v2014 = vld [vmem:[%s2 + $0x2f0] sm:$0xff]
    %v2015 = vld [vmem:[%s2 + $0x2f8] sm:$0xff]
    %v2016 = vld [vmem:[%s3 + $0x5] sm:$0x1]
    %v2017 = vlaneseq
    %v2018 = vshrl.u32 %v2017, 7
    %v2019 = vsub.s32 0, %v2018
    %v2020 = vrot.slane %v2016, %v2019
    %2021 = vmatprep.subr.mxu0 0.0
    %2022 = vmatpush1.msra.mxu0 %v2015
    %2023 = vmatprep.subr.mxu0 0.0
    %2024 = vmatpush1.msra.mxu0 %v2014
    %2025 = vmatprep.subr.mxu0 0.0
    %2026 = vmatpush1.msra.mxu0 %v2013
    %2027 = vmatprep.subr.mxu0 0.0
    %2028 = vmatpush1.msra.mxu0 %v2012
    %2029 = vmatprep.subr.mxu0 0.0
    %2030 = vmatpush1.msra.mxu0 %v2011
    %2031 = vmatprep.subr.mxu0 0.0
    %2032 = vmatpush1.msra.mxu0 %v2010
    %2033 = vmatprep.subr.mxu0 0.0
    %2034 = vmatpush1.msra.mxu0 %v2009
    %2035 = vmatprep.subr.mxu0 0.0
    %2036 = vmatpush1.msra.mxu0 %v2008
    %2037 = vmatprep.subr.mxu0 0.0
    %2038 = vmatpush1.msra.mxu0 %v2007
    %2039 = vmatprep.subr.mxu0 0.0
    %2040 = vmatpush1.msra.mxu0 %v2006
    %2041 = vmatprep.subr.mxu0 0.0
    %2042 = vmatpush1.msra.mxu0 %v2005
    %2043 = vmatprep.subr.mxu0 0.0
    %2044 = vmatpush1.msra.mxu0 %v2004
    %2045 = vmatprep.subr.mxu0 0.0
    %2046 = vmatpush1.msra.mxu0 %v2003
    %2047 = vmatprep.subr.mxu0 0.0
    %2048 = vmatpush1.msra.mxu0 %v2002
    %2049 = vmatprep.subr.mxu0 0.0
    %2050 = vmatpush1.msra.mxu0 %v2001
    %2051 = vmatprep.subr.mxu0 0.0
    %2052 = vmatpush1.msra.mxu0 %v2000
    %2053 = vmatprep.subr.mxu0 0.0
    %2054 = vmatpush2.msra.mxu0 0.0
    %2055 = vmatprep.subr.mxu0 0.0
    %2056 = vmatpush2.msra.mxu0 0.0
    %2057 = vmatprep.subr.mxu0 0.0
    %2058 = vmatpush2.msra.mxu0 0.0
    %2059 = vmatprep.subr.mxu0 0.0
    %2060 = vmatpush2.msra.mxu0 0.0
    %2061 = vmatprep.subr.mxu0 0.0
    %2062 = vmatpush2.msra.mxu0 0.0
    %2063 = vmatprep.subr.mxu0 0.0
    %2064 = vmatpush2.msra.mxu0 0.0
    %2065 = vmatprep.subr.mxu0 0.0
    %2066 = vmatpush2.msra.mxu0 0.0
    %2067 = vmatprep.subr.mxu0 0.0
    %2068 = vmatpush2.msra.mxu0 0.0
    %2069 = vmatprep.subr.mxu0 0.0
    %2070 = vmatpush2.msra.mxu0 0.0
    %2071 = vmatprep.subr.mxu0 0.0
    %2072 = vmatpush2.msra.mxu0 0.0
    %2073 = vmatprep.subr.mxu0 0.0
    %2074 = vmatpush2.msra.mxu0 0.0
    %2075 = vmatprep.subr.mxu0 0.0
    %2076 = vmatpush2.msra.mxu0 0.0
    %2077 = vmatprep.subr.mxu0 0.0
    %2078 = vmatpush2.msra.mxu0 0.0
    %2079 = vmatprep.subr.mxu0 0.0
    %2080 = vmatpush2.msra.mxu0 0.0
    %2081 = vmatprep.subr.mxu0 0.0
    %2082 = vmatpush2.msra.mxu0 0.0
    %2083 = vmatprep.subr.mxu0 0.0
    %2084 = vmatpush2.msra.mxu0 0.0
    %2085 = vmatprep.mubr.f32.mxu0 0.0
    %2086 = vmatmul.mubr.f32.gmra.mxu0 %v1667
    %v2087 = vpop.f32.mrf.mxu0
    %v2088 = vadd.f32 %v2020, %v2087
    %v2089 = vpop.f32.mrf.mxu0
    %2090 = vmatprep.mubr.f32.mxu0 0.0
    %2091 = vmatmul.mubr.f32.gmra.mxu0 %v1668
    %v2092 = vpop.f32.mrf.mxu0
    %v2093 = vadd.f32 %v2020, %v2092
    %v2094 = vpop.f32.mrf.mxu0
    %2095 = vmatprep.mubr.f32.mxu0 0.0
    %2096 = vmatmul.mubr.f32.gmra.mxu0 %v1669
    %v2097 = vpop.f32.mrf.mxu0
    %v2098 = vadd.f32 %v2020, %v2097
    %v2099 = vpop.f32.mrf.mxu0
    %2100 = vmatprep.mubr.f32.mxu0 0.0
    %2101 = vmatmul.mubr.f32.gmra.mxu0 %v1670
    %v2102 = vpop.f32.mrf.mxu0
    %v2103 = vadd.f32 %v2020, %v2102
    %v2104 = vpop.f32.mrf.mxu0
    %2105 = vmatprep.mubr.f32.mxu0 0.0
    %2106 = vmatmul.mubr.f32.gmra.mxu0 %v1671
    %v2107 = vpop.f32.mrf.mxu0
    %v2108 = vadd.f32 %v2020, %v2107
    %v2109 = vpop.f32.mrf.mxu0
    %2110 = vmatprep.mubr.f32.mxu0 0.0
    %2111 = vmatmul.mubr.f32.gmra.mxu0 %v1672
    %v2112 = vpop.f32.mrf.mxu0
    %v2113 = vadd.f32 %v2020, %v2112
    %v2114 = vpop.f32.mrf.mxu0
    %2115 = vmatprep.mubr.f32.mxu0 0.0
    %2116 = vmatmul.mubr.f32.gmra.mxu0 %v1673
    %v2117 = vpop.f32.mrf.mxu0
    %v2118 = vadd.f32 %v2020, %v2117
    %v2119 = vpop.f32.mrf.mxu0
    %2120 = vmatprep.mubr.f32.mxu0 0.0
    %2121 = vmatmul.mubr.f32.gmra.mxu0 %v1674
    %v2122 = vpop.f32.mrf.mxu0
    %v2123 = vadd.f32 %v2020, %v2122
    %v2124 = vpop.f32.mrf.mxu0
    %2125 = vmatprep.mubr.f32.mxu0 0.0
    %2126 = vmatmul.mubr.f32.gmra.mxu0 %v1675
    %v2127 = vpop.f32.mrf.mxu0
    %v2128 = vadd.f32 %v2020, %v2127
    %v2129 = vpop.f32.mrf.mxu0
    %2130 = vmatprep.mubr.f32.mxu0 0.0
    %2131 = vmatmul.mubr.f32.gmra.mxu0 %v1676
    %v2132 = vpop.f32.mrf.mxu0
    %v2133 = vadd.f32 %v2020, %v2132
    %v2134 = vpop.f32.mrf.mxu0
    %2135 = vmatprep.mubr.f32.mxu0 0.0
    %2136 = vmatmul.mubr.f32.gmra.mxu0 %v1677
    %v2137 = vpop.f32.mrf.mxu0
    %v2138 = vadd.f32 %v2020, %v2137
    %v2139 = vpop.f32.mrf.mxu0
    %2140 = vmatprep.mubr.f32.mxu0 0.0
    %2141 = vmatmul.mubr.f32.gmra.mxu0 %v1678
    %v2142 = vpop.f32.mrf.mxu0
    %v2143 = vadd.f32 %v2020, %v2142
    %v2144 = vpop.f32.mrf.mxu0
    %2145 = vmatprep.mubr.f32.mxu0 0.0
    %2146 = vmatmul.mubr.f32.gmra.mxu0 %v1679
    %v2147 = vpop.f32.mrf.mxu0
    %v2148 = vadd.f32 %v2020, %v2147
    %v2149 = vpop.f32.mrf.mxu0
    %2150 = vmatprep.mubr.f32.mxu0 0.0
    %2151 = vmatmul.mubr.f32.gmra.mxu0 %v1680
    %v2152 = vpop.f32.mrf.mxu0
    %v2153 = vadd.f32 %v2020, %v2152
    %v2154 = vpop.f32.mrf.mxu0
    %2155 = vmatprep.mubr.f32.mxu0 0.0
    %2156 = vmatmul.mubr.f32.gmra.mxu0 %v1681
    %v2157 = vpop.f32.mrf.mxu0
    %v2158 = vadd.f32 %v2020, %v2157
    %v2159 = vpop.f32.mrf.mxu0
    %2160 = vmatprep.mubr.f32.mxu0 0.0
    %2161 = vmatmul.mubr.f32.gmra.mxu0 %v1682
    %v2162 = vpop.f32.mrf.mxu0
    %v2163 = vadd.f32 %v2020, %v2162
    %v2164 = vpop.f32.mrf.mxu0
    %2165 = vmatprep.mubr.f32.mxu0 0.0
    %2166 = vmatmul.mubr.f32.gmra.mxu0 %v1683
    %v2167 = vpop.f32.mrf.mxu0
    %v2168 = vadd.f32 %v2020, %v2167
    %v2169 = vpop.f32.mrf.mxu0
    %2170 = vmatprep.mubr.f32.mxu0 0.0
    %2171 = vmatmul.mubr.f32.gmra.mxu0 %v1684
    %v2172 = vpop.f32.mrf.mxu0
    %v2173 = vadd.f32 %v2020, %v2172
    %v2174 = vpop.f32.mrf.mxu0
    %2175 = vmatprep.mubr.f32.mxu0 0.0
    %2176 = vmatmul.mubr.f32.gmra.mxu0 %v1685
    %v2177 = vpop.f32.mrf.mxu0
    %v2178 = vadd.f32 %v2020, %v2177
    %v2179 = vpop.f32.mrf.mxu0
    %2180 = vmatprep.mubr.f32.mxu0 0.0
    %2181 = vmatmul.mubr.f32.gmra.mxu0 %v1686
    %v2182 = vpop.f32.mrf.mxu0
    %v2183 = vadd.f32 %v2020, %v2182
    %v2184 = vpop.f32.mrf.mxu0
    %2185 = vmatprep.mubr.f32.mxu0 0.0
    %2186 = vmatmul.mubr.f32.gmra.mxu0 %v1687
    %v2187 = vpop.f32.mrf.mxu0
    %v2188 = vadd.f32 %v2020, %v2187
    %v2189 = vpop.f32.mrf.mxu0
    %2190 = vmatprep.mubr.f32.mxu0 0.0
    %2191 = vmatmul.mubr.f32.gmra.mxu0 %v1688
    %v2192 = vpop.f32.mrf.mxu0
    %v2193 = vadd.f32 %v2020, %v2192
    %v2194 = vpop.f32.mrf.mxu0
    %2195 = vmatprep.mubr.f32.mxu0 0.0
    %2196 = vmatmul.mubr.f32.gmra.mxu0 %v1689
    %v2197 = vpop.f32.mrf.mxu0
    %v2198 = vadd.f32 %v2020, %v2197
    %v2199 = vpop.f32.mrf.mxu0
    %2200 = vmatprep.mubr.f32.mxu0 0.0
    %2201 = vmatmul.mubr.f32.gmra.mxu0 %v1690
    %v2202 = vpop.f32.mrf.mxu0
    %v2203 = vadd.f32 %v2020, %v2202
    %v2204 = vpop.f32.mrf.mxu0
    %2205 = vmatprep.mubr.f32.mxu0 0.0
    %2206 = vmatmul.mubr.f32.gmra.mxu0 %v1691
    %v2207 = vpop.f32.mrf.mxu0
    %v2208 = vadd.f32 %v2020, %v2207
    %v2209 = vpop.f32.mrf.mxu0
    %2210 = vmatprep.mubr.f32.mxu0 0.0
    %2211 = vmatmul.mubr.f32.gmra.mxu0 %v1692
    %v2212 = vpop.f32.mrf.mxu0
    %v2213 = vadd.f32 %v2020, %v2212
    %v2214 = vpop.f32.mrf.mxu0
    %2215 = vmatprep.mubr.f32.mxu0 0.0
    %2216 = vmatmul.mubr.f32.gmra.mxu0 %v1693
    %v2217 = vpop.f32.mrf.mxu0
    %v2218 = vadd.f32 %v2020, %v2217
    %v2219 = vpop.f32.mrf.mxu0
    %2220 = vmatprep.mubr.f32.mxu0 0.0
    %2221 = vmatmul.mubr.f32.gmra.mxu0 %v1694
    %v2222 = vpop.f32.mrf.mxu0
    %v2223 = vadd.f32 %v2020, %v2222
    %v2224 = vpop.f32.mrf.mxu0
    %2225 = vmatprep.mubr.f32.mxu0 0.0
    %2226 = vmatmul.mubr.f32.gmra.mxu0 %v1695
    %v2227 = vpop.f32.mrf.mxu0
    %v2228 = vadd.f32 %v2020, %v2227
    %v2229 = vpop.f32.mrf.mxu0
    %2230 = vmatprep.mubr.f32.mxu0 0.0
    %2231 = vmatmul.mubr.f32.gmra.mxu0 %v1696
    %v2232 = vpop.f32.mrf.mxu0
    %v2233 = vadd.f32 %v2020, %v2232
    %v2234 = vpop.f32.mrf.mxu0
    %2235 = vmatprep.mubr.f32.mxu0 0.0
    %2236 = vmatmul.mubr.f32.gmra.mxu0 %v1697
    %v2237 = vpop.f32.mrf.mxu0
    %v2238 = vadd.f32 %v2020, %v2237
    %v2239 = vpop.f32.mrf.mxu0
    %2240 = vmatprep.mubr.f32.mxu0 0.0
    %2241 = vmatmul.mubr.f32.gmra.mxu0 %v1698
    %v2242 = vpop.f32.mrf.mxu0
    %v2243 = vadd.f32 %v2020, %v2242
    %v2244 = vpop.f32.mrf.mxu0
    %2245 = vdwg.mxu0
    %v2246 = vmax.f32 %v2088, 0.0
    %v2247 = vmax.f32 %v2093, 0.0
    %v2248 = vmax.f32 %v2098, 0.0
    %v2249 = vmax.f32 %v2103, 0.0
    %v2250 = vmax.f32 %v2108, 0.0
    %v2251 = vmax.f32 %v2113, 0.0
    %v2252 = vmax.f32 %v2118, 0.0
    %v2253 = vmax.f32 %v2123, 0.0
    %v2254 = vmax.f32 %v2128, 0.0
    %v2255 = vmax.f32 %v2133, 0.0
    %v2256 = vmax.f32 %v2138, 0.0
    %v2257 = vmax.f32 %v2143, 0.0
    %v2258 = vmax.f32 %v2148, 0.0
    %v2259 = vmax.f32 %v2153, 0.0
    %v2260 = vmax.f32 %v2158, 0.0
    %v2261 = vmax.f32 %v2163, 0.0
    %v2262 = vmax.f32 %v2168, 0.0
    %v2263 = vmax.f32 %v2173, 0.0
    %v2264 = vmax.f32 %v2178, 0.0
    %v2265 = vmax.f32 %v2183, 0.0
    %v2266 = vmax.f32 %v2188, 0.0
    %v2267 = vmax.f32 %v2193, 0.0
    %v2268 = vmax.f32 %v2198, 0.0
    %v2269 = vmax.f32 %v2203, 0.0
    %v2270 = vmax.f32 %v2208, 0.0
    %v2271 = vmax.f32 %v2213, 0.0
    %v2272 = vmax.f32 %v2218, 0.0
    %v2273 = vmax.f32 %v2223, 0.0
    %v2274 = vmax.f32 %v2228, 0.0
    %v2275 = vmax.f32 %v2233, 0.0
    %v2276 = vmax.f32 %v2238, 0.0
    %v2277 = vmax.f32 %v2243, 0.0
    %v2278 = vld [vmem:[%s2 + $0x300] sm:$0xff]
    %v2279 = vld [vmem:[%s2 + $0x308] sm:$0xff]
    %v2280 = vld [vmem:[%s2 + $0x310] sm:$0xff]
    %v2281 = vld [vmem:[%s2 + $0x318] sm:$0xff]
    %v2282 = vld [vmem:[%s2 + $0x320] sm:$0xff]
    %v2283 = vld [vmem:[%s2 + $0x328] sm:$0xff]
    %v2284 = vld [vmem:[%s2 + $0x330] sm:$0xff]
    %v2285 = vld [vmem:[%s2 + $0x338] sm:$0xff]
    %v2286 = vld [vmem:[%s2 + $0x340] sm:$0xff]
    %v2287 = vld [vmem:[%s2 + $0x348] sm:$0xff]
    %v2288 = vld [vmem:[%s2 + $0x350] sm:$0xff]
    %v2289 = vld [vmem:[%s2 + $0x358] sm:$0xff]
    %v2290 = vld [vmem:[%s2 + $0x360] sm:$0xff]
    %v2291 = vld [vmem:[%s2 + $0x368] sm:$0xff]
    %v2292 = vld [vmem:[%s2 + $0x370] sm:$0xff]
    %v2293 = vld [vmem:[%s2 + $0x378] sm:$0xff]
    %v2294 = vld [vmem:[%s3 + $0x6] sm:$0x1]
    %v2295 = vlaneseq
    %v2296 = vshrl.u32 %v2295, 7
    %v2297 = vsub.s32 0, %v2296
    %v2298 = vrot.slane %v2294, %v2297
    %2299 = vmatprep.subr.mxu0 0.0
    %2300 = vmatpush1.msra.mxu0 %v2293
    %2301 = vmatprep.subr.mxu0 0.0
    %2302 = vmatpush1.msra.mxu0 %v2292
    %2303 = vmatprep.subr.mxu0 0.0
    %2304 = vmatpush1.msra.mxu0 %v2291
    %2305 = vmatprep.subr.mxu0 0.0
    %2306 = vmatpush1.msra.mxu0 %v2290
    %2307 = vmatprep.subr.mxu0 0.0
    %2308 = vmatpush1.msra.mxu0 %v2289
    %2309 = vmatprep.subr.mxu0 0.0
    %2310 = vmatpush1.msra.mxu0 %v2288
    %2311 = vmatprep.subr.mxu0 0.0
    %2312 = vmatpush1.msra.mxu0 %v2287
    %2313 = vmatprep.subr.mxu0 0.0
    %2314 = vmatpush1.msra.mxu0 %v2286
    %2315 = vmatprep.subr.mxu0 0.0
    %2316 = vmatpush1.msra.mxu0 %v2285
    %2317 = vmatprep.subr.mxu0 0.0
    %2318 = vmatpush1.msra.mxu0 %v2284
    %2319 = vmatprep.subr.mxu0 0.0
    %2320 = vmatpush1.msra.mxu0 %v2283
    %2321 = vmatprep.subr.mxu0 0.0
    %2322 = vmatpush1.msra.mxu0 %v2282
    %2323 = vmatprep.subr.mxu0 0.0
    %2324 = vmatpush1.msra.mxu0 %v2281
    %2325 = vmatprep.subr.mxu0 0.0
    %2326 = vmatpush1.msra.mxu0 %v2280
    %2327 = vmatprep.subr.mxu0 0.0
    %2328 = vmatpush1.msra.mxu0 %v2279
    %2329 = vmatprep.subr.mxu0 0.0
    %2330 = vmatpush1.msra.mxu0 %v2278
    %2331 = vmatprep.subr.mxu0 0.0
    %2332 = vmatpush2.msra.mxu0 0.0
    %2333 = vmatprep.subr.mxu0 0.0
    %2334 = vmatpush2.msra.mxu0 0.0
    %2335 = vmatprep.subr.mxu0 0.0
    %2336 = vmatpush2.msra.mxu0 0.0
    %2337 = vmatprep.subr.mxu0 0.0
    %2338 = vmatpush2.msra.mxu0 0.0
    %2339 = vmatprep.subr.mxu0 0.0
    %2340 = vmatpush2.msra.mxu0 0.0
    %2341 = vmatprep.subr.mxu0 0.0
    %2342 = vmatpush2.msra.mxu0 0.0
    %2343 = vmatprep.subr.mxu0 0.0
    %2344 = vmatpush2.msra.mxu0 0.0
    %2345 = vmatprep.subr.mxu0 0.0
    %2346 = vmatpush2.msra.mxu0 0.0
    %2347 = vmatprep.subr.mxu0 0.0
    %2348 = vmatpush2.msra.mxu0 0.0
    %2349 = vmatprep.subr.mxu0 0.0
    %2350 = vmatpush2.msra.mxu0 0.0
    %2351 = vmatprep.subr.mxu0 0.0
    %2352 = vmatpush2.msra.mxu0 0.0
    %2353 = vmatprep.subr.mxu0 0.0
    %2354 = vmatpush2.msra.mxu0 0.0
    %2355 = vmatprep.subr.mxu0 0.0
    %2356 = vmatpush2.msra.mxu0 0.0
    %2357 = vmatprep.subr.mxu0 0.0
    %2358 = vmatpush2.msra.mxu0 0.0
    %2359 = vmatprep.subr.mxu0 0.0
    %2360 = vmatpush2.msra.mxu0 0.0
    %2361 = vmatprep.subr.mxu0 0.0
    %2362 = vmatpush2.msra.mxu0 0.0
    %2363 = vmatprep.mubr.f32.mxu0 0.0
    %2364 = vmatmul.mubr.f32.gmra.mxu0 %v2246
    %v2365 = vpop.f32.mrf.mxu0
    %v2366 = vadd.f32 %v2298, %v2365
    %v2367 = vpop.f32.mrf.mxu0
    %2368 = vmatprep.mubr.f32.mxu0 0.0
    %2369 = vmatmul.mubr.f32.gmra.mxu0 %v2247
    %v2370 = vpop.f32.mrf.mxu0
    %v2371 = vadd.f32 %v2298, %v2370
    %v2372 = vpop.f32.mrf.mxu0
    %2373 = vmatprep.mubr.f32.mxu0 0.0
    %2374 = vmatmul.mubr.f32.gmra.mxu0 %v2248
    %v2375 = vpop.f32.mrf.mxu0
    %v2376 = vadd.f32 %v2298, %v2375
    %v2377 = vpop.f32.mrf.mxu0
    %2378 = vmatprep.mubr.f32.mxu0 0.0
    %2379 = vmatmul.mubr.f32.gmra.mxu0 %v2249
    %v2380 = vpop.f32.mrf.mxu0
    %v2381 = vadd.f32 %v2298, %v2380
    %v2382 = vpop.f32.mrf.mxu0
    %2383 = vmatprep.mubr.f32.mxu0 0.0
    %2384 = vmatmul.mubr.f32.gmra.mxu0 %v2250
    %v2385 = vpop.f32.mrf.mxu0
    %v2386 = vadd.f32 %v2298, %v2385
    %v2387 = vpop.f32.mrf.mxu0
    %2388 = vmatprep.mubr.f32.mxu0 0.0
    %2389 = vmatmul.mubr.f32.gmra.mxu0 %v2251
    %v2390 = vpop.f32.mrf.mxu0
    %v2391 = vadd.f32 %v2298, %v2390
    %v2392 = vpop.f32.mrf.mxu0
    %2393 = vmatprep.mubr.f32.mxu0 0.0
    %2394 = vmatmul.mubr.f32.gmra.mxu0 %v2252
    %v2395 = vpop.f32.mrf.mxu0
    %v2396 = vadd.f32 %v2298, %v2395
    %v2397 = vpop.f32.mrf.mxu0
    %2398 = vmatprep.mubr.f32.mxu0 0.0
    %2399 = vmatmul.mubr.f32.gmra.mxu0 %v2253
    %v2400 = vpop.f32.mrf.mxu0
    %v2401 = vadd.f32 %v2298, %v2400
    %v2402 = vpop.f32.mrf.mxu0
    %2403 = vmatprep.mubr.f32.mxu0 0.0
    %2404 = vmatmul.mubr.f32.gmra.mxu0 %v2254
    %v2405 = vpop.f32.mrf.mxu0
    %v2406 = vadd.f32 %v2298, %v2405
    %v2407 = vpop.f32.mrf.mxu0
    %2408 = vmatprep.mubr.f32.mxu0 0.0
    %2409 = vmatmul.mubr.f32.gmra.mxu0 %v2255
    %v2410 = vpop.f32.mrf.mxu0
    %v2411 = vadd.f32 %v2298, %v2410
    %v2412 = vpop.f32.mrf.mxu0
    %2413 = vmatprep.mubr.f32.mxu0 0.0
    %2414 = vmatmul.mubr.f32.gmra.mxu0 %v2256
    %v2415 = vpop.f32.mrf.mxu0
    %v2416 = vadd.f32 %v2298, %v2415
    %v2417 = vpop.f32.mrf.mxu0
    %2418 = vmatprep.mubr.f32.mxu0 0.0
    %2419 = vmatmul.mubr.f32.gmra.mxu0 %v2257
    %v2420 = vpop.f32.mrf.mxu0
    %v2421 = vadd.f32 %v2298, %v2420
    %v2422 = vpop.f32.mrf.mxu0
    %2423 = vmatprep.mubr.f32.mxu0 0.0
    %2424 = vmatmul.mubr.f32.gmra.mxu0 %v2258
    %v2425 = vpop.f32.mrf.mxu0
    %v2426 = vadd.f32 %v2298, %v2425
    %v2427 = vpop.f32.mrf.mxu0
    %2428 = vmatprep.mubr.f32.mxu0 0.0
    %2429 = vmatmul.mubr.f32.gmra.mxu0 %v2259
    %v2430 = vpop.f32.mrf.mxu0
    %v2431 = vadd.f32 %v2298, %v2430
    %v2432 = vpop.f32.mrf.mxu0
    %2433 = vmatprep.mubr.f32.mxu0 0.0
    %2434 = vmatmul.mubr.f32.gmra.mxu0 %v2260
    %v2435 = vpop.f32.mrf.mxu0
    %v2436 = vadd.f32 %v2298, %v2435
    %v2437 = vpop.f32.mrf.mxu0
    %2438 = vmatprep.mubr.f32.mxu0 0.0
    %2439 = vmatmul.mubr.f32.gmra.mxu0 %v2261
    %v2440 = vpop.f32.mrf.mxu0
    %v2441 = vadd.f32 %v2298, %v2440
    %v2442 = vpop.f32.mrf.mxu0
    %2443 = vmatprep.mubr.f32.mxu0 0.0
    %2444 = vmatmul.mubr.f32.gmra.mxu0 %v2262
    %v2445 = vpop.f32.mrf.mxu0
    %v2446 = vadd.f32 %v2298, %v2445
    %v2447 = vpop.f32.mrf.mxu0
    %2448 = vmatprep.mubr.f32.mxu0 0.0
    %2449 = vmatmul.mubr.f32.gmra.mxu0 %v2263
    %v2450 = vpop.f32.mrf.mxu0
    %v2451 = vadd.f32 %v2298, %v2450
    %v2452 = vpop.f32.mrf.mxu0
    %2453 = vmatprep.mubr.f32.mxu0 0.0
    %2454 = vmatmul.mubr.f32.gmra.mxu0 %v2264
    %v2455 = vpop.f32.mrf.mxu0
    %v2456 = vadd.f32 %v2298, %v2455
    %v2457 = vpop.f32.mrf.mxu0
    %2458 = vmatprep.mubr.f32.mxu0 0.0
    %2459 = vmatmul.mubr.f32.gmra.mxu0 %v2265
    %v2460 = vpop.f32.mrf.mxu0
    %v2461 = vadd.f32 %v2298, %v2460
    %v2462 = vpop.f32.mrf.mxu0
    %2463 = vmatprep.mubr.f32.mxu0 0.0
    %2464 = vmatmul.mubr.f32.gmra.mxu0 %v2266
    %v2465 = vpop.f32.mrf.mxu0
    %v2466 = vadd.f32 %v2298, %v2465
    %v2467 = vpop.f32.mrf.mxu0
    %2468 = vmatprep.mubr.f32.mxu0 0.0
    %2469 = vmatmul.mubr.f32.gmra.mxu0 %v2267
    %v2470 = vpop.f32.mrf.mxu0
    %v2471 = vadd.f32 %v2298, %v2470
    %v2472 = vpop.f32.mrf.mxu0
    %2473 = vmatprep.mubr.f32.mxu0 0.0
    %2474 = vmatmul.mubr.f32.gmra.mxu0 %v2268
    %v2475 = vpop.f32.mrf.mxu0
    %v2476 = vadd.f32 %v2298, %v2475
    %v2477 = vpop.f32.mrf.mxu0
    %2478 = vmatprep.mubr.f32.mxu0 0.0
    %2479 = vmatmul.mubr.f32.gmra.mxu0 %v2269
    %v2480 = vpop.f32.mrf.mxu0
    %v2481 = vadd.f32 %v2298, %v2480
    %v2482 = vpop.f32.mrf.mxu0
    %2483 = vmatprep.mubr.f32.mxu0 0.0
    %2484 = vmatmul.mubr.f32.gmra.mxu0 %v2270
    %v2485 = vpop.f32.mrf.mxu0
    %v2486 = vadd.f32 %v2298, %v2485
    %v2487 = vpop.f32.mrf.mxu0
    %2488 = vmatprep.mubr.f32.mxu0 0.0
    %2489 = vmatmul.mubr.f32.gmra.mxu0 %v2271
    %v2490 = vpop.f32.mrf.mxu0
    %v2491 = vadd.f32 %v2298, %v2490
    %v2492 = vpop.f32.mrf.mxu0
    %2493 = vmatprep.mubr.f32.mxu0 0.0
    %2494 = vmatmul.mubr.f32.gmra.mxu0 %v2272
    %v2495 = vpop.f32.mrf.mxu0
    %v2496 = vadd.f32 %v2298, %v2495
    %v2497 = vpop.f32.mrf.mxu0
    %2498 = vmatprep.mubr.f32.mxu0 0.0
    %2499 = vmatmul.mubr.f32.gmra.mxu0 %v2273
    %v2500 = vpop.f32.mrf.mxu0
    %v2501 = vadd.f32 %v2298, %v2500
    %v2502 = vpop.f32.mrf.mxu0
    %2503 = vmatprep.mubr.f32.mxu0 0.0
    %2504 = vmatmul.mubr.f32.gmra.mxu0 %v2274
    %v2505 = vpop.f32.mrf.mxu0
    %v2506 = vadd.f32 %v2298, %v2505
    %v2507 = vpop.f32.mrf.mxu0
    %2508 = vmatprep.mubr.f32.mxu0 0.0
    %2509 = vmatmul.mubr.f32.gmra.mxu0 %v2275
    %v2510 = vpop.f32.mrf.mxu0
    %v2511 = vadd.f32 %v2298, %v2510
    %v2512 = vpop.f32.mrf.mxu0
    %2513 = vmatprep.mubr.f32.mxu0 0.0
    %2514 = vmatmul.mubr.f32.gmra.mxu0 %v2276
    %v2515 = vpop.f32.mrf.mxu0
    %v2516 = vadd.f32 %v2298, %v2515
    %v2517 = vpop.f32.mrf.mxu0
    %2518 = vmatprep.mubr.f32.mxu0 0.0
    %2519 = vmatmul.mubr.f32.gmra.mxu0 %v2277
    %v2520 = vpop.f32.mrf.mxu0
    %v2521 = vadd.f32 %v2298, %v2520
    %v2522 = vpop.f32.mrf.mxu0
    %2523 = vdwg.mxu0
    %v2524 = vxor.u32 %v2366, 2147483648
    %v2525 = vxor.u32 %v2371, 2147483648
    %v2526 = vxor.u32 %v2376, 2147483648
    %v2527 = vxor.u32 %v2381, 2147483648
    %v2528 = vxor.u32 %v2386, 2147483648
    %v2529 = vxor.u32 %v2391, 2147483648
    %v2530 = vxor.u32 %v2396, 2147483648
    %v2531 = vxor.u32 %v2401, 2147483648
    %v2532 = vxor.u32 %v2406, 2147483648
    %v2533 = vxor.u32 %v2411, 2147483648
    %v2534 = vxor.u32 %v2416, 2147483648
    %v2535 = vxor.u32 %v2421, 2147483648
    %v2536 = vxor.u32 %v2426, 2147483648
    %v2537 = vxor.u32 %v2431, 2147483648
    %v2538 = vxor.u32 %v2436, 2147483648
    %v2539 = vxor.u32 %v2441, 2147483648
    %v2540 = vxor.u32 %v2446, 2147483648
    %v2541 = vxor.u32 %v2451, 2147483648
    %v2542 = vxor.u32 %v2456, 2147483648
    %v2543 = vxor.u32 %v2461, 2147483648
    %v2544 = vxor.u32 %v2466, 2147483648
    %v2545 = vxor.u32 %v2471, 2147483648
    %v2546 = vxor.u32 %v2476, 2147483648
    %v2547 = vxor.u32 %v2481, 2147483648
    %v2548 = vxor.u32 %v2486, 2147483648
    %v2549 = vxor.u32 %v2491, 2147483648
    %v2550 = vxor.u32 %v2496, 2147483648
    %v2551 = vxor.u32 %v2501, 2147483648
    %v2552 = vxor.u32 %v2506, 2147483648
    %v2553 = vxor.u32 %v2511, 2147483648
    %v2554 = vxor.u32 %v2516, 2147483648
    %v2555 = vxor.u32 %v2521, 2147483648
    %v2556 = vmul.f32 %v2524, 1.442695
    %v2557 = vpow.pop %v2556
    %v2558 = vmul.f32 %v2525, 1.442695
    %v2559 = vpow.pop %v2558
    %v2560 = vmul.f32 %v2526, 1.442695
    %v2561 = vpow.pop %v2560
    %v2562 = vmul.f32 %v2527, 1.442695
    %v2563 = vpow.pop %v2562
    %v2564 = vmul.f32 %v2528, 1.442695
    %v2565 = vpow.pop %v2564
    %v2566 = vmul.f32 %v2529, 1.442695
    %v2567 = vpow.pop %v2566
    %v2568 = vmul.f32 %v2530, 1.442695
    %v2569 = vpow.pop %v2568
    %v2570 = vmul.f32 %v2531, 1.442695
    %v2571 = vpow.pop %v2570
    %v2572 = vmul.f32 %v2532, 1.442695
    %v2573 = vpow.pop %v2572
    %v2574 = vmul.f32 %v2533, 1.442695
    %v2575 = vpow.pop %v2574
    %v2576 = vmul.f32 %v2534, 1.442695
    %v2577 = vpow.pop %v2576
    %v2578 = vmul.f32 %v2535, 1.442695
    %v2579 = vpow.pop %v2578
    %v2580 = vmul.f32 %v2536, 1.442695
    %v2581 = vpow.pop %v2580
    %v2582 = vmul.f32 %v2537, 1.442695
    %v2583 = vpow.pop %v2582
    %v2584 = vmul.f32 %v2538, 1.442695
    %v2585 = vpow.pop %v2584
    %v2586 = vmul.f32 %v2539, 1.442695
    %v2587 = vpow.pop %v2586
    %v2588 = vmul.f32 %v2540, 1.442695
    %v2589 = vpow.pop %v2588
    %v2590 = vmul.f32 %v2541, 1.442695
    %v2591 = vpow.pop %v2590
    %v2592 = vmul.f32 %v2542, 1.442695
    %v2593 = vpow.pop %v2592
    %v2594 = vmul.f32 %v2543, 1.442695
    %v2595 = vpow.pop %v2594
    %v2596 = vmul.f32 %v2544, 1.442695
    %v2597 = vpow.pop %v2596
    %v2598 = vmul.f32 %v2545, 1.442695
    %v2599 = vpow.pop %v2598
    %v2600 = vmul.f32 %v2546, 1.442695
    %v2601 = vpow.pop %v2600
    %v2602 = vmul.f32 %v2547, 1.442695
    %v2603 = vpow.pop %v2602
    %v2604 = vmul.f32 %v2548, 1.442695
    %v2605 = vpow.pop %v2604
    %v2606 = vmul.f32 %v2549, 1.442695
    %v2607 = vpow.pop %v2606
    %v2608 = vmul.f32 %v2550, 1.442695
    %v2609 = vpow.pop %v2608
    %v2610 = vmul.f32 %v2551, 1.442695
    %v2611 = vpow.pop %v2610
    %v2612 = vmul.f32 %v2552, 1.442695
    %v2613 = vpow.pop %v2612
    %v2614 = vmul.f32 %v2553, 1.442695
    %v2615 = vpow.pop %v2614
    %v2616 = vmul.f32 %v2554, 1.442695
    %v2617 = vpow.pop %v2616
    %v2618 = vmul.f32 %v2555, 1.442695
    %v2619 = vpow.pop %v2618
    %v2620 = vadd.f32 %v2557, 1.0
    %v2621 = vadd.f32 %v2559, 1.0
    %v2622 = vadd.f32 %v2561, 1.0
    %v2623 = vadd.f32 %v2563, 1.0
    %v2624 = vadd.f32 %v2565, 1.0
    %v2625 = vadd.f32 %v2567, 1.0
    %v2626 = vadd.f32 %v2569, 1.0
    %v2627 = vadd.f32 %v2571, 1.0
    %v2628 = vadd.f32 %v2573, 1.0
    %v2629 = vadd.f32 %v2575, 1.0
    %v2630 = vadd.f32 %v2577, 1.0
    %v2631 = vadd.f32 %v2579, 1.0
    %v2632 = vadd.f32 %v2581, 1.0
    %v2633 = vadd.f32 %v2583, 1.0
    %v2634 = vadd.f32 %v2585, 1.0
    %v2635 = vadd.f32 %v2587, 1.0
    %v2636 = vadd.f32 %v2589, 1.0
    %v2637 = vadd.f32 %v2591, 1.0
    %v2638 = vadd.f32 %v2593, 1.0
    %v2639 = vadd.f32 %v2595, 1.0
    %v2640 = vadd.f32 %v2597, 1.0
    %v2641 = vadd.f32 %v2599, 1.0
    %v2642 = vadd.f32 %v2601, 1.0
    %v2643 = vadd.f32 %v2603, 1.0
    %v2644 = vadd.f32 %v2605, 1.0
    %v2645 = vadd.f32 %v2607, 1.0
    %v2646 = vadd.f32 %v2609, 1.0
    %v2647 = vadd.f32 %v2611, 1.0
    %v2648 = vadd.f32 %v2613, 1.0
    %v2649 = vadd.f32 %v2615, 1.0
    %v2650 = vadd.f32 %v2617, 1.0
    %v2651 = vadd.f32 %v2619, 1.0
    %v2652 = vrcp.pop %v2620
    %v2653 = vmul.f32 1.0, %v2652
    %v2654 = vrcp.pop %v2621
    %v2655 = vmul.f32 1.0, %v2654
    %v2656 = vrcp.pop %v2622
    %v2657 = vmul.f32 1.0, %v2656
    %v2658 = vrcp.pop %v2623
    %v2659 = vmul.f32 1.0, %v2658
    %v2660 = vrcp.pop %v2624
    %v2661 = vmul.f32 1.0, %v2660
    %v2662 = vrcp.pop %v2625
    %v2663 = vmul.f32 1.0, %v2662
    %v2664 = vrcp.pop %v2626
    %v2665 = vmul.f32 1.0, %v2664
    %v2666 = vrcp.pop %v2627
    %v2667 = vmul.f32 1.0, %v2666
    %v2668 = vrcp.pop %v2628
    %v2669 = vmul.f32 1.0, %v2668
    %v2670 = vrcp.pop %v2629
    %v2671 = vmul.f32 1.0, %v2670
    %v2672 = vrcp.pop %v2630
    %v2673 = vmul.f32 1.0, %v2672
    %v2674 = vrcp.pop %v2631
    %v2675 = vmul.f32 1.0, %v2674
    %v2676 = vrcp.pop %v2632
    %v2677 = vmul.f32 1.0, %v2676
    %v2678 = vrcp.pop %v2633
    %v2679 = vmul.f32 1.0, %v2678
    %v2680 = vrcp.pop %v2634
    %v2681 = vmul.f32 1.0, %v2680
    %v2682 = vrcp.pop %v2635
    %v2683 = vmul.f32 1.0, %v2682
    %v2684 = vrcp.pop %v2636
    %v2685 = vmul.f32 1.0, %v2684
    %v2686 = vrcp.pop %v2637
    %v2687 = vmul.f32 1.0, %v2686
    %v2688 = vrcp.pop %v2638
    %v2689 = vmul.f32 1.0, %v2688
    %v2690 = vrcp.pop %v2639
    %v2691 = vmul.f32 1.0, %v2690
    %v2692 = vrcp.pop %v2640
    %v2693 = vmul.f32 1.0, %v2692
    %v2694 = vrcp.pop %v2641
    %v2695 = vmul.f32 1.0, %v2694
    %v2696 = vrcp.pop %v2642
    %v2697 = vmul.f32 1.0, %v2696
    %v2698 = vrcp.pop %v2643
    %v2699 = vmul.f32 1.0, %v2698
    %v2700 = vrcp.pop %v2644
    %v2701 = vmul.f32 1.0, %v2700
    %v2702 = vrcp.pop %v2645
    %v2703 = vmul.f32 1.0, %v2702
    %v2704 = vrcp.pop %v2646
    %v2705 = vmul.f32 1.0, %v2704
    %v2706 = vrcp.pop %v2647
    %v2707 = vmul.f32 1.0, %v2706
    %v2708 = vrcp.pop %v2648
    %v2709 = vmul.f32 1.0, %v2708
    %v2710 = vrcp.pop %v2649
    %v2711 = vmul.f32 1.0, %v2710
    %v2712 = vrcp.pop %v2650
    %v2713 = vmul.f32 1.0, %v2712
    %v2714 = vrcp.pop %v2651
    %v2715 = vmul.f32 1.0, %v2714
    %v2716 = vld [vmem:[%s2 + $0x380] sm:$0xff]
    %v2717 = vld [vmem:[%s2 + $0x388] sm:$0xff]
    %v2718 = vld [vmem:[%s2 + $0x390] sm:$0xff]
    %v2719 = vld [vmem:[%s2 + $0x398] sm:$0xff]
    %v2720 = vld [vmem:[%s2 + $0x3a0] sm:$0xff]
    %v2721 = vld [vmem:[%s2 + $0x3a8] sm:$0xff]
    %v2722 = vld [vmem:[%s2 + $0x3b0] sm:$0xff]
    %v2723 = vld [vmem:[%s2 + $0x3b8] sm:$0xff]
    %v2724 = vld [vmem:[%s2 + $0x3c0] sm:$0xff]
    %v2725 = vld [vmem:[%s2 + $0x3c8] sm:$0xff]
    %v2726 = vld [vmem:[%s2 + $0x3d0] sm:$0xff]
    %v2727 = vld [vmem:[%s2 + $0x3d8] sm:$0xff]
    %v2728 = vld [vmem:[%s2 + $0x3e0] sm:$0xff]
    %v2729 = vld [vmem:[%s2 + $0x3e8] sm:$0xff]
    %v2730 = vld [vmem:[%s2 + $0x3f0] sm:$0xff]
    %v2731 = vld [vmem:[%s2 + $0x3f8] sm:$0xff]
    %v2732 = vld [vmem:[%s3 + $0x7] sm:$0x1]
    %v2733 = vlaneseq
    %v2734 = vshrl.u32 %v2733, 7
    %v2735 = vsub.s32 0, %v2734
    %v2736 = vrot.slane %v2732, %v2735
    %2737 = vmatprep.subr.mxu0 0.0
    %2738 = vmatpush1.msra.mxu0 %v2731
    %2739 = vmatprep.subr.mxu0 0.0
    %2740 = vmatpush1.msra.mxu0 %v2730
    %2741 = vmatprep.subr.mxu0 0.0
    %2742 = vmatpush1.msra.mxu0 %v2729
    %2743 = vmatprep.subr.mxu0 0.0
    %2744 = vmatpush1.msra.mxu0 %v2728
    %2745 = vmatprep.subr.mxu0 0.0
    %2746 = vmatpush1.msra.mxu0 %v2727
    %2747 = vmatprep.subr.mxu0 0.0
    %2748 = vmatpush1.msra.mxu0 %v2726
    %2749 = vmatprep.subr.mxu0 0.0
    %2750 = vmatpush1.msra.mxu0 %v2725
    %2751 = vmatprep.subr.mxu0 0.0
    %2752 = vmatpush1.msra.mxu0 %v2724
    %2753 = vmatprep.subr.mxu0 0.0
    %2754 = vmatpush1.msra.mxu0 %v2723
    %2755 = vmatprep.subr.mxu0 0.0
    %2756 = vmatpush1.msra.mxu0 %v2722
    %2757 = vmatprep.subr.mxu0 0.0
    %2758 = vmatpush1.msra.mxu0 %v2721
    %2759 = vmatprep.subr.mxu0 0.0
    %2760 = vmatpush1.msra.mxu0 %v2720
    %2761 = vmatprep.subr.mxu0 0.0
    %2762 = vmatpush1.msra.mxu0 %v2719
    %2763 = vmatprep.subr.mxu0 0.0
    %2764 = vmatpush1.msra.mxu0 %v2718
    %2765 = vmatprep.subr.mxu0 0.0
    %2766 = vmatpush1.msra.mxu0 %v2717
    %2767 = vmatprep.subr.mxu0 0.0
    %2768 = vmatpush1.msra.mxu0 %v2716
    %2769 = vmatprep.subr.mxu0 0.0
    %2770 = vmatpush2.msra.mxu0 0.0
    %2771 = vmatprep.subr.mxu0 0.0
    %2772 = vmatpush2.msra.mxu0 0.0
    %2773 = vmatprep.subr.mxu0 0.0
    %2774 = vmatpush2.msra.mxu0 0.0
    %2775 = vmatprep.subr.mxu0 0.0
    %2776 = vmatpush2.msra.mxu0 0.0
    %2777 = vmatprep.subr.mxu0 0.0
    %2778 = vmatpush2.msra.mxu0 0.0
    %2779 = vmatprep.subr.mxu0 0.0
    %2780 = vmatpush2.msra.mxu0 0.0
    %2781 = vmatprep.subr.mxu0 0.0
    %2782 = vmatpush2.msra.mxu0 0.0
    %2783 = vmatprep.subr.mxu0 0.0
    %2784 = vmatpush2.msra.mxu0 0.0
    %2785 = vmatprep.subr.mxu0 0.0
    %2786 = vmatpush2.msra.mxu0 0.0
    %2787 = vmatprep.subr.mxu0 0.0
    %2788 = vmatpush2.msra.mxu0 0.0
    %2789 = vmatprep.subr.mxu0 0.0
    %2790 = vmatpush2.msra.mxu0 0.0
    %2791 = vmatprep.subr.mxu0 0.0
    %2792 = vmatpush2.msra.mxu0 0.0
    %2793 = vmatprep.subr.mxu0 0.0
    %2794 = vmatpush2.msra.mxu0 0.0
    %2795 = vmatprep.subr.mxu0 0.0
    %2796 = vmatpush2.msra.mxu0 0.0
    %2797 = vmatprep.subr.mxu0 0.0
    %2798 = vmatpush2.msra.mxu0 0.0
    %2799 = vmatprep.subr.mxu0 0.0
    %2800 = vmatpush2.msra.mxu0 0.0
    %2801 = vmatprep.mubr.f32.mxu0 0.0
    %2802 = vmatmul.mubr.f32.gmra.mxu0 %v2653
    %v2803 = vpop.f32.mrf.mxu0
    %v2804 = vadd.f32 %v2736, %v2803
    %v2805 = vpop.f32.mrf.mxu0
    %2806 = vmatprep.mubr.f32.mxu0 0.0
    %2807 = vmatmul.mubr.f32.gmra.mxu0 %v2655
    %v2808 = vpop.f32.mrf.mxu0
    %v2809 = vadd.f32 %v2736, %v2808
    %v2810 = vpop.f32.mrf.mxu0
    %2811 = vmatprep.mubr.f32.mxu0 0.0
    %2812 = vmatmul.mubr.f32.gmra.mxu0 %v2657
    %v2813 = vpop.f32.mrf.mxu0
    %v2814 = vadd.f32 %v2736, %v2813
    %v2815 = vpop.f32.mrf.mxu0
    %2816 = vmatprep.mubr.f32.mxu0 0.0
    %2817 = vmatmul.mubr.f32.gmra.mxu0 %v2659
    %v2818 = vpop.f32.mrf.mxu0
    %v2819 = vadd.f32 %v2736, %v2818
    %v2820 = vpop.f32.mrf.mxu0
    %2821 = vmatprep.mubr.f32.mxu0 0.0
    %2822 = vmatmul.mubr.f32.gmra.mxu0 %v2661
    %v2823 = vpop.f32.mrf.mxu0
    %v2824 = vadd.f32 %v2736, %v2823
    %v2825 = vpop.f32.mrf.mxu0
    %2826 = vmatprep.mubr.f32.mxu0 0.0
    %2827 = vmatmul.mubr.f32.gmra.mxu0 %v2663
    %v2828 = vpop.f32.mrf.mxu0
    %v2829 = vadd.f32 %v2736, %v2828
    %v2830 = vpop.f32.mrf.mxu0
    %2831 = vmatprep.mubr.f32.mxu0 0.0
    %2832 = vmatmul.mubr.f32.gmra.mxu0 %v2665
    %v2833 = vpop.f32.mrf.mxu0
    %v2834 = vadd.f32 %v2736, %v2833
    %v2835 = vpop.f32.mrf.mxu0
    %2836 = vmatprep.mubr.f32.mxu0 0.0
    %2837 = vmatmul.mubr.f32.gmra.mxu0 %v2667
    %v2838 = vpop.f32.mrf.mxu0
    %v2839 = vadd.f32 %v2736, %v2838
    %v2840 = vpop.f32.mrf.mxu0
    %2841 = vmatprep.mubr.f32.mxu0 0.0
    %2842 = vmatmul.mubr.f32.gmra.mxu0 %v2669
    %v2843 = vpop.f32.mrf.mxu0
    %v2844 = vadd.f32 %v2736, %v2843
    %v2845 = vpop.f32.mrf.mxu0
    %2846 = vmatprep.mubr.f32.mxu0 0.0
    %2847 = vmatmul.mubr.f32.gmra.mxu0 %v2671
    %v2848 = vpop.f32.mrf.mxu0
    %v2849 = vadd.f32 %v2736, %v2848
    %v2850 = vpop.f32.mrf.mxu0
    %2851 = vmatprep.mubr.f32.mxu0 0.0
    %2852 = vmatmul.mubr.f32.gmra.mxu0 %v2673
    %v2853 = vpop.f32.mrf.mxu0
    %v2854 = vadd.f32 %v2736, %v2853
    %v2855 = vpop.f32.mrf.mxu0
    %2856 = vmatprep.mubr.f32.mxu0 0.0
    %2857 = vmatmul.mubr.f32.gmra.mxu0 %v2675
    %v2858 = vpop.f32.mrf.mxu0
    %v2859 = vadd.f32 %v2736, %v2858
    %v2860 = vpop.f32.mrf.mxu0
    %2861 = vmatprep.mubr.f32.mxu0 0.0
    %2862 = vmatmul.mubr.f32.gmra.mxu0 %v2677
    %v2863 = vpop.f32.mrf.mxu0
    %v2864 = vadd.f32 %v2736, %v2863
    %v2865 = vpop.f32.mrf.mxu0
    %2866 = vmatprep.mubr.f32.mxu0 0.0
    %2867 = vmatmul.mubr.f32.gmra.mxu0 %v2679
    %v2868 = vpop.f32.mrf.mxu0
    %v2869 = vadd.f32 %v2736, %v2868
    %v2870 = vpop.f32.mrf.mxu0
    %2871 = vmatprep.mubr.f32.mxu0 0.0
    %2872 = vmatmul.mubr.f32.gmra.mxu0 %v2681
    %v2873 = vpop.f32.mrf.mxu0
    %v2874 = vadd.f32 %v2736, %v2873
    %v2875 = vpop.f32.mrf.mxu0
    %2876 = vmatprep.mubr.f32.mxu0 0.0
    %2877 = vmatmul.mubr.f32.gmra.mxu0 %v2683
    %v2878 = vpop.f32.mrf.mxu0
    %v2879 = vadd.f32 %v2736, %v2878
    %v2880 = vpop.f32.mrf.mxu0
    %2881 = vmatprep.mubr.f32.mxu0 0.0
    %2882 = vmatmul.mubr.f32.gmra.mxu0 %v2685
    %v2883 = vpop.f32.mrf.mxu0
    %v2884 = vadd.f32 %v2736, %v2883
    %v2885 = vpop.f32.mrf.mxu0
    %2886 = vmatprep.mubr.f32.mxu0 0.0
    %2887 = vmatmul.mubr.f32.gmra.mxu0 %v2687
    %v2888 = vpop.f32.mrf.mxu0
    %v2889 = vadd.f32 %v2736, %v2888
    %v2890 = vpop.f32.mrf.mxu0
    %2891 = vmatprep.mubr.f32.mxu0 0.0
    %2892 = vmatmul.mubr.f32.gmra.mxu0 %v2689
    %v2893 = vpop.f32.mrf.mxu0
    %v2894 = vadd.f32 %v2736, %v2893
    %v2895 = vpop.f32.mrf.mxu0
    %2896 = vmatprep.mubr.f32.mxu0 0.0
    %2897 = vmatmul.mubr.f32.gmra.mxu0 %v2691
    %v2898 = vpop.f32.mrf.mxu0
    %v2899 = vadd.f32 %v2736, %v2898
    %v2900 = vpop.f32.mrf.mxu0
    %2901 = vmatprep.mubr.f32.mxu0 0.0
    %2902 = vmatmul.mubr.f32.gmra.mxu0 %v2693
    %v2903 = vpop.f32.mrf.mxu0
    %v2904 = vadd.f32 %v2736, %v2903
    %v2905 = vpop.f32.mrf.mxu0
    %2906 = vmatprep.mubr.f32.mxu0 0.0
    %2907 = vmatmul.mubr.f32.gmra.mxu0 %v2695
    %v2908 = vpop.f32.mrf.mxu0
    %v2909 = vadd.f32 %v2736, %v2908
    %v2910 = vpop.f32.mrf.mxu0
    %2911 = vmatprep.mubr.f32.mxu0 0.0
    %2912 = vmatmul.mubr.f32.gmra.mxu0 %v2697
    %v2913 = vpop.f32.mrf.mxu0
    %v2914 = vadd.f32 %v2736, %v2913
    %v2915 = vpop.f32.mrf.mxu0
    %2916 = vmatprep.mubr.f32.mxu0 0.0
    %2917 = vmatmul.mubr.f32.gmra.mxu0 %v2699
    %v2918 = vpop.f32.mrf.mxu0
    %v2919 = vadd.f32 %v2736, %v2918
    %v2920 = vpop.f32.mrf.mxu0
    %2921 = vmatprep.mubr.f32.mxu0 0.0
    %2922 = vmatmul.mubr.f32.gmra.mxu0 %v2701
    %v2923 = vpop.f32.mrf.mxu0
    %v2924 = vadd.f32 %v2736, %v2923
    %v2925 = vpop.f32.mrf.mxu0
    %2926 = vmatprep.mubr.f32.mxu0 0.0
    %2927 = vmatmul.mubr.f32.gmra.mxu0 %v2703
    %v2928 = vpop.f32.mrf.mxu0
    %v2929 = vadd.f32 %v2736, %v2928
    %v2930 = vpop.f32.mrf.mxu0
    %2931 = vmatprep.mubr.f32.mxu0 0.0
    %2932 = vmatmul.mubr.f32.gmra.mxu0 %v2705
    %v2933 = vpop.f32.mrf.mxu0
    %v2934 = vadd.f32 %v2736, %v2933
    %v2935 = vpop.f32.mrf.mxu0
    %2936 = vmatprep.mubr.f32.mxu0 0.0
    %2937 = vmatmul.mubr.f32.gmra.mxu0 %v2707
    %v2938 = vpop.f32.mrf.mxu0
    %v2939 = vadd.f32 %v2736, %v2938
    %v2940 = vpop.f32.mrf.mxu0
    %2941 = vmatprep.mubr.f32.mxu0 0.0
    %2942 = vmatmul.mubr.f32.gmra.mxu0 %v2709
    %v2943 = vpop.f32.mrf.mxu0
    %v2944 = vadd.f32 %v2736, %v2943
    %v2945 = vpop.f32.mrf.mxu0
    %2946 = vmatprep.mubr.f32.mxu0 0.0
    %2947 = vmatmul.mubr.f32.gmra.mxu0 %v2711
    %v2948 = vpop.f32.mrf.mxu0
    %v2949 = vadd.f32 %v2736, %v2948
    %v2950 = vpop.f32.mrf.mxu0
    %2951 = vmatprep.mubr.f32.mxu0 0.0
    %2952 = vmatmul.mubr.f32.gmra.mxu0 %v2713
    %v2953 = vpop.f32.mrf.mxu0
    %v2954 = vadd.f32 %v2736, %v2953
    %v2955 = vpop.f32.mrf.mxu0
    %2956 = vmatprep.mubr.f32.mxu0 0.0
    %2957 = vmatmul.mubr.f32.gmra.mxu0 %v2715
    %v2958 = vpop.f32.mrf.mxu0
    %v2959 = vadd.f32 %v2736, %v2958
    %v2960 = vpop.f32.mrf.mxu0
    %2961 = vdwg.mxu0
    %v2962 = vmax.f32 %v2804, 0.0
    %v2963 = vmax.f32 %v2809, 0.0
    %v2964 = vmax.f32 %v2814, 0.0
    %v2965 = vmax.f32 %v2819, 0.0
    %v2966 = vmax.f32 %v2824, 0.0
    %v2967 = vmax.f32 %v2829, 0.0
    %v2968 = vmax.f32 %v2834, 0.0
    %v2969 = vmax.f32 %v2839, 0.0
    %v2970 = vmax.f32 %v2844, 0.0
    %v2971 = vmax.f32 %v2849, 0.0
    %v2972 = vmax.f32 %v2854, 0.0
    %v2973 = vmax.f32 %v2859, 0.0
    %v2974 = vmax.f32 %v2864, 0.0
    %v2975 = vmax.f32 %v2869, 0.0
    %v2976 = vmax.f32 %v2874, 0.0
    %v2977 = vmax.f32 %v2879, 0.0
    %v2978 = vmax.f32 %v2884, 0.0
    %v2979 = vmax.f32 %v2889, 0.0
    %v2980 = vmax.f32 %v2894, 0.0
    %v2981 = vmax.f32 %v2899, 0.0
    %v2982 = vmax.f32 %v2904, 0.0
    %v2983 = vmax.f32 %v2909, 0.0
    %v2984 = vmax.f32 %v2914, 0.0
    %v2985 = vmax.f32 %v2919, 0.0
    %v2986 = vmax.f32 %v2924, 0.0
    %v2987 = vmax.f32 %v2929, 0.0
    %v2988 = vmax.f32 %v2934, 0.0
    %v2989 = vmax.f32 %v2939, 0.0
    %v2990 = vmax.f32 %v2944, 0.0
    %v2991 = vmax.f32 %v2949, 0.0
    %v2992 = vmax.f32 %v2954, 0.0
    %v2993 = vmax.f32 %v2959, 0.0
    %v2994 = vld [vmem:[%s2 + $0x400] sm:$0xff]
    %v2995 = vld [vmem:[%s2 + $0x408] sm:$0xff]
    %v2996 = vld [vmem:[%s2 + $0x410] sm:$0xff]
    %v2997 = vld [vmem:[%s2 + $0x418] sm:$0xff]
    %v2998 = vld [vmem:[%s2 + $0x420] sm:$0xff]
    %v2999 = vld [vmem:[%s2 + $0x428] sm:$0xff]
    %v3000 = vld [vmem:[%s2 + $0x430] sm:$0xff]
    %v3001 = vld [vmem:[%s2 + $0x438] sm:$0xff]
    %v3002 = vld [vmem:[%s2 + $0x440] sm:$0xff]
    %v3003 = vld [vmem:[%s2 + $0x448] sm:$0xff]
    %v3004 = vld [vmem:[%s2 + $0x450] sm:$0xff]
    %v3005 = vld [vmem:[%s2 + $0x458] sm:$0xff]
    %v3006 = vld [vmem:[%s2 + $0x460] sm:$0xff]
    %v3007 = vld [vmem:[%s2 + $0x468] sm:$0xff]
    %v3008 = vld [vmem:[%s2 + $0x470] sm:$0xff]
    %v3009 = vld [vmem:[%s2 + $0x478] sm:$0xff]
    %v3010 = vld [vmem:[%s3 + $0x8] sm:$0x1]
    %v3011 = vlaneseq
    %v3012 = vshrl.u32 %v3011, 7
    %v3013 = vsub.s32 0, %v3012
    %v3014 = vrot.slane %v3010, %v3013
    %3015 = vmatprep.subr.mxu0 0.0
    %3016 = vmatpush1.msra.mxu0 %v3009
    %3017 = vmatprep.subr.mxu0 0.0
    %3018 = vmatpush1.msra.mxu0 %v3008
    %3019 = vmatprep.subr.mxu0 0.0
    %3020 = vmatpush1.msra.mxu0 %v3007
    %3021 = vmatprep.subr.mxu0 0.0
    %3022 = vmatpush1.msra.mxu0 %v3006
    %3023 = vmatprep.subr.mxu0 0.0
    %3024 = vmatpush1.msra.mxu0 %v3005
    %3025 = vmatprep.subr.mxu0 0.0
    %3026 = vmatpush1.msra.mxu0 %v3004
    %3027 = vmatprep.subr.mxu0 0.0
    %3028 = vmatpush1.msra.mxu0 %v3003
    %3029 = vmatprep.subr.mxu0 0.0
    %3030 = vmatpush1.msra.mxu0 %v3002
    %3031 = vmatprep.subr.mxu0 0.0
    %3032 = vmatpush1.msra.mxu0 %v3001
    %3033 = vmatprep.subr.mxu0 0.0
    %3034 = vmatpush1.msra.mxu0 %v3000
    %3035 = vmatprep.subr.mxu0 0.0
    %3036 = vmatpush1.msra.mxu0 %v2999
    %3037 = vmatprep.subr.mxu0 0.0
    %3038 = vmatpush1.msra.mxu0 %v2998
    %3039 = vmatprep.subr.mxu0 0.0
    %3040 = vmatpush1.msra.mxu0 %v2997
    %3041 = vmatprep.subr.mxu0 0.0
    %3042 = vmatpush1.msra.mxu0 %v2996
    %3043 = vmatprep.subr.mxu0 0.0
    %3044 = vmatpush1.msra.mxu0 %v2995
    %3045 = vmatprep.subr.mxu0 0.0
    %3046 = vmatpush1.msra.mxu0 %v2994
    %3047 = vmatprep.subr.mxu0 0.0
    %3048 = vmatpush2.msra.mxu0 0.0
    %3049 = vmatprep.subr.mxu0 0.0
    %3050 = vmatpush2.msra.mxu0 0.0
    %3051 = vmatprep.subr.mxu0 0.0
    %3052 = vmatpush2.msra.mxu0 0.0
    %3053 = vmatprep.subr.mxu0 0.0
    %3054 = vmatpush2.msra.mxu0 0.0
    %3055 = vmatprep.subr.mxu0 0.0
    %3056 = vmatpush2.msra.mxu0 0.0
    %3057 = vmatprep.subr.mxu0 0.0
    %3058 = vmatpush2.msra.mxu0 0.0
    %3059 = vmatprep.subr.mxu0 0.0
    %3060 = vmatpush2.msra.mxu0 0.0
    %3061 = vmatprep.subr.mxu0 0.0
    %3062 = vmatpush2.msra.mxu0 0.0
    %3063 = vmatprep.subr.mxu0 0.0
    %3064 = vmatpush2.msra.mxu0 0.0
    %3065 = vmatprep.subr.mxu0 0.0
    %3066 = vmatpush2.msra.mxu0 0.0
    %3067 = vmatprep.subr.mxu0 0.0
    %3068 = vmatpush2.msra.mxu0 0.0
    %3069 = vmatprep.subr.mxu0 0.0
    %3070 = vmatpush2.msra.mxu0 0.0
    %3071 = vmatprep.subr.mxu0 0.0
    %3072 = vmatpush2.msra.mxu0 0.0
    %3073 = vmatprep.subr.mxu0 0.0
    %3074 = vmatpush2.msra.mxu0 0.0
    %3075 = vmatprep.subr.mxu0 0.0
    %3076 = vmatpush2.msra.mxu0 0.0
    %3077 = vmatprep.subr.mxu0 0.0
    %3078 = vmatpush2.msra.mxu0 0.0
    %3079 = vmatprep.mubr.f32.mxu0 0.0
    %3080 = vmatmul.mubr.f32.gmra.mxu0 %v2962
    %v3081 = vpop.f32.mrf.mxu0
    %v3082 = vadd.f32 %v3014, %v3081
    %v3083 = vpop.f32.mrf.mxu0
    %3084 = vmatprep.mubr.f32.mxu0 0.0
    %3085 = vmatmul.mubr.f32.gmra.mxu0 %v2963
    %v3086 = vpop.f32.mrf.mxu0
    %v3087 = vadd.f32 %v3014, %v3086
    %v3088 = vpop.f32.mrf.mxu0
    %3089 = vmatprep.mubr.f32.mxu0 0.0
    %3090 = vmatmul.mubr.f32.gmra.mxu0 %v2964
    %v3091 = vpop.f32.mrf.mxu0
    %v3092 = vadd.f32 %v3014, %v3091
    %v3093 = vpop.f32.mrf.mxu0
    %3094 = vmatprep.mubr.f32.mxu0 0.0
    %3095 = vmatmul.mubr.f32.gmra.mxu0 %v2965
    %v3096 = vpop.f32.mrf.mxu0
    %v3097 = vadd.f32 %v3014, %v3096
    %v3098 = vpop.f32.mrf.mxu0
    %3099 = vmatprep.mubr.f32.mxu0 0.0
    %3100 = vmatmul.mubr.f32.gmra.mxu0 %v2966
    %v3101 = vpop.f32.mrf.mxu0
    %v3102 = vadd.f32 %v3014, %v3101
    %v3103 = vpop.f32.mrf.mxu0
    %3104 = vmatprep.mubr.f32.mxu0 0.0
    %3105 = vmatmul.mubr.f32.gmra.mxu0 %v2967
    %v3106 = vpop.f32.mrf.mxu0
    %v3107 = vadd.f32 %v3014, %v3106
    %v3108 = vpop.f32.mrf.mxu0
    %3109 = vmatprep.mubr.f32.mxu0 0.0
    %3110 = vmatmul.mubr.f32.gmra.mxu0 %v2968
    %v3111 = vpop.f32.mrf.mxu0
    %v3112 = vadd.f32 %v3014, %v3111
    %v3113 = vpop.f32.mrf.mxu0
    %3114 = vmatprep.mubr.f32.mxu0 0.0
    %3115 = vmatmul.mubr.f32.gmra.mxu0 %v2969
    %v3116 = vpop.f32.mrf.mxu0
    %v3117 = vadd.f32 %v3014, %v3116
    %v3118 = vpop.f32.mrf.mxu0
    %3119 = vmatprep.mubr.f32.mxu0 0.0
    %3120 = vmatmul.mubr.f32.gmra.mxu0 %v2970
    %v3121 = vpop.f32.mrf.mxu0
    %v3122 = vadd.f32 %v3014, %v3121
    %v3123 = vpop.f32.mrf.mxu0
    %3124 = vmatprep.mubr.f32.mxu0 0.0
    %3125 = vmatmul.mubr.f32.gmra.mxu0 %v2971
    %v3126 = vpop.f32.mrf.mxu0
    %v3127 = vadd.f32 %v3014, %v3126
    %v3128 = vpop.f32.mrf.mxu0
    %3129 = vmatprep.mubr.f32.mxu0 0.0
    %3130 = vmatmul.mubr.f32.gmra.mxu0 %v2972
    %v3131 = vpop.f32.mrf.mxu0
    %v3132 = vadd.f32 %v3014, %v3131
    %v3133 = vpop.f32.mrf.mxu0
    %3134 = vmatprep.mubr.f32.mxu0 0.0
    %3135 = vmatmul.mubr.f32.gmra.mxu0 %v2973
    %v3136 = vpop.f32.mrf.mxu0
    %v3137 = vadd.f32 %v3014, %v3136
    %v3138 = vpop.f32.mrf.mxu0
    %3139 = vmatprep.mubr.f32.mxu0 0.0
    %3140 = vmatmul.mubr.f32.gmra.mxu0 %v2974
    %v3141 = vpop.f32.mrf.mxu0
    %v3142 = vadd.f32 %v3014, %v3141
    %v3143 = vpop.f32.mrf.mxu0
    %3144 = vmatprep.mubr.f32.mxu0 0.0
    %3145 = vmatmul.mubr.f32.gmra.mxu0 %v2975
    %v3146 = vpop.f32.mrf.mxu0
    %v3147 = vadd.f32 %v3014, %v3146
    %v3148 = vpop.f32.mrf.mxu0
    %3149 = vmatprep.mubr.f32.mxu0 0.0
    %3150 = vmatmul.mubr.f32.gmra.mxu0 %v2976
    %v3151 = vpop.f32.mrf.mxu0
    %v3152 = vadd.f32 %v3014, %v3151
    %v3153 = vpop.f32.mrf.mxu0
    %3154 = vmatprep.mubr.f32.mxu0 0.0
    %3155 = vmatmul.mubr.f32.gmra.mxu0 %v2977
    %v3156 = vpop.f32.mrf.mxu0
    %v3157 = vadd.f32 %v3014, %v3156
    %v3158 = vpop.f32.mrf.mxu0
    %3159 = vmatprep.mubr.f32.mxu0 0.0
    %3160 = vmatmul.mubr.f32.gmra.mxu0 %v2978
    %v3161 = vpop.f32.mrf.mxu0
    %v3162 = vadd.f32 %v3014, %v3161
    %v3163 = vpop.f32.mrf.mxu0
    %3164 = vmatprep.mubr.f32.mxu0 0.0
    %3165 = vmatmul.mubr.f32.gmra.mxu0 %v2979
    %v3166 = vpop.f32.mrf.mxu0
    %v3167 = vadd.f32 %v3014, %v3166
    %v3168 = vpop.f32.mrf.mxu0
    %3169 = vmatprep.mubr.f32.mxu0 0.0
    %3170 = vmatmul.mubr.f32.gmra.mxu0 %v2980
    %v3171 = vpop.f32.mrf.mxu0
    %v3172 = vadd.f32 %v3014, %v3171
    %v3173 = vpop.f32.mrf.mxu0
    %3174 = vmatprep.mubr.f32.mxu0 0.0
    %3175 = vmatmul.mubr.f32.gmra.mxu0 %v2981
    %v3176 = vpop.f32.mrf.mxu0
    %v3177 = vadd.f32 %v3014, %v3176
    %v3178 = vpop.f32.mrf.mxu0
    %3179 = vmatprep.mubr.f32.mxu0 0.0
    %3180 = vmatmul.mubr.f32.gmra.mxu0 %v2982
    %v3181 = vpop.f32.mrf.mxu0
    %v3182 = vadd.f32 %v3014, %v3181
    %v3183 = vpop.f32.mrf.mxu0
    %3184 = vmatprep.mubr.f32.mxu0 0.0
    %3185 = vmatmul.mubr.f32.gmra.mxu0 %v2983
    %v3186 = vpop.f32.mrf.mxu0
    %v3187 = vadd.f32 %v3014, %v3186
    %v3188 = vpop.f32.mrf.mxu0
    %3189 = vmatprep.mubr.f32.mxu0 0.0
    %3190 = vmatmul.mubr.f32.gmra.mxu0 %v2984
    %v3191 = vpop.f32.mrf.mxu0
    %v3192 = vadd.f32 %v3014, %v3191
    %v3193 = vpop.f32.mrf.mxu0
    %3194 = vmatprep.mubr.f32.mxu0 0.0
    %3195 = vmatmul.mubr.f32.gmra.mxu0 %v2985
    %v3196 = vpop.f32.mrf.mxu0
    %v3197 = vadd.f32 %v3014, %v3196
    %v3198 = vpop.f32.mrf.mxu0
    %3199 = vmatprep.mubr.f32.mxu0 0.0
    %3200 = vmatmul.mubr.f32.gmra.mxu0 %v2986
    %v3201 = vpop.f32.mrf.mxu0
    %v3202 = vadd.f32 %v3014, %v3201
    %v3203 = vpop.f32.mrf.mxu0
    %3204 = vmatprep.mubr.f32.mxu0 0.0
    %3205 = vmatmul.mubr.f32.gmra.mxu0 %v2987
    %v3206 = vpop.f32.mrf.mxu0
    %v3207 = vadd.f32 %v3014, %v3206
    %v3208 = vpop.f32.mrf.mxu0
    %3209 = vmatprep.mubr.f32.mxu0 0.0
    %3210 = vmatmul.mubr.f32.gmra.mxu0 %v2988
    %v3211 = vpop.f32.mrf.mxu0
    %v3212 = vadd.f32 %v3014, %v3211
    %v3213 = vpop.f32.mrf.mxu0
    %3214 = vmatprep.mubr.f32.mxu0 0.0
    %3215 = vmatmul.mubr.f32.gmra.mxu0 %v2989
    %v3216 = vpop.f32.mrf.mxu0
    %v3217 = vadd.f32 %v3014, %v3216
    %v3218 = vpop.f32.mrf.mxu0
    %3219 = vmatprep.mubr.f32.mxu0 0.0
    %3220 = vmatmul.mubr.f32.gmra.mxu0 %v2990
    %v3221 = vpop.f32.mrf.mxu0
    %v3222 = vadd.f32 %v3014, %v3221
    %v3223 = vpop.f32.mrf.mxu0
    %3224 = vmatprep.mubr.f32.mxu0 0.0
    %3225 = vmatmul.mubr.f32.gmra.mxu0 %v2991
    %v3226 = vpop.f32.mrf.mxu0
    %v3227 = vadd.f32 %v3014, %v3226
    %v3228 = vpop.f32.mrf.mxu0
    %3229 = vmatprep.mubr.f32.mxu0 0.0
    %3230 = vmatmul.mubr.f32.gmra.mxu0 %v2992
    %v3231 = vpop.f32.mrf.mxu0
    %v3232 = vadd.f32 %v3014, %v3231
    %v3233 = vpop.f32.mrf.mxu0
    %3234 = vmatprep.mubr.f32.mxu0 0.0
    %3235 = vmatmul.mubr.f32.gmra.mxu0 %v2993
    %v3236 = vpop.f32.mrf.mxu0
    %v3237 = vadd.f32 %v3014, %v3236
    %v3238 = vpop.f32.mrf.mxu0
    %3239 = vdwg.mxu0
    %3240 = vst [vmem:[#allocation2] sm:$0xff] %v3082
    %3241 = vst [vmem:[#allocation2 + $0x8] sm:$0xff] %v3087
    %3242 = vst [vmem:[#allocation2 + $0x10] sm:$0xff] %v3092
    %3243 = vst [vmem:[#allocation2 + $0x18] sm:$0xff] %v3097
    %3244 = vst [vmem:[#allocation2 + $0x20] sm:$0xff] %v3102
    %3245 = vst [vmem:[#allocation2 + $0x28] sm:$0xff] %v3107
    %3246 = vst [vmem:[#allocation2 + $0x30] sm:$0xff] %v3112
    %3247 = vst [vmem:[#allocation2 + $0x38] sm:$0xff] %v3117
    %3248 = vst [vmem:[#allocation2 + $0x40] sm:$0xff] %v3122
    %3249 = vst [vmem:[#allocation2 + $0x48] sm:$0xff] %v3127
    %3250 = vst [vmem:[#allocation2 + $0x50] sm:$0xff] %v3132
    %3251 = vst [vmem:[#allocation2 + $0x58] sm:$0xff] %v3137
    %3252 = vst [vmem:[#allocation2 + $0x60] sm:$0xff] %v3142
    %3253 = vst [vmem:[#allocation2 + $0x68] sm:$0xff] %v3147
    %3254 = vst [vmem:[#allocation2 + $0x70] sm:$0xff] %v3152
    %3255 = vst [vmem:[#allocation2 + $0x78] sm:$0xff] %v3157
    %3256 = vst [vmem:[#allocation2 + $0x80] sm:$0xff] %v3162
    %3257 = vst [vmem:[#allocation2 + $0x88] sm:$0xff] %v3167
    %3258 = vst [vmem:[#allocation2 + $0x90] sm:$0xff] %v3172
    %3259 = vst [vmem:[#allocation2 + $0x98] sm:$0xff] %v3177
    %3260 = vst [vmem:[#allocation2 + $0xa0] sm:$0xff] %v3182
    %3261 = vst [vmem:[#allocation2 + $0xa8] sm:$0xff] %v3187
    %3262 = vst [vmem:[#allocation2 + $0xb0] sm:$0xff] %v3192
    %3263 = vst [vmem:[#allocation2 + $0xb8] sm:$0xff] %v3197
    %3264 = vst [vmem:[#allocation2 + $0xc0] sm:$0xff] %v3202
    %3265 = vst [vmem:[#allocation2 + $0xc8] sm:$0xff] %v3207
    %3266 = vst [vmem:[#allocation2 + $0xd0] sm:$0xff] %v3212
    %3267 = vst [vmem:[#allocation2 + $0xd8] sm:$0xff] %v3217
    %3268 = vst [vmem:[#allocation2 + $0xe0] sm:$0xff] %v3222
    %3269 = vst [vmem:[#allocation2 + $0xe8] sm:$0xff] %v3227
    %3270 = vst [vmem:[#allocation2 + $0xf0] sm:$0xff] %v3232
    %3271 = vst [vmem:[#allocation2 + $0xf8] sm:$0xff] %v3237
    // Predicated region
    $region18: #{_vae_forward.1} parent=1 // pred_check
      _
    $region19: #{_vae_forward.1} parent=1 // pred_check_branch
      %3273 = sbr.rel (0) target = $region21
    $region20: #{_vae_forward.1} parent=1 // pred_region
      %s3275 = ssub.s32 4096, 4096
      %3276 = vsyncadd [#allocation3], %s3275
      %s3277 = sshll.u32 [#allocation2], 4
      %s3278 = int_to_ptr.vmem [resolvable:$true] %s3277
      %3283 = dma.vmem_to_hbm [thread:$0]  %s3278, 4096, %s4, [#allocation3], 128, 128, 8
    $region21: #{_vae_forward.1} parent=1 // pred_fallthru
      _
    // Predicated region
    $region22: #{_vae_forward.1} parent=1 // pred_check
      _
    $region23: #{_vae_forward.1} parent=1 // pred_check_branch
      %3285 = sbr.rel (0) target = $region25
    $region24: #{_vae_forward.1} parent=1 // pred_region
      %s3287 = ssub.s32 16, 16
      %3288 = vsyncadd [#allocation4], %s3287
      %3291 = dma.smem_to_hbm [#allocation5], 16, %s5, [#allocation4]
    $region25: #{_vae_forward.1} parent=1 // pred_fallthru
      _
    // Predicated region
    $region26: #{_vae_forward.1} parent=1 // pred_check
      _
    $region27: #{_vae_forward.1} parent=1 // pred_check_branch
      %3293 = sbr.rel (0) target = $region29
    $region28: #{_vae_forward.1} parent=1 // pred_region
      %3294 = dma.done [#allocation3], 4096
    $region29: #{_vae_forward.1} parent=1 // pred_fallthru
      _
    // Predicated region
    $region30: #{_vae_forward.1} parent=1 // pred_check
      _
    $region31: #{_vae_forward.1} parent=1 // pred_check_branch
      %3296 = sbr.rel (0) target = $region33
    $region32: #{_vae_forward.1} parent=1 // pred_region
      %3297 = dma.done [#allocation4], 16
    $region33: #{_vae_forward.1} parent=1 // pred_fallthru
      _
    %3298 = sfence
    %3299 = vsyncpa [#allocation3], 1
    %3300 = vsyncpa [#allocation4], 1

</llo_original>
